<compile_context>
chip_gen: v7x
topology: tpu7x:2x2x1
jax: 0.10.0
libtpu: 0.0.40
codegen_flags: <defaults>
</compile_context>

<pallas_src>
import functools

import jax
import jax.numpy as jnp
from jax.experimental import pallas as pl
from jax.experimental.pallas import tpu as pltpu


NEG_SLOPE = 0.01  # F.leaky_relu default negative slope


# ----------------------------------------------------------------------------
# Generation-aware tile / VMEM budgeting
# ----------------------------------------------------------------------------
def _vmem_capacity_bytes():
    try:
        info = pltpu.get_tpu_info()
        cap = getattr(info, "vmem_capacity_bytes", None)
        if cap:
            return int(cap)
    except Exception:
        pass
    return 64 * 1024 * 1024  # conservative fallback: v7x per-TensorCore VMEM


def _choose_tiles(num_nodes, h2, vmem_cap):
    """Return (n_pad, tm, tk) for the dominant aggregation kernel."""
    if num_nodes <= 1024:
        # Full-extent blocks are always layout-legal; split the row axis in two
        # (when cleanly possible) so both v7x TensorCores get a row tile.
        n_pad = num_nodes
        tm = num_nodes // 2 if (num_nodes >= 16 and num_nodes % 16 == 0) else num_nodes
        return n_pad, tm, n_pad

    base = 512
    n_pad = ((num_nodes + base - 1) // base) * base
    tm = base
    hidden = 2 * h2
    # Conservative VMEM budget for signed_agg (double-buffer everything):
    #   adjacency tiles : 2 * (2 * tm * tk * 2B)      = 8 * tm * tk
    #   resident z      : 2 * (2 * n_pad * h2 * 2B)   = 8 * n_pad * h2
    #   acc / r / out blocks in f32
    budget = int(vmem_cap * 0.70)
    fixed = 8 * n_pad * h2 + 5 * 4 * tm * hidden
    avail = max(budget - fixed, 8 * tm * base)
    tk = base
    cand = base
    while (cand * 2) <= n_pad and n_pad % (cand * 2) == 0 and 8 * tm * (cand * 2) <= avail:
        cand *= 2
        tk = cand
    if 8 * tm * n_pad <= avail:
        tk = n_pad  # whole src axis in one tile: the k grid axis disappears
    return n_pad, tm, tk


# ----------------------------------------------------------------------------
# Kernel 1: per-node feature transform.  One wide matmul
#   acc = x @ [Wpl | Wnl | Wpr | Wnr]
# emitting z_stack = (x@Wpl, x@Wnl) in the compute dtype and
#   r = [x@Wpr + bp | x@Wnr + bn]   in f32, straight from the kernel.
# ----------------------------------------------------------------------------
def transform_kernel(x_ref, w_ref, b_ref, z_ref, r_ref, *, h2):
    acc = jnp.dot(x_ref[...], w_ref[...], preferred_element_type=jnp.float32)
    z_ref[0] = acc[:, :h2].astype(z_ref.dtype)
    z_ref[1] = acc[:, h2:2 * h2].astype(z_ref.dtype)
    r_ref[...] = (acc[:, 2 * h2:] + b_ref[...]).astype(r_ref.dtype)


def node_transform(x, w_all, b_all, h2, *, tm, compute_dtype):
    n, f = x.shape
    cout = w_all.shape[1]  # 4*h2
    hidden = 2 * h2
    kern = functools.partial(transform_kernel, h2=h2)
    return pl.pallas_call(
        kern,
        out_shape=(jax.ShapeDtypeStruct((2, n, h2), compute_dtype),
                   jax.ShapeDtypeStruct((n, hidden), jnp.float32)),
        grid_spec=pltpu.PrefetchScalarGridSpec(
            num_scalar_prefetch=0,
            grid=(n // tm,),
            in_specs=[
                pl.BlockSpec((tm, f), lambda i: (i, 0)),
                pl.BlockSpec((f, cout), lambda i: (0, 0)),
                pl.BlockSpec((1, hidden), lambda i: (0, 0)),
            ],
            out_specs=(
                pl.BlockSpec((2, tm, h2), lambda i: (0, i, 0)),
                pl.BlockSpec((tm, hidden), lambda i: (i, 0)),
            ),
        ),
        compiler_params=pltpu.CompilerParams(
            dimension_semantics=("parallel",)),
    )(x, w_all, b_all)


# ----------------------------------------------------------------------------
# Kernel 2: signed neighborhood aggregation, tiled over (dst rows, src cols).
# The stacked adjacency streams from HBM (the only big tensor); z stays fully
# VMEM-resident (constant index_map) and is sliced along src inside the kernel.
# ----------------------------------------------------------------------------
def signed_agg_kernel(a_ref, z_ref, r_ref, o_ref, acc_ref, *, tk, n_pad, apply_act):
    k = pl.program_id(1)

    @pl.when(k == 0)
    def _():
        acc_ref[...] = jnp.zeros_like(acc_ref)

    if tk == n_pad:  # single k step: no dynamic slicing needed
        zp = z_ref[0]
        zn = z_ref[1]
    else:
        off = pl.multiple_of(k * tk, tk)
        zp = z_ref[0, pl.ds(off, tk), :]
        zn = z_ref[1, pl.ds(off, tk), :]

    acc_ref[0] += jnp.dot(a_ref[0], zp, preferred_element_type=jnp.float32)
    acc_ref[1] += jnp.dot(a_ref[1], zn, preferred_element_type=jnp.float32)

    @pl.when(k == pl.num_programs(1) - 1)
    def _():
        out = jnp.concatenate([acc_ref[0], acc_ref[1]], axis=-1) + r_ref[...]
        if apply_act:
            out = jnp.where(out > 0, out, NEG_SLOPE * out)  # f32 epilogue
        o_ref[...] = out.astype(o_ref.dtype)


def signed_agg(a_stack, z_stack, r, *, apply_act, tm, tk, vmem_limit):
    n_pad = a_stack.shape[1]
    h2 = z_stack.shape[2]
    hidden = 2 * h2
    grid = (n_pad // tm, n_pad // tk)
    kern = functools.partial(signed_agg_kernel, tk=tk, n_pad=n_pad,
                             apply_act=apply_act)

    flops = 4 * n_pad * n_pad * h2 + 2 * n_pad * hidden
    bytes_accessed = (a_stack.size * a_stack.dtype.itemsize
                      + z_stack.size * z_stack.dtype.itemsize
                      + r.size * 4 + n_pad * hidden * 4)

    return pl.pallas_call(
        kern,
        out_shape=jax.ShapeDtypeStruct((n_pad, hidden), jnp.float32),
        grid_spec=pltpu.PrefetchScalarGridSpec(
            num_scalar_prefetch=0,
            grid=grid,
            in_specs=[
                pl.BlockSpec((2, tm, tk), lambda i, k: (0, i, k)),     # adjacency stream
                pl.BlockSpec((2, n_pad, h2), lambda i, k: (0, 0, 0)),  # resident feats
                pl.BlockSpec((tm, hidden), lambda i, k: (i, 0)),       # root term + bias
            ],
            out_specs=pl.BlockSpec((tm, hidden), lambda i, k: (i, 0)),
            scratch_shapes=[pltpu.VMEM((2, tm, h2), jnp.float32)],
        ),
        compiler_params=pltpu.CompilerParams(
            dimension_semantics=("parallel", "arbitrary"),
            vmem_limit_bytes=int(vmem_limit)),
        cost_estimate=pl.CostEstimate(flops=int(flops), transcendentals=0,
                                      bytes_accessed=int(bytes_accessed)),
    )(a_stack, z_stack, r)


# ----------------------------------------------------------------------------
# Kernel 3: readout head. K-tiled matmul with accumulator, M padded to 8
# sublanes; the final Linear(hidden, 1) stays a lane reduction.  (Negligible
# cost — unchanged per review.)
# ----------------------------------------------------------------------------
def readout_kernel(xf_ref, wro_ref, bro_ref, wlin_ref, blin_ref, o_ref, acc_ref):
    k = pl.program_id(0)

    @pl.when(k == 0)
    def _():
        acc_ref[...] = jnp.zeros_like(acc_ref)

    acc_ref[...] += jnp.dot(xf_ref[...], wro_ref[...],
                            preferred_element_type=jnp.float32)

    @pl.when(k == pl.num_programs(0) - 1)
    def _():
        h = acc_ref[...] + bro_ref[...]
        # dropout(p=0.5) in eval mode == identity
        out = jnp.sum(h * wlin_ref[...], axis=-1, keepdims=True) + blin_ref[...]
        o_ref[...] = out.astype(o_ref.dtype)


def readout_head(x_flat, w_ro, b_ro, w_lin, b_lin):
    g, kdim = x_flat.shape
    hidden = w_ro.shape[1]
    g_pad = ((g + 7) // 8) * 8                       # fill sublanes
    tk = kdim if kdim <= 2048 else 2048
    k_pad = ((kdim + tk - 1) // tk) * tk

    xf = jnp.zeros((g_pad, k_pad), jnp.float32).at[:g, :kdim].set(x_flat)
    wro = w_ro if k_pad == kdim else jnp.pad(w_ro, ((0, k_pad - kdim), (0, 0)))

    out = pl.pallas_call(
        readout_kernel,
        out_shape=jax.ShapeDtypeStruct((g_pad, 1), jnp.float32),
        grid_spec=pltpu.PrefetchScalarGridSpec(
            num_scalar_prefetch=0,
            grid=(k_pad // tk,),
            in_specs=[
                pl.BlockSpec((g_pad, tk), lambda k: (0, k)),
                pl.BlockSpec((tk, hidden), lambda k: (k, 0)),
                pl.BlockSpec((1, hidden), lambda k: (0, 0)),
                pl.BlockSpec((1, hidden), lambda k: (0, 0)),
                pl.BlockSpec((1, 1), lambda k: (0, 0)),
            ],
            out_specs=pl.BlockSpec((g_pad, 1), lambda k: (0, 0)),
            scratch_shapes=[pltpu.VMEM((g_pad, hidden), jnp.float32)],
        ),
        compiler_params=pltpu.CompilerParams(
            dimension_semantics=("arbitrary",)),
    )(xf, wro, b_ro, w_lin, b_lin)
    return out[:g]


# ----------------------------------------------------------------------------
# Model wrapper (glue in plain JAX)
# ----------------------------------------------------------------------------
def build_signed_adjacency(edge_index, edge_weight, n_pad, dtype):
    src, dst = edge_index[0], edge_index[1]
    w = jnp.stack([jnp.maximum(edge_weight, 0.0),
                   jnp.maximum(-edge_weight, 0.0)])          # (2, E)
    # f32 scatter (exact duplicate-edge accumulation), single cast for the kernel
    a = jnp.zeros((2, n_pad, n_pad), jnp.float32).at[:, dst, src].add(w)
    return a.astype(dtype)


def _pad_rows(a, n_pad):
    pad = n_pad - a.shape[0]
    if pad == 0:
        return a
    return jnp.pad(a, ((0, pad), (0, 0)))


def signed_conv_layer(a_stack, x, conv, *, apply_act, tm, tk, compute_dtype, vmem_limit):
    h2 = conv["wpl"].shape[1]
    # fused "left"/"right" weights -> one wide (lane 4*h2) matmul
    w_all = jnp.concatenate([conv["wpl"], conv["wnl"],
                             conv["wpr"], conv["wnr"]], axis=1)   # (F, 4*h2)
    b_all = jnp.concatenate([conv["bp"], conv["bn"]], axis=1)     # (1, 2*h2)

    z_stack, r = node_transform(x, w_all, b_all, h2, tm=tm,
                                compute_dtype=compute_dtype)
    return signed_agg(a_stack, z_stack, r, apply_act=apply_act,
                      tm=tm, tk=tk, vmem_limit=vmem_limit)


def signed_gcn_forward(params, x, edge_index, edge_weight, *,
                       num_graphs, node_sz, hidden_size,
                       compute_dtype=jnp.bfloat16):
    num_nodes = x.shape[0]
    h2 = hidden_size // 2

    vmem_cap = _vmem_capacity_bytes()
    n_pad, tm, tk = _choose_tiles(num_nodes, h2, vmem_cap)
    vmem_limit = min(int(vmem_cap * 0.85), 112 * 1024 * 1024)

    a_stack = build_signed_adjacency(edge_index, edge_weight, n_pad, compute_dtype)
    h = _pad_rows(x.astype(jnp.float32), n_pad)

    num_layers = len(params["convs"])
    for i, conv in enumerate(params["convs"]):
        h = signed_conv_layer(a_stack, h, conv,
                              apply_act=(i < num_layers - 1),
                              tm=tm, tk=tk, compute_dtype=compute_dtype,
                              vmem_limit=vmem_limit)

    # readout: assumes `batch` groups nodes contiguously with node_sz nodes/graph
    x_flat = h[:num_graphs * node_sz].reshape(num_graphs, node_sz * hidden_size)
    return readout_head(x_flat, params["w_ro"], params["b_ro"],
                        params["w_lin"], params["b_lin"])


# ----------------------------------------------------------------------------
# Pure-JAX reference (original, un-reordered formulation) for verification
# ----------------------------------------------------------------------------
def reference_forward(params, x, edge_index, edge_weight, num_graphs, node_sz, hidden_size):
    n = x.shape[0]
    src, dst = edge_index[0], edge_index[1]
    a_pos = jnp.zeros((n, n), jnp.float32).at[dst, src].add(jnp.maximum(edge_weight, 0.0))
    a_neg = jnp.zeros((n, n), jnp.float32).at[dst, src].add(jnp.maximum(-edge_weight, 0.0))
    num_layers = len(params["convs"])
    h = x
    for i, conv in enumerate(params["convs"]):
        out_p = (a_pos @ h) @ conv["wpl"] + h @ conv["wpr"] + conv["bp"]
        out_n = (a_neg @ h) @ conv["wnl"] + h @ conv["wnr"] + conv["bn"]
        h = jnp.concatenate([out_p, out_n], axis=-1)
        if i < num_layers - 1:
            h = jnp.where(h > 0, h, NEG_SLOPE * h)
    xf = h[:num_graphs * node_sz].reshape(num_graphs, node_sz * hidden_size)
    hro = xf @ params["w_ro"] + params["b_ro"]
    return jnp.sum(hro * params["w_lin"], axis=-1, keepdims=True) + params["b_lin"]


def init_params(key, num_layers, node_feature_sz, hidden_size, node_sz):
    h2 = hidden_size // 2
    params = {"convs": []}
    keys = jax.random.split(key, num_layers * 6 + 4)
    k = 0
    for i in range(num_layers):
        fin = node_feature_sz if i == 0 else hidden_size
        scale = 1.0 / jnp.sqrt(fin)
        conv = {
            "wpl": jax.random.uniform(keys[k + 0], (fin, h2), jnp.float32, -scale, scale),
            "wpr": jax.random.uniform(keys[k + 1], (fin, h2), jnp.float32, -scale, scale),
            "wnl": jax.random.uniform(keys[k + 2], (fin, h2), jnp.float32, -scale, scale),
            "wnr": jax.random.uniform(keys[k + 3], (fin, h2), jnp.float32, -scale, scale),
            "bp": jax.random.uniform(keys[k + 4], (1, h2), jnp.float32, -scale, scale),
            "bn": jax.random.uniform(keys[k + 5], (1, h2), jnp.float32, -scale, scale),
        }
        params["convs"].append(conv)
        k += 6
    fin_ro = node_sz * hidden_size
    s_ro = 1.0 / jnp.sqrt(fin_ro)
    params["w_ro"] = jax.random.uniform(keys[k + 0], (fin_ro, hidden_size), jnp.float32, -s_ro, s_ro)
    params["b_ro"] = jax.random.uniform(keys[k + 1], (1, hidden_size), jnp.float32, -s_ro, s_ro)
    s_l = 1.0 / jnp.sqrt(hidden_size)
    params["w_lin"] = jax.random.uniform(keys[k + 2], (1, hidden_size), jnp.float32, -s_l, s_l)
    params["b_lin"] = jax.random.uniform(keys[k + 3], (1, 1), jnp.float32, -s_l, s_l)
    return params


if __name__ == "__main__":
    # small synthetic config
    num_layers = 2
    hidden_size = 32
    node_feature_sz = 8
    node_sz = 16
    num_graphs = 2
    num_nodes = num_graphs * node_sz
    num_edges = 64

    key = jax.random.PRNGKey(0)
    k_param, k_x, k_src, k_dst, k_w = jax.random.split(key, 5)

    params = init_params(k_param, num_layers, node_feature_sz, hidden_size, node_sz)

    # node features
    x = jax.random.normal(k_x, (num_nodes, node_feature_sz), jnp.float32)

    # random signed edges, each constrained to stay within its own graph
    graph_of_edge = jnp.repeat(jnp.arange(num_graphs), num_edges // num_graphs)
    src_local = jax.random.randint(k_src, (num_edges,), 0, node_sz)
    dst_local = jax.random.randint(k_dst, (num_edges,), 0, node_sz)
    src = graph_of_edge * node_sz + src_local
    dst = graph_of_edge * node_sz + dst_local
    edge_index = jnp.stack([src, dst]).astype(jnp.int32)
    edge_weight = jax.random.uniform(k_w, (num_edges,), jnp.float32, -1.0, 1.0)

    batch = jnp.repeat(jnp.arange(num_graphs), node_sz)  # contiguous grouping assumed

    fwd = jax.jit(functools.partial(signed_gcn_forward,
                                    num_graphs=num_graphs,
                                    node_sz=node_sz,
                                    hidden_size=hidden_size))
    out = jax.block_until_ready(fwd(params, x, edge_index, edge_weight))

    assert out.shape == (num_graphs, 1)
    assert not bool(jnp.isnan(out).any())

    ref = reference_forward(params, x, edge_index, edge_weight,
                            num_graphs, node_sz, hidden_size)
    assert bool(jnp.allclose(out, ref, atol=1e-1, rtol=1e-1)), (out, ref)

    print("KERNEL_OK")
</pallas_src>

<mosaic_0001>
module attributes {stable_mosaic.version = 11 : i64} {
  func.func @transform_kernel(%arg0: i32, %arg1: memref<16x8xf32, #tpu.memory_space<vmem>>, %arg2: memref<8x64xf32, #tpu.memory_space<vmem>>, %arg3: memref<1x32xf32, #tpu.memory_space<vmem>>, %arg4: memref<2x16x16xbf16, #tpu.memory_space<vmem>>, %arg5: memref<16x32xf32, #tpu.memory_space<vmem>>) attributes {dimension_semantics = [#tpu.dimension_semantics<parallel>], iteration_bounds = array<i64: 2>, scalar_prefetch = 0 : i64, scratch_operands = 0 : i64, tpu.core_type = #tpu.core_type<tc>, window_params = [{transform_indices = @transform_0, window_bounds = array<i64: 16, 8>}, {pipeline_mode = #tpu.pipeline_mode<synchronous>, transform_indices = @transform_1, window_bounds = array<i64: 8, 64>}, {pipeline_mode = #tpu.pipeline_mode<synchronous>, transform_indices = @transform_2, window_bounds = array<i64: 1, 32>}, {transform_indices = @transform_3, window_bounds = array<i64: 2, 16, 16>}, {transform_indices = @transform_4, window_bounds = array<i64: 16, 32>}]} {
    %c0 = arith.constant 0 : index
    %c0_0 = arith.constant 0 : index
    %0 = vector.load %arg1[%c0, %c0_0] : memref<16x8xf32, #tpu.memory_space<vmem>>, vector<16x8xf32>
    %c0_1 = arith.constant 0 : index
    %c0_2 = arith.constant 0 : index
    %1 = vector.load %arg2[%c0_1, %c0_2] : memref<8x64xf32, #tpu.memory_space<vmem>>, vector<8x64xf32>
    %cst = arith.constant dense<0.000000e+00> : vector<16x64xf32>
    %2 = tpu.matmul %0, %1, %cst {dimension_numbers = #tpu.dot_dimension_numbers<[1], [0], [0], [1], [0, 0, 1, 1], [], []>} : vector<16x8xf32>, vector<8x64xf32>, vector<16x64xf32> -> vector<16x64xf32>
    %3 = vector.extract_strided_slice %2 {offsets = [0, 0], sizes = [16, 16], strides = [1, 1]} : vector<16x64xf32> to vector<16x16xf32>
    %4 = arith.truncf %3 : vector<16x16xf32> to vector<16x16xbf16>
    %c0_3 = arith.constant 0 : index
    %c0_4 = arith.constant 0 : index
    %c0_5 = arith.constant 0 : index
    %5 = vector.load %arg4[%c0_3, %c0_4, %c0_5] : memref<2x16x16xbf16, #tpu.memory_space<vmem>>, vector<1x16x16xbf16>
    %6 = vector.shape_cast %5 : vector<1x16x16xbf16> to vector<16x16xbf16>
    %7 = vector.shape_cast %4 : vector<16x16xbf16> to vector<1x16x16xbf16>
    tpu.vector_store %arg4[%c0_3, %c0_4, %c0_5], %7 {strides = array<i32>} : memref<2x16x16xbf16, #tpu.memory_space<vmem>>, vector<1x16x16xbf16>,
    %8 = vector.extract_strided_slice %2 {offsets = [0, 16], sizes = [16, 16], strides = [1, 1]} : vector<16x64xf32> to vector<16x16xf32>
    %9 = arith.truncf %8 : vector<16x16xf32> to vector<16x16xbf16>
    %c1 = arith.constant 1 : index
    %c0_6 = arith.constant 0 : index
    %c0_7 = arith.constant 0 : index
    %10 = vector.load %arg4[%c1, %c0_6, %c0_7] : memref<2x16x16xbf16, #tpu.memory_space<vmem>>, vector<1x16x16xbf16>
    %11 = vector.shape_cast %10 : vector<1x16x16xbf16> to vector<16x16xbf16>
    %12 = vector.shape_cast %9 : vector<16x16xbf16> to vector<1x16x16xbf16>
    tpu.vector_store %arg4[%c1, %c0_6, %c0_7], %12 {strides = array<i32>} : memref<2x16x16xbf16, #tpu.memory_space<vmem>>, vector<1x16x16xbf16>,
    %13 = vector.extract_strided_slice %2 {offsets = [0, 32], sizes = [16, 32], strides = [1, 1]} : vector<16x64xf32> to vector<16x32xf32>
    %c0_8 = arith.constant 0 : index
    %c0_9 = arith.constant 0 : index
    %14 = vector.load %arg3[%c0_8, %c0_9] : memref<1x32xf32, #tpu.memory_space<vmem>>, vector<1x32xf32>
    %15 = vector.broadcast %14 : vector<1x32xf32> to vector<16x32xf32>
    %16 = arith.addf %13, %15 : vector<16x32xf32>
    %c0_10 = arith.constant 0 : index
    %c0_11 = arith.constant 0 : index
    %17 = vector.load %arg5[%c0_10, %c0_11] : memref<16x32xf32, #tpu.memory_space<vmem>>, vector<16x32xf32>
    tpu.vector_store %arg5[%c0_10, %c0_11], %16 {strides = array<i32>} : memref<16x32xf32, #tpu.memory_space<vmem>>, vector<16x32xf32>,
    return
  }
  func.func @transform_0(%arg0: i32) -> (i32, i32) {
    %c0_i32 = arith.constant 0 : i32
    %c0_i32_0 = arith.constant 0 : i32
    return %arg0, %c0_i32 : i32, i32
  }
  func.func @transform_1(%arg0: i32) -> (i32, i32) {
    %c0_i32 = arith.constant 0 : i32
    %c0_i32_0 = arith.constant 0 : i32
    %c0_i32_1 = arith.constant 0 : i32
    return %c0_i32, %c0_i32_0 : i32, i32
  }
  func.func @transform_2(%arg0: i32) -> (i32, i32) {
    %c0_i32 = arith.constant 0 : i32
    %c0_i32_0 = arith.constant 0 : i32
    %c0_i32_1 = arith.constant 0 : i32
    return %c0_i32, %c0_i32_0 : i32, i32
  }
  func.func @transform_3(%arg0: i32) -> (i32, i32, i32) {
    %c0_i32 = arith.constant 0 : i32
    %c0_i32_0 = arith.constant 0 : i32
    %c0_i32_1 = arith.constant 0 : i32
    return %c0_i32, %arg0, %c0_i32_0 : i32, i32, i32
  }
  func.func @transform_4(%arg0: i32) -> (i32, i32) {
    %c0_i32 = arith.constant 0 : i32
    %c0_i32_0 = arith.constant 0 : i32
    return %arg0, %c0_i32 : i32, i32
  }
}

module attributes {stable_mosaic.version = 11 : i64} {
  func.func @signed_agg_kernel(%arg0: i32, %arg1: i32, %arg2: memref<2x16x32xbf16, #tpu.memory_space<vmem>>, %arg3: memref<2x32x16xbf16, #tpu.memory_space<vmem>>, %arg4: memref<16x32xf32, #tpu.memory_space<vmem>>, %arg5: memref<16x32xf32, #tpu.memory_space<vmem>>, %arg6: memref<2x16x16xf32, #tpu.memory_space<vmem>>) attributes {dimension_semantics = [#tpu.dimension_semantics<parallel>, #tpu.dimension_semantics<arbitrary>], iteration_bounds = array<i64: 2, 1>, scalar_prefetch = 0 : i64, scratch_operands = 1 : i64, tpu.core_type = #tpu.core_type<tc>, window_params = [{transform_indices = @transform_0, window_bounds = array<i64: 2, 16, 32>}, {pipeline_mode = #tpu.pipeline_mode<synchronous>, transform_indices = @transform_1, window_bounds = array<i64: 2, 32, 16>}, {transform_indices = @transform_2, window_bounds = array<i64: 16, 32>}, {transform_indices = @transform_3, window_bounds = array<i64: 16, 32>}]} {
    %c0_i32 = arith.constant 0 : i32
    %0 = arith.cmpi eq, %arg1, %c0_i32 : i32
    %1 = arith.extui %0 : i1 to i32
    %c0_i32_0 = arith.constant 0 : i32
    %2 = arith.cmpi ne, %1, %c0_i32_0 : i32
    scf.if %2 {
      %cst_26 = arith.constant 0.000000e+00 : f32
      %28 = vector.broadcast %cst_26 : f32 to vector<2x16x16xf32>
      %c0_27 = arith.constant 0 : index
      %c0_28 = arith.constant 0 : index
      %c0_29 = arith.constant 0 : index
      %29 = vector.load %arg6[%c0_27, %c0_28, %c0_29] : memref<2x16x16xf32, #tpu.memory_space<vmem>>, vector<2x16x16xf32>
      tpu.vector_store %arg6[%c0_27, %c0_28, %c0_29], %28 {strides = array<i32>} : memref<2x16x16xf32, #tpu.memory_space<vmem>>, vector<2x16x16xf32>,
    } else {
    }
    %c0 = arith.constant 0 : index
    %c0_1 = arith.constant 0 : index
    %c0_2 = arith.constant 0 : index
    %3 = vector.load %arg3[%c0, %c0_1, %c0_2] : memref<2x32x16xbf16, #tpu.memory_space<vmem>>, vector<1x32x16xbf16>
    %4 = vector.shape_cast %3 : vector<1x32x16xbf16> to vector<32x16xbf16>
    %c1 = arith.constant 1 : index
    %c0_3 = arith.constant 0 : index
    %c0_4 = arith.constant 0 : index
    %5 = vector.load %arg3[%c1, %c0_3, %c0_4] : memref<2x32x16xbf16, #tpu.memory_space<vmem>>, vector<1x32x16xbf16>
    %6 = vector.shape_cast %5 : vector<1x32x16xbf16> to vector<32x16xbf16>
    %c0_5 = arith.constant 0 : index
    %c0_6 = arith.constant 0 : index
    %c0_7 = arith.constant 0 : index
    %7 = vector.load %arg6[%c0_5, %c0_6, %c0_7] : memref<2x16x16xf32, #tpu.memory_space<vmem>>, vector<1x16x16xf32>
    %8 = vector.shape_cast %7 : vector<1x16x16xf32> to vector<16x16xf32>
    %c0_8 = arith.constant 0 : index
    %c0_9 = arith.constant 0 : index
    %c0_10 = arith.constant 0 : index
    %9 = vector.load %arg2[%c0_8, %c0_9, %c0_10] : memref<2x16x32xbf16, #tpu.memory_space<vmem>>, vector<1x16x32xbf16>
    %10 = vector.shape_cast %9 : vector<1x16x32xbf16> to vector<16x32xbf16>
    %cst = arith.constant dense<0.000000e+00> : vector<16x16xf32>
    %11 = tpu.matmul %10, %4, %cst {dimension_numbers = #tpu.dot_dimension_numbers<[1], [0], [0], [1], [0, 0, 1, 1], [], []>} : vector<16x32xbf16>, vector<32x16xbf16>, vector<16x16xf32> -> vector<16x16xf32>
    %12 = arith.addf %8, %11 : vector<16x16xf32>
    %c0_11 = arith.constant 0 : index
    %c0_12 = arith.constant 0 : index
    %c0_13 = arith.constant 0 : index
    %13 = vector.load %arg6[%c0_11, %c0_12, %c0_13] : memref<2x16x16xf32, #tpu.memory_space<vmem>>, vector<1x16x16xf32>
    %14 = vector.shape_cast %13 : vector<1x16x16xf32> to vector<16x16xf32>
    %15 = vector.shape_cast %12 : vector<16x16xf32> to vector<1x16x16xf32>
    tpu.vector_store %arg6[%c0_11, %c0_12, %c0_13], %15 {strides = array<i32>} : memref<2x16x16xf32, #tpu.memory_space<vmem>>, vector<1x16x16xf32>,
    %c1_14 = arith.constant 1 : index
    %c0_15 = arith.constant 0 : index
    %c0_16 = arith.constant 0 : index
    %16 = vector.load %arg6[%c1_14, %c0_15, %c0_16] : memref<2x16x16xf32, #tpu.memory_space<vmem>>, vector<1x16x16xf32>
    %17 = vector.shape_cast %16 : vector<1x16x16xf32> to vector<16x16xf32>
    %c1_17 = arith.constant 1 : index
    %c0_18 = arith.constant 0 : index
    %c0_19 = arith.constant 0 : index
    %18 = vector.load %arg2[%c1_17, %c0_18, %c0_19] : memref<2x16x32xbf16, #tpu.memory_space<vmem>>, vector<1x16x32xbf16>
    %19 = vector.shape_cast %18 : vector<1x16x32xbf16> to vector<16x32xbf16>
    %cst_20 = arith.constant dense<0.000000e+00> : vector<16x16xf32>
    %20 = tpu.matmul %19, %6, %cst_20 {dimension_numbers = #tpu.dot_dimension_numbers<[1], [0], [0], [1], [0, 0, 1, 1], [], []>} : vector<16x32xbf16>, vector<32x16xbf16>, vector<16x16xf32> -> vector<16x16xf32>
    %21 = arith.addf %17, %20 : vector<16x16xf32>
    %c1_21 = arith.constant 1 : index
    %c0_22 = arith.constant 0 : index
    %c0_23 = arith.constant 0 : index
    %22 = vector.load %arg6[%c1_21, %c0_22, %c0_23] : memref<2x16x16xf32, #tpu.memory_space<vmem>>, vector<1x16x16xf32>
    %23 = vector.shape_cast %22 : vector<1x16x16xf32> to vector<16x16xf32>
    %24 = vector.shape_cast %21 : vector<16x16xf32> to vector<1x16x16xf32>
    tpu.vector_store %arg6[%c1_21, %c0_22, %c0_23], %24 {strides = array<i32>} : memref<2x16x16xf32, #tpu.memory_space<vmem>>, vector<1x16x16xf32>,
    %c0_i32_24 = arith.constant 0 : i32
    %25 = arith.cmpi eq, %arg1, %c0_i32_24 : i32
    %26 = arith.extui %25 : i1 to i32
    %c0_i32_25 = arith.constant 0 : i32
    %27 = arith.cmpi ne, %26, %c0_i32_25 : i32
    scf.if %27 {
      %c0_26 = arith.constant 0 : index
      %c0_27 = arith.constant 0 : index
      %c0_28 = arith.constant 0 : index
      %28 = vector.load %arg6[%c0_26, %c0_27, %c0_28] : memref<2x16x16xf32, #tpu.memory_space<vmem>>, vector<1x16x16xf32>
      %29 = vector.shape_cast %28 : vector<1x16x16xf32> to vector<16x16xf32>
      %c1_29 = arith.constant 1 : index
      %c0_30 = arith.constant 0 : index
      %c0_31 = arith.constant 0 : index
      %30 = vector.load %arg6[%c1_29, %c0_30, %c0_31] : memref<2x16x16xf32, #tpu.memory_space<vmem>>, vector<1x16x16xf32>
      %31 = vector.shape_cast %30 : vector<1x16x16xf32> to vector<16x16xf32>
      %32 = tpu.concatenate %29, %31 in 1 : vector<16x16xf32>, vector<16x16xf32> -> vector<16x32xf32>
      %c0_32 = arith.constant 0 : index
      %c0_33 = arith.constant 0 : index
      %33 = vector.load %arg4[%c0_32, %c0_33] : memref<16x32xf32, #tpu.memory_space<vmem>>, vector<16x32xf32>
      %34 = arith.addf %32, %33 : vector<16x32xf32>
      %cst_34 = arith.constant 0.000000e+00 : f32
      %35 = vector.broadcast %cst_34 : f32 to vector<16x32xf32>
      %36 = arith.cmpf ogt, %34, %35 : vector<16x32xf32>
      %cst_35 = arith.constant 0.00999999977 : f32
      %37 = vector.broadcast %cst_35 : f32 to vector<16x32xf32>
      %38 = arith.mulf %37, %34 : vector<16x32xf32>
      %39 = arith.select %36, %34, %38 : vector<16x32xi1>, vector<16x32xf32>
      %c0_36 = arith.constant 0 : index
      %c0_37 = arith.constant 0 : index
      %40 = vector.load %arg5[%c0_36, %c0_37] : memref<16x32xf32, #tpu.memory_space<vmem>>, vector<16x32xf32>
      tpu.vector_store %arg5[%c0_36, %c0_37], %39 {strides = array<i32>} : memref<16x32xf32, #tpu.memory_space<vmem>>, vector<16x32xf32>,
    } else {
    }
    return
  }
  func.func @transform_0(%arg0: i32, %arg1: i32) -> (i32, i32, i32) {
    %c0_i32 = arith.constant 0 : i32
    %c0_i32_0 = arith.constant 0 : i32
    return %c0_i32, %arg0, %arg1 : i32, i32, i32
  }
  func.func @transform_1(%arg0: i32, %arg1: i32) -> (i32, i32, i32) {
    %c0_i32 = arith.constant 0 : i32
    %c0_i32_0 = arith.constant 0 : i32
    %c0_i32_1 = arith.constant 0 : i32
    %c0_i32_2 = arith.constant 0 : i32
    return %c0_i32, %c0_i32_0, %c0_i32_1 : i32, i32, i32
  }
  func.func @transform_2(%arg0: i32, %arg1: i32) -> (i32, i32) {
    %c0_i32 = arith.constant 0 : i32
    %c0_i32_0 = arith.constant 0 : i32
    return %arg0, %c0_i32 : i32, i32
  }
  func.func @transform_3(%arg0: i32, %arg1: i32) -> (i32, i32) {
    %c0_i32 = arith.constant 0 : i32
    %c0_i32_0 = arith.constant 0 : i32
    return %arg0, %c0_i32 : i32, i32
  }
}

module attributes {stable_mosaic.version = 11 : i64} {
  func.func @transform_kernel(%arg0: i32, %arg1: memref<16x32xf32, #tpu.memory_space<vmem>>, %arg2: memref<32x64xf32, #tpu.memory_space<vmem>>, %arg3: memref<1x32xf32, #tpu.memory_space<vmem>>, %arg4: memref<2x16x16xbf16, #tpu.memory_space<vmem>>, %arg5: memref<16x32xf32, #tpu.memory_space<vmem>>) attributes {dimension_semantics = [#tpu.dimension_semantics<parallel>], iteration_bounds = array<i64: 2>, scalar_prefetch = 0 : i64, scratch_operands = 0 : i64, tpu.core_type = #tpu.core_type<tc>, window_params = [{transform_indices = @transform_0, window_bounds = array<i64: 16, 32>}, {pipeline_mode = #tpu.pipeline_mode<synchronous>, transform_indices = @transform_1, window_bounds = array<i64: 32, 64>}, {pipeline_mode = #tpu.pipeline_mode<synchronous>, transform_indices = @transform_2, window_bounds = array<i64: 1, 32>}, {transform_indices = @transform_3, window_bounds = array<i64: 2, 16, 16>}, {transform_indices = @transform_4, window_bounds = array<i64: 16, 32>}]} {
    %c0 = arith.constant 0 : index
    %c0_0 = arith.constant 0 : index
    %0 = vector.load %arg1[%c0, %c0_0] : memref<16x32xf32, #tpu.memory_space<vmem>>, vector<16x32xf32>
    %c0_1 = arith.constant 0 : index
    %c0_2 = arith.constant 0 : index
    %1 = vector.load %arg2[%c0_1, %c0_2] : memref<32x64xf32, #tpu.memory_space<vmem>>, vector<32x64xf32>
    %cst = arith.constant dense<0.000000e+00> : vector<16x64xf32>
    %2 = tpu.matmul %0, %1, %cst {dimension_numbers = #tpu.dot_dimension_numbers<[1], [0], [0], [1], [0, 0, 1, 1], [], []>} : vector<16x32xf32>, vector<32x64xf32>, vector<16x64xf32> -> vector<16x64xf32>
    %3 = vector.extract_strided_slice %2 {offsets = [0, 0], sizes = [16, 16], strides = [1, 1]} : vector<16x64xf32> to vector<16x16xf32>
    %4 = arith.truncf %3 : vector<16x16xf32> to vector<16x16xbf16>
    %c0_3 = arith.constant 0 : index
    %c0_4 = arith.constant 0 : index
    %c0_5 = arith.constant 0 : index
    %5 = vector.load %arg4[%c0_3, %c0_4, %c0_5] : memref<2x16x16xbf16, #tpu.memory_space<vmem>>, vector<1x16x16xbf16>
    %6 = vector.shape_cast %5 : vector<1x16x16xbf16> to vector<16x16xbf16>
    %7 = vector.shape_cast %4 : vector<16x16xbf16> to vector<1x16x16xbf16>
    tpu.vector_store %arg4[%c0_3, %c0_4, %c0_5], %7 {strides = array<i32>} : memref<2x16x16xbf16, #tpu.memory_space<vmem>>, vector<1x16x16xbf16>,
    %8 = vector.extract_strided_slice %2 {offsets = [0, 16], sizes = [16, 16], strides = [1, 1]} : vector<16x64xf32> to vector<16x16xf32>
    %9 = arith.truncf %8 : vector<16x16xf32> to vector<16x16xbf16>
    %c1 = arith.constant 1 : index
    %c0_6 = arith.constant 0 : index
    %c0_7 = arith.constant 0 : index
    %10 = vector.load %arg4[%c1, %c0_6, %c0_7] : memref<2x16x16xbf16, #tpu.memory_space<vmem>>, vector<1x16x16xbf16>
    %11 = vector.shape_cast %10 : vector<1x16x16xbf16> to vector<16x16xbf16>
    %12 = vector.shape_cast %9 : vector<16x16xbf16> to vector<1x16x16xbf16>
    tpu.vector_store %arg4[%c1, %c0_6, %c0_7], %12 {strides = array<i32>} : memref<2x16x16xbf16, #tpu.memory_space<vmem>>, vector<1x16x16xbf16>,
    %13 = vector.extract_strided_slice %2 {offsets = [0, 32], sizes = [16, 32], strides = [1, 1]} : vector<16x64xf32> to vector<16x32xf32>
    %c0_8 = arith.constant 0 : index
    %c0_9 = arith.constant 0 : index
    %14 = vector.load %arg3[%c0_8, %c0_9] : memref<1x32xf32, #tpu.memory_space<vmem>>, vector<1x32xf32>
    %15 = vector.broadcast %14 : vector<1x32xf32> to vector<16x32xf32>
    %16 = arith.addf %13, %15 : vector<16x32xf32>
    %c0_10 = arith.constant 0 : index
    %c0_11 = arith.constant 0 : index
    %17 = vector.load %arg5[%c0_10, %c0_11] : memref<16x32xf32, #tpu.memory_space<vmem>>, vector<16x32xf32>
    tpu.vector_store %arg5[%c0_10, %c0_11], %16 {strides = array<i32>} : memref<16x32xf32, #tpu.memory_space<vmem>>, vector<16x32xf32>,
    return
  }
  func.func @transform_0(%arg0: i32) -> (i32, i32) {
    %c0_i32 = arith.constant 0 : i32
    %c0_i32_0 = arith.constant 0 : i32
    return %arg0, %c0_i32 : i32, i32
  }
  func.func @transform_1(%arg0: i32) -> (i32, i32) {
    %c0_i32 = arith.constant 0 : i32
    %c0_i32_0 = arith.constant 0 : i32
    %c0_i32_1 = arith.constant 0 : i32
    return %c0_i32, %c0_i32_0 : i32, i32
  }
  func.func @transform_2(%arg0: i32) -> (i32, i32) {
    %c0_i32 = arith.constant 0 : i32
    %c0_i32_0 = arith.constant 0 : i32
    %c0_i32_1 = arith.constant 0 : i32
    return %c0_i32, %c0_i32_0 : i32, i32
  }
  func.func @transform_3(%arg0: i32) -> (i32, i32, i32) {
    %c0_i32 = arith.constant 0 : i32
    %c0_i32_0 = arith.constant 0 : i32
    %c0_i32_1 = arith.constant 0 : i32
    return %c0_i32, %arg0, %c0_i32_0 : i32, i32, i32
  }
  func.func @transform_4(%arg0: i32) -> (i32, i32) {
    %c0_i32 = arith.constant 0 : i32
    %c0_i32_0 = arith.constant 0 : i32
    return %arg0, %c0_i32 : i32, i32
  }
}

module attributes {stable_mosaic.version = 11 : i64} {
  func.func @signed_agg_kernel(%arg0: i32, %arg1: i32, %arg2: memref<2x16x32xbf16, #tpu.memory_space<vmem>>, %arg3: memref<2x32x16xbf16, #tpu.memory_space<vmem>>, %arg4: memref<16x32xf32, #tpu.memory_space<vmem>>, %arg5: memref<16x32xf32, #tpu.memory_space<vmem>>, %arg6: memref<2x16x16xf32, #tpu.memory_space<vmem>>) attributes {dimension_semantics = [#tpu.dimension_semantics<parallel>, #tpu.dimension_semantics<arbitrary>], iteration_bounds = array<i64: 2, 1>, scalar_prefetch = 0 : i64, scratch_operands = 1 : i64, tpu.core_type = #tpu.core_type<tc>, window_params = [{transform_indices = @transform_0, window_bounds = array<i64: 2, 16, 32>}, {pipeline_mode = #tpu.pipeline_mode<synchronous>, transform_indices = @transform_1, window_bounds = array<i64: 2, 32, 16>}, {transform_indices = @transform_2, window_bounds = array<i64: 16, 32>}, {transform_indices = @transform_3, window_bounds = array<i64: 16, 32>}]} {
    %c0_i32 = arith.constant 0 : i32
    %0 = arith.cmpi eq, %arg1, %c0_i32 : i32
    %1 = arith.extui %0 : i1 to i32
    %c0_i32_0 = arith.constant 0 : i32
    %2 = arith.cmpi ne, %1, %c0_i32_0 : i32
    scf.if %2 {
      %cst_26 = arith.constant 0.000000e+00 : f32
      %28 = vector.broadcast %cst_26 : f32 to vector<2x16x16xf32>
      %c0_27 = arith.constant 0 : index
      %c0_28 = arith.constant 0 : index
      %c0_29 = arith.constant 0 : index
      %29 = vector.load %arg6[%c0_27, %c0_28, %c0_29] : memref<2x16x16xf32, #tpu.memory_space<vmem>>, vector<2x16x16xf32>
      tpu.vector_store %arg6[%c0_27, %c0_28, %c0_29], %28 {strides = array<i32>} : memref<2x16x16xf32, #tpu.memory_space<vmem>>, vector<2x16x16xf32>,
    } else {
    }
    %c0 = arith.constant 0 : index
    %c0_1 = arith.constant 0 : index
    %c0_2 = arith.constant 0 : index
    %3 = vector.load %arg3[%c0, %c0_1, %c0_2] : memref<2x32x16xbf16, #tpu.memory_space<vmem>>, vector<1x32x16xbf16>
    %4 = vector.shape_cast %3 : vector<1x32x16xbf16> to vector<32x16xbf16>
    %c1 = arith.constant 1 : index
    %c0_3 = arith.constant 0 : index
    %c0_4 = arith.constant 0 : index
    %5 = vector.load %arg3[%c1, %c0_3, %c0_4] : memref<2x32x16xbf16, #tpu.memory_space<vmem>>, vector<1x32x16xbf16>
    %6 = vector.shape_cast %5 : vector<1x32x16xbf16> to vector<32x16xbf16>
    %c0_5 = arith.constant 0 : index
    %c0_6 = arith.constant 0 : index
    %c0_7 = arith.constant 0 : index
    %7 = vector.load %arg6[%c0_5, %c0_6, %c0_7] : memref<2x16x16xf32, #tpu.memory_space<vmem>>, vector<1x16x16xf32>
    %8 = vector.shape_cast %7 : vector<1x16x16xf32> to vector<16x16xf32>
    %c0_8 = arith.constant 0 : index
    %c0_9 = arith.constant 0 : index
    %c0_10 = arith.constant 0 : index
    %9 = vector.load %arg2[%c0_8, %c0_9, %c0_10] : memref<2x16x32xbf16, #tpu.memory_space<vmem>>, vector<1x16x32xbf16>
    %10 = vector.shape_cast %9 : vector<1x16x32xbf16> to vector<16x32xbf16>
    %cst = arith.constant dense<0.000000e+00> : vector<16x16xf32>
    %11 = tpu.matmul %10, %4, %cst {dimension_numbers = #tpu.dot_dimension_numbers<[1], [0], [0], [1], [0, 0, 1, 1], [], []>} : vector<16x32xbf16>, vector<32x16xbf16>, vector<16x16xf32> -> vector<16x16xf32>
    %12 = arith.addf %8, %11 : vector<16x16xf32>
    %c0_11 = arith.constant 0 : index
    %c0_12 = arith.constant 0 : index
    %c0_13 = arith.constant 0 : index
    %13 = vector.load %arg6[%c0_11, %c0_12, %c0_13] : memref<2x16x16xf32, #tpu.memory_space<vmem>>, vector<1x16x16xf32>
    %14 = vector.shape_cast %13 : vector<1x16x16xf32> to vector<16x16xf32>
    %15 = vector.shape_cast %12 : vector<16x16xf32> to vector<1x16x16xf32>
    tpu.vector_store %arg6[%c0_11, %c0_12, %c0_13], %15 {strides = array<i32>} : memref<2x16x16xf32, #tpu.memory_space<vmem>>, vector<1x16x16xf32>,
    %c1_14 = arith.constant 1 : index
    %c0_15 = arith.constant 0 : index
    %c0_16 = arith.constant 0 : index
    %16 = vector.load %arg6[%c1_14, %c0_15, %c0_16] : memref<2x16x16xf32, #tpu.memory_space<vmem>>, vector<1x16x16xf32>
    %17 = vector.shape_cast %16 : vector<1x16x16xf32> to vector<16x16xf32>
    %c1_17 = arith.constant 1 : index
    %c0_18 = arith.constant 0 : index
    %c0_19 = arith.constant 0 : index
    %18 = vector.load %arg2[%c1_17, %c0_18, %c0_19] : memref<2x16x32xbf16, #tpu.memory_space<vmem>>, vector<1x16x32xbf16>
    %19 = vector.shape_cast %18 : vector<1x16x32xbf16> to vector<16x32xbf16>
    %cst_20 = arith.constant dense<0.000000e+00> : vector<16x16xf32>
    %20 = tpu.matmul %19, %6, %cst_20 {dimension_numbers = #tpu.dot_dimension_numbers<[1], [0], [0], [1], [0, 0, 1, 1], [], []>} : vector<16x32xbf16>, vector<32x16xbf16>, vector<16x16xf32> -> vector<16x16xf32>
    %21 = arith.addf %17, %20 : vector<16x16xf32>
    %c1_21 = arith.constant 1 : index
    %c0_22 = arith.constant 0 : index
    %c0_23 = arith.constant 0 : index
    %22 = vector.load %arg6[%c1_21, %c0_22, %c0_23] : memref<2x16x16xf32, #tpu.memory_space<vmem>>, vector<1x16x16xf32>
    %23 = vector.shape_cast %22 : vector<1x16x16xf32> to vector<16x16xf32>
    %24 = vector.shape_cast %21 : vector<16x16xf32> to vector<1x16x16xf32>
    tpu.vector_store %arg6[%c1_21, %c0_22, %c0_23], %24 {strides = array<i32>} : memref<2x16x16xf32, #tpu.memory_space<vmem>>, vector<1x16x16xf32>,
    %c0_i32_24 = arith.constant 0 : i32
    %25 = arith.cmpi eq, %arg1, %c0_i32_24 : i32
    %26 = arith.extui %25 : i1 to i32
    %c0_i32_25 = arith.constant 0 : i32
    %27 = arith.cmpi ne, %26, %c0_i32_25 : i32
    scf.if %27 {
      %c0_26 = arith.constant 0 : index
      %c0_27 = arith.constant 0 : index
      %c0_28 = arith.constant 0 : index
      %28 = vector.load %arg6[%c0_26, %c0_27, %c0_28] : memref<2x16x16xf32, #tpu.memory_space<vmem>>, vector<1x16x16xf32>
      %29 = vector.shape_cast %28 : vector<1x16x16xf32> to vector<16x16xf32>
      %c1_29 = arith.constant 1 : index
      %c0_30 = arith.constant 0 : index
      %c0_31 = arith.constant 0 : index
      %30 = vector.load %arg6[%c1_29, %c0_30, %c0_31] : memref<2x16x16xf32, #tpu.memory_space<vmem>>, vector<1x16x16xf32>
      %31 = vector.shape_cast %30 : vector<1x16x16xf32> to vector<16x16xf32>
      %32 = tpu.concatenate %29, %31 in 1 : vector<16x16xf32>, vector<16x16xf32> -> vector<16x32xf32>
      %c0_32 = arith.constant 0 : index
      %c0_33 = arith.constant 0 : index
      %33 = vector.load %arg4[%c0_32, %c0_33] : memref<16x32xf32, #tpu.memory_space<vmem>>, vector<16x32xf32>
      %34 = arith.addf %32, %33 : vector<16x32xf32>
      %c0_34 = arith.constant 0 : index
      %c0_35 = arith.constant 0 : index
      %35 = vector.load %arg5[%c0_34, %c0_35] : memref<16x32xf32, #tpu.memory_space<vmem>>, vector<16x32xf32>
      tpu.vector_store %arg5[%c0_34, %c0_35], %34 {strides = array<i32>} : memref<16x32xf32, #tpu.memory_space<vmem>>, vector<16x32xf32>,
    } else {
    }
    return
  }
  func.func @transform_0(%arg0: i32, %arg1: i32) -> (i32, i32, i32) {
    %c0_i32 = arith.constant 0 : i32
    %c0_i32_0 = arith.constant 0 : i32
    return %c0_i32, %arg0, %arg1 : i32, i32, i32
  }
  func.func @transform_1(%arg0: i32, %arg1: i32) -> (i32, i32, i32) {
    %c0_i32 = arith.constant 0 : i32
    %c0_i32_0 = arith.constant 0 : i32
    %c0_i32_1 = arith.constant 0 : i32
    %c0_i32_2 = arith.constant 0 : i32
    return %c0_i32, %c0_i32_0, %c0_i32_1 : i32, i32, i32
  }
  func.func @transform_2(%arg0: i32, %arg1: i32) -> (i32, i32) {
    %c0_i32 = arith.constant 0 : i32
    %c0_i32_0 = arith.constant 0 : i32
    return %arg0, %c0_i32 : i32, i32
  }
  func.func @transform_3(%arg0: i32, %arg1: i32) -> (i32, i32) {
    %c0_i32 = arith.constant 0 : i32
    %c0_i32_0 = arith.constant 0 : i32
    return %arg0, %c0_i32 : i32, i32
  }
}

module attributes {stable_mosaic.version = 11 : i64} {
  func.func @readout_kernel(%arg0: i32, %arg1: memref<8x512xf32, #tpu.memory_space<vmem>>, %arg2: memref<512x32xf32, #tpu.memory_space<vmem>>, %arg3: memref<1x32xf32, #tpu.memory_space<vmem>>, %arg4: memref<1x32xf32, #tpu.memory_space<vmem>>, %arg5: memref<1x1xf32, #tpu.memory_space<vmem>>, %arg6: memref<8x1xf32, #tpu.memory_space<vmem>>, %arg7: memref<8x32xf32, #tpu.memory_space<vmem>>) attributes {dimension_semantics = [#tpu.dimension_semantics<arbitrary>], iteration_bounds = array<i64: 1>, scalar_prefetch = 0 : i64, scratch_operands = 1 : i64, tpu.core_type = #tpu.core_type<tc>, window_params = [{transform_indices = @transform_0, window_bounds = array<i64: 8, 512>}, {transform_indices = @transform_1, window_bounds = array<i64: 512, 32>}, {pipeline_mode = #tpu.pipeline_mode<synchronous>, transform_indices = @transform_2, window_bounds = array<i64: 1, 32>}, {pipeline_mode = #tpu.pipeline_mode<synchronous>, transform_indices = @transform_3, window_bounds = array<i64: 1, 32>}, {pipeline_mode = #tpu.pipeline_mode<synchronous>, transform_indices = @transform_4, window_bounds = array<i64: 1, 1>}, {pipeline_mode = #tpu.pipeline_mode<synchronous>, transform_indices = @transform_5, window_bounds = array<i64: 8, 1>}]} {
    %c0_i32 = arith.constant 0 : i32
    %0 = arith.cmpi eq, %arg0, %c0_i32 : i32
    %1 = arith.extui %0 : i1 to i32
    %c0_i32_0 = arith.constant 0 : i32
    %2 = arith.cmpi ne, %1, %c0_i32_0 : i32
    scf.if %2 {
      %cst_10 = arith.constant 0.000000e+00 : f32
      %12 = vector.broadcast %cst_10 : f32 to vector<8x32xf32>
      %c0_11 = arith.constant 0 : index
      %c0_12 = arith.constant 0 : index
      %13 = vector.load %arg7[%c0_11, %c0_12] : memref<8x32xf32, #tpu.memory_space<vmem>>, vector<8x32xf32>
      tpu.vector_store %arg7[%c0_11, %c0_12], %12 {strides = array<i32>} : memref<8x32xf32, #tpu.memory_space<vmem>>, vector<8x32xf32>,
    } else {
    }
    %c0 = arith.constant 0 : index
    %c0_1 = arith.constant 0 : index
    %3 = vector.load %arg7[%c0, %c0_1] : memref<8x32xf32, #tpu.memory_space<vmem>>, vector<8x32xf32>
    %c0_2 = arith.constant 0 : index
    %c0_3 = arith.constant 0 : index
    %4 = vector.load %arg1[%c0_2, %c0_3] : memref<8x512xf32, #tpu.memory_space<vmem>>, vector<8x512xf32>
    %c0_4 = arith.constant 0 : index
    %c0_5 = arith.constant 0 : index
    %5 = vector.load %arg2[%c0_4, %c0_5] : memref<512x32xf32, #tpu.memory_space<vmem>>, vector<512x32xf32>
    %cst = arith.constant dense<0.000000e+00> : vector<8x32xf32>
    %6 = tpu.matmul %4, %5, %cst {dimension_numbers = #tpu.dot_dimension_numbers<[1], [0], [0], [1], [0, 0, 1, 1], [], []>} : vector<8x512xf32>, vector<512x32xf32>, vector<8x32xf32> -> vector<8x32xf32>
    %7 = arith.addf %3, %6 : vector<8x32xf32>
    %c0_6 = arith.constant 0 : index
    %c0_7 = arith.constant 0 : index
    %8 = vector.load %arg7[%c0_6, %c0_7] : memref<8x32xf32, #tpu.memory_space<vmem>>, vector<8x32xf32>
    tpu.vector_store %arg7[%c0_6, %c0_7], %7 {strides = array<i32>} : memref<8x32xf32, #tpu.memory_space<vmem>>, vector<8x32xf32>,
    %c0_i32_8 = arith.constant 0 : i32
    %9 = arith.cmpi eq, %arg0, %c0_i32_8 : i32
    %10 = arith.extui %9 : i1 to i32
    %c0_i32_9 = arith.constant 0 : i32
    %11 = arith.cmpi ne, %10, %c0_i32_9 : i32
    scf.if %11 {
      %c0_10 = arith.constant 0 : index
      %c0_11 = arith.constant 0 : index
      %12 = vector.load %arg7[%c0_10, %c0_11] : memref<8x32xf32, #tpu.memory_space<vmem>>, vector<8x32xf32>
      %c0_12 = arith.constant 0 : index
      %c0_13 = arith.constant 0 : index
      %13 = vector.load %arg3[%c0_12, %c0_13] : memref<1x32xf32, #tpu.memory_space<vmem>>, vector<1x32xf32>
      %14 = vector.broadcast %13 : vector<1x32xf32> to vector<8x32xf32>
      %15 = arith.addf %12, %14 : vector<8x32xf32>
      %c0_14 = arith.constant 0 : index
      %c0_15 = arith.constant 0 : index
      %16 = vector.load %arg4[%c0_14, %c0_15] : memref<1x32xf32, #tpu.memory_space<vmem>>, vector<1x32xf32>
      %17 = vector.broadcast %16 : vector<1x32xf32> to vector<8x32xf32>
      %18 = arith.mulf %15, %17 : vector<8x32xf32>
      %cst_16 = arith.constant dense<0.000000e+00> : vector<8xf32>
      %19 = vector.multi_reduction <add>, %18, %cst_16 [1] : vector<8x32xf32> to vector<8xf32>
      %20 = vector.shape_cast %19 : vector<8xf32> to vector<8x1xf32>
      %c0_17 = arith.constant 0 : index
      %c0_18 = arith.constant 0 : index
      %21 = vector.load %arg5[%c0_17, %c0_18] : memref<1x1xf32, #tpu.memory_space<vmem>>, vector<1x1xf32>
      %22 = vector.broadcast %21 : vector<1x1xf32> to vector<8x1xf32>
      %23 = arith.addf %20, %22 : vector<8x1xf32>
      %c0_19 = arith.constant 0 : index
      %c0_20 = arith.constant 0 : index
      %24 = vector.load %arg6[%c0_19, %c0_20] : memref<8x1xf32, #tpu.memory_space<vmem>>, vector<8x1xf32>
      tpu.vector_store %arg6[%c0_19, %c0_20], %23 {strides = array<i32>} : memref<8x1xf32, #tpu.memory_space<vmem>>, vector<8x1xf32>,
    } else {
    }
    return
  }
  func.func @transform_0(%arg0: i32) -> (i32, i32) {
    %c0_i32 = arith.constant 0 : i32
    %c0_i32_0 = arith.constant 0 : i32
    return %c0_i32, %arg0 : i32, i32
  }
  func.func @transform_1(%arg0: i32) -> (i32, i32) {
    %c0_i32 = arith.constant 0 : i32
    %c0_i32_0 = arith.constant 0 : i32
    return %arg0, %c0_i32 : i32, i32
  }
  func.func @transform_2(%arg0: i32) -> (i32, i32) {
    %c0_i32 = arith.constant 0 : i32
    %c0_i32_0 = arith.constant 0 : i32
    %c0_i32_1 = arith.constant 0 : i32
    return %c0_i32, %c0_i32_0 : i32, i32
  }
  func.func @transform_3(%arg0: i32) -> (i32, i32) {
    %c0_i32 = arith.constant 0 : i32
    %c0_i32_0 = arith.constant 0 : i32
    %c0_i32_1 = arith.constant 0 : i32
    return %c0_i32, %c0_i32_0 : i32, i32
  }
  func.func @transform_4(%arg0: i32) -> (i32, i32) {
    %c0_i32 = arith.constant 0 : i32
    %c0_i32_0 = arith.constant 0 : i32
    %c0_i32_1 = arith.constant 0 : i32
    return %c0_i32, %c0_i32_0 : i32, i32
  }
  func.func @transform_5(%arg0: i32) -> (i32, i32) {
    %c0_i32 = arith.constant 0 : i32
    %c0_i32_0 = arith.constant 0 : i32
    %c0_i32_1 = arith.constant 0 : i32
    return %c0_i32, %c0_i32_0 : i32, i32
  }
}

</mosaic_0001>

<llo_original>
// kernel: signed_gcn_forward.5
$region0: #{signed_gcn_forward.5}
  #allocation0 [shape = 'u32[]', space=smem, size = 0x4, offset = 0x4, fixed_abs, tag = 'smem constant byte address 0x4 - core index']
  #allocation1 [shape = 'u32[144,128]{1,0:T(1,128)}', space=vmem, size = 0x12000, scoped, tag = 'internal scratch']
  %s0 = inlined_call_operand.vmem [shape: f32[32,8], index: 0, kind: input, shape index: {}]
  %s1 = inlined_call_operand.vmem [shape: f32[8,64], index: 1, kind: input, shape index: {}]
  %s2 = inlined_call_operand.vmem [shape: f32[1,32], index: 2, kind: input, shape index: {}]
  %s3 = inlined_call_operand.vmem [shape: bf16[2,32,16], index: 3, kind: output, shape index: {0}]
  %s4 = inlined_call_operand.vmem [shape: f32[32,32], index: 4, kind: output, shape index: {1}]
  %5 = xla_tuple %s3, %s4
  %s6 = sld [smem:[#allocation0]]
  $region90: #{signed_gcn_forward.5} parent=0
    _
  %s8 = ssub.s32 1, %s6
  %s9 = scalar_select 0, %s8, %s6
  $region1: #{signed_gcn_forward.5} parent=0
    #allocation2 [shape = 'u8[16384]{0}', space=vmem, size = 0x4000, scoped, tag = 'output window, operand 0']
    loop: start=0, step=1, limit=4
    $region2: #{signed_gcn_forward.5} parent=1 // loop_pre_header
      _
    $region3: #{signed_gcn_forward.5} parent=1 // loop_header
      %s11 = sphi 0, %s15
      %p12 = scmp.ge.s32.totalorder %s11, 4
      %s21 = sphi 0, %s23
      %s24 = sphi 0, %s21
      %s25 = sphi 0, %s24
      %s41 = sphi 0, %s25
      %s45 = sphi 0, %s45
      %s47 = sphi 0, %s45
      %s48 = sphi 0, %s47
      %s62 = sphi 0, %s48
      %s66 = sphi 0, %s66
      %s68 = sphi 0, %s66
      %s69 = sphi 0, %s68
      %s83 = sphi 0, %s69
      %s89 = sphi 0, %s91
      %s92 = sphi 0, %s89
      %s93 = sphi 0, %s92
      %s109 = sphi 0, %s93
      %s115 = sphi 0, %s117
      %s118 = sphi 0, %s115
      %s119 = sphi 0, %s118
      %s135 = sphi 0, %s119
    $region4: #{signed_gcn_forward.5} parent=1 // loop_header_branch
      %14 = sbr.rel (%p12) target = $region8
    $region5: #{signed_gcn_forward.5} parent=1 // loop_body
      %s16 = ssub.s32 %s11, 1
      %s17 = ssub.s32 %s11, 2
      %s18 = sadd.s32 %s11, 1
      %s19 = ssub.s32 %s11, %s18
      %p20 = scmp.eq.s32.totalorder %s19, 0
      %s22 = sadd.s32 %s21, 1
      %s23 = scalar_select %p20, %s21, %s22
      %p26 = pneg %p20
      %p27 = scmp.eq.s32.totalorder %s11, 1
      %p28 = por %p26, %p27
      %p29 = scmp.ne.s32.totalorder %s21, %s24
      %p30 = scmp.eq.s32.totalorder %s11, 0
      %p31 = por %p29, %p30
      %p32 = scmp.ne.s32.totalorder %s21, %s24
      %p33 = scmp.eq.s32.totalorder %s16, 1
      %p34 = por %p32, %p33
      %p35 = scmp.ne.s32.totalorder %s24, %s25
      %p36 = scmp.eq.s32.totalorder %s16, 0
      %p37 = por %p35, %p36
      %p38 = scmp.ne.s32.totalorder %s24, %s25
      %p39 = scmp.eq.s32.totalorder %s17, 1
      %p40 = por %p38, %p39
      %p42 = scmp.ne.s32.totalorder %s25, %s41
      %p43 = scmp.eq.s32.totalorder %s17, 0
      %p44 = por %p42, %p43
      %s46 = sadd.s32 %s45, 1
      %p49 = scmp.eq.s32.totalorder %s11, 1
      %p50 = scmp.ne.s32.totalorder %s45, %s47
      %p51 = scmp.eq.s32.totalorder %s11, 0
      %p52 = por %p50, %p51
      %p53 = scmp.ne.s32.totalorder %s45, %s47
      %p54 = scmp.eq.s32.totalorder %s16, 1
      %p55 = por %p53, %p54
      %p56 = scmp.ne.s32.totalorder %s47, %s48
      %p57 = scmp.eq.s32.totalorder %s16, 0
      %p58 = por %p56, %p57
      %p59 = scmp.ne.s32.totalorder %s47, %s48
      %p60 = scmp.eq.s32.totalorder %s17, 1
      %p61 = por %p59, %p60
      %p63 = scmp.ne.s32.totalorder %s48, %s62
      %p64 = scmp.eq.s32.totalorder %s17, 0
      %p65 = por %p63, %p64
      %s67 = sadd.s32 %s66, 1
      %p70 = scmp.eq.s32.totalorder %s11, 1
      %p71 = scmp.ne.s32.totalorder %s66, %s68
      %p72 = scmp.eq.s32.totalorder %s11, 0
      %p73 = por %p71, %p72
      %p74 = scmp.ne.s32.totalorder %s66, %s68
      %p75 = scmp.eq.s32.totalorder %s16, 1
      %p76 = por %p74, %p75
      %p77 = scmp.ne.s32.totalorder %s68, %s69
      %p78 = scmp.eq.s32.totalorder %s16, 0
      %p79 = por %p77, %p78
      %p80 = scmp.ne.s32.totalorder %s68, %s69
      %p81 = scmp.eq.s32.totalorder %s17, 1
      %p82 = por %p80, %p81
      %p84 = scmp.ne.s32.totalorder %s69, %s83
      %p85 = scmp.eq.s32.totalorder %s17, 0
      %p86 = por %p84, %p85
      %s87 = ssub.s32 %s11, %s18
      %p88 = scmp.eq.s32.totalorder %s87, 0
      %s90 = sadd.s32 %s89, 1
      %s91 = scalar_select %p88, %s89, %s90
      %p94 = pneg %p88
      %p95 = scmp.eq.s32.totalorder %s11, 1
      %p96 = por %p94, %p95
      %p97 = scmp.ne.s32.totalorder %s89, %s92
      %p98 = scmp.eq.s32.totalorder %s11, 0
      %p99 = por %p97, %p98
      %p100 = scmp.ne.s32.totalorder %s89, %s92
      %p101 = scmp.eq.s32.totalorder %s16, 1
      %p102 = por %p100, %p101
      %p103 = scmp.ne.s32.totalorder %s92, %s93
      %p104 = scmp.eq.s32.totalorder %s16, 0
      %p105 = por %p103, %p104
      %p106 = scmp.ne.s32.totalorder %s92, %s93
      %p107 = scmp.eq.s32.totalorder %s17, 1
      %p108 = por %p106, %p107
      %p110 = scmp.ne.s32.totalorder %s93, %s109
      %p111 = scmp.eq.s32.totalorder %s17, 0
      %p112 = por %p110, %p111
      %s113 = ssub.s32 %s11, %s18
      %p114 = scmp.eq.s32.totalorder %s113, 0
      %s116 = sadd.s32 %s115, 1
      %s117 = scalar_select %p114, %s115, %s116
      %p120 = pneg %p114
      %p121 = scmp.eq.s32.totalorder %s11, 1
      %p122 = por %p120, %p121
      %p123 = scmp.ne.s32.totalorder %s115, %s118
      %p124 = scmp.eq.s32.totalorder %s11, 0
      %p125 = por %p123, %p124
      %p126 = scmp.ne.s32.totalorder %s115, %s118
      %p127 = scmp.eq.s32.totalorder %s16, 1
      %p128 = por %p126, %p127
      %p129 = scmp.ne.s32.totalorder %s118, %s119
      %p130 = scmp.eq.s32.totalorder %s16, 0
      %p131 = por %p129, %p130
      %p132 = scmp.ne.s32.totalorder %s118, %s119
      %p133 = scmp.eq.s32.totalorder %s17, 1
      %p134 = por %p132, %p133
      %p136 = scmp.ne.s32.totalorder %s119, %s135
      %p137 = scmp.eq.s32.totalorder %s17, 0
      %p138 = por %p136, %p137
      %p139 = scmp.le.s32.totalorder 1, %s11
      %p140 = scmp.lt.s32.totalorder %s11, 3
      %p141 = pnand %p139, %p140
      %p142 = pneg %p141
      // Predicated region
      $region9: #{signed_gcn_forward.5} parent=5 // pred_check
        _
      $region10: #{signed_gcn_forward.5} parent=5 // pred_check_branch
        %144 = sbr.rel (%p141) target = $region12
      $region11: #{signed_gcn_forward.5} parent=5 // pred_region
        %s145 = ssub.s32 %s11, 1
        // Predicated region
        $region13: #{signed_gcn_forward.5} parent=11 // pred_check
          %p146 = pneg %p58
        $region14: #{signed_gcn_forward.5} parent=11 // pred_check_branch
          %148 = sbr.rel (%p146) target = $region16
        $region15: #{signed_gcn_forward.5} parent=11 // pred_region
          _
        $region16: #{signed_gcn_forward.5} parent=11 // pred_fallthru
          _
        // Predicated region
        $region17: #{signed_gcn_forward.5} parent=11 // pred_check
          %p149 = pneg %p79
        $region18: #{signed_gcn_forward.5} parent=11 // pred_check_branch
          %151 = sbr.rel (%p149) target = $region20
        $region19: #{signed_gcn_forward.5} parent=11 // pred_region
          _
        $region20: #{signed_gcn_forward.5} parent=11 // pred_fallthru
          _
      $region12: #{signed_gcn_forward.5} parent=5 // pred_fallthru
        _
      %p152 = scmp.lt.s32.totalorder %s11, 2
      // Predicated region
      $region21: #{signed_gcn_forward.5} parent=5 // pred_check
        %p153 = pneg %p152
      $region22: #{signed_gcn_forward.5} parent=5 // pred_check_branch
        %155 = sbr.rel (%p153) target = $region24
      $region23: #{signed_gcn_forward.5} parent=5 // pred_region
        // Predicated region
        $region25: #{signed_gcn_forward.5} parent=23 // pred_check
          %p156 = pneg %p31
        $region26: #{signed_gcn_forward.5} parent=23 // pred_check_branch
          %158 = sbr.rel (%p156) target = $region28
        $region27: #{signed_gcn_forward.5} parent=23 // pred_region
          %s159 = smul.u32 2, %s11
          %p160 = scmp.lt.s32.totalorder %s159, 3
          %s161 = scalar_select %p160, %s159, 3
          %s162 = smul.addr %s161, 8
          %s163 = scalar_lea.vmem %s0, %s162
          %s164 = smul.u32 2, %s11
        $region28: #{signed_gcn_forward.5} parent=23 // pred_fallthru
          _
      $region24: #{signed_gcn_forward.5} parent=5 // pred_fallthru
        _
      %p165 = scmp.le.s32.totalorder 1, %s11
      %p166 = scmp.lt.s32.totalorder %s11, 3
      %p167 = pnand %p165, %p166
      %p168 = pneg %p167
      // Predicated region
      $region29: #{signed_gcn_forward.5} parent=5 // pred_check
        _
      $region30: #{signed_gcn_forward.5} parent=5 // pred_check_branch
        %170 = sbr.rel (%p167) target = $region32
      $region31: #{signed_gcn_forward.5} parent=5 // pred_region
        %s171 = ssub.s32 %s11, 1
        %s172 = smul.u32 2, %s16
        %p173 = scmp.lt.s32.totalorder %s172, 3
        %s174 = scalar_select %p173, %s172, 3
        %s175 = smul.addr %s174, 8
        %s176 = scalar_lea.vmem %s0, %s175
        %p177 = pneg %p37
        %p178 = pneg %p34
        %p179 = pneg %p58
        %p180 = pneg %p55
        %p181 = pneg %p79
        %p182 = pneg %p76
        %p183 = pneg %p105
        %p184 = pneg %p102
        %s185 = sand.u32 %s92, 1
        %s186 = sand.u32 %s92, 1
        %s187 = smul.addr %s186, 16
        %s188 = scalar_lea.vmem [#allocation2], %s187
        %p189 = pneg %p131
        %p190 = pneg %p128
        %s191 = smul.u32 2, %s16
        %p192 = scmp.lt.s32.totalorder %s191, 3
        %s193 = scalar_select %p192, %s191, 3
        %s194 = smul.addr %s193, 8
        %s195 = scalar_lea.vmem %s4, %s194
        %s196 = smul.u32 2, %s16
        %p197 = scmp.lt.s32.totalorder %s196, 3
        %s198 = scalar_select %p197, %s196, 3
        %s199 = smul.addr %s198, 8
        %s200 = scalar_lea.vmem %s0, %s199
        %s201 = smul.u32 2, %s16
        %s202 = smul.u32 2, %s16
        %s203 = smul.u32 2, %s16
        %p204 = scmp.lt.s32.totalorder %s203, 3
        %s205 = scalar_select %p204, %s203, 3
        %s206 = smul.addr %s205, 8
        %s207 = scalar_lea.vmem %s4, %s206
        %s208 = smul.u32 2, %s16
        %v209 = vld [vmem:[%s200] sm:$0xff]
        %v210 = vld [vmem:[%s200 + $0x8] sm:$0xff]
        %v211 = vld [vmem:[%s1] sm:$0xff]
        %vm212 = vcmask 64512
        %v214 = vsel %vm212, %v209, 0
        %v217 = vsel %vm212, %v210, 0
        %219 = vmatprep.subr.mxu0 0.0
        %220 = vmatpush1.msra.mxu0 %v211
        %221 = vmatprep.subr.mxu0 0.0
        %222 = vmatpush1.msra.mxu0 0.0
        %223 = vmatprep.subr.mxu0 0.0
        %224 = vmatpush1.msra.mxu0 0.0
        %225 = vmatprep.subr.mxu0 0.0
        %226 = vmatpush1.msra.mxu0 0.0
        %227 = vmatprep.subr.mxu0 0.0
        %228 = vmatpush1.msra.mxu0 0.0
        %229 = vmatprep.subr.mxu0 0.0
        %230 = vmatpush1.msra.mxu0 0.0
        %231 = vmatprep.subr.mxu0 0.0
        %232 = vmatpush1.msra.mxu0 0.0
        %233 = vmatprep.subr.mxu0 0.0
        %234 = vmatpush1.msra.mxu0 0.0
        %235 = vmatprep.subr.mxu0 0.0
        %236 = vmatpush1.msra.mxu0 0.0
        %237 = vmatprep.subr.mxu0 0.0
        %238 = vmatpush1.msra.mxu0 0.0
        %239 = vmatprep.subr.mxu0 0.0
        %240 = vmatpush1.msra.mxu0 0.0
        %241 = vmatprep.subr.mxu0 0.0
        %242 = vmatpush1.msra.mxu0 0.0
        %243 = vmatprep.subr.mxu0 0.0
        %244 = vmatpush1.msra.mxu0 0.0
        %245 = vmatprep.subr.mxu0 0.0
        %246 = vmatpush1.msra.mxu0 0.0
        %247 = vmatprep.subr.mxu0 0.0
        %248 = vmatpush1.msra.mxu0 0.0
        %249 = vmatprep.subr.mxu0 0.0
        %250 = vmatpush1.msra.mxu0 0.0
        %251 = vmatprep.subr.mxu0 0.0
        %252 = vmatpush1.msra.mxu0 0.0
        %253 = vmatprep.subr.mxu0 0.0
        %254 = vmatpush1.msra.mxu0 0.0
        %255 = vmatprep.subr.mxu0 0.0
        %256 = vmatpush1.msra.mxu0 0.0
        %257 = vmatprep.subr.mxu0 0.0
        %258 = vmatpush1.msra.mxu0 0.0
        %259 = vmatprep.subr.mxu0 0.0
        %260 = vmatpush1.msra.mxu0 0.0
        %261 = vmatprep.subr.mxu0 0.0
        %262 = vmatpush1.msra.mxu0 0.0
        %263 = vmatprep.subr.mxu0 0.0
        %264 = vmatpush1.msra.mxu0 0.0
        %265 = vmatprep.subr.mxu0 0.0
        %266 = vmatpush1.msra.mxu0 0.0
        %267 = vmatprep.subr.mxu0 0.0
        %268 = vmatpush1.msra.mxu0 0.0
        %269 = vmatprep.subr.mxu0 0.0
        %270 = vmatpush1.msra.mxu0 0.0
        %271 = vmatprep.subr.mxu0 0.0
        %272 = vmatpush1.msra.mxu0 0.0
        %273 = vmatprep.subr.mxu0 0.0
        %274 = vmatpush1.msra.mxu0 0.0
        %275 = vmatprep.subr.mxu0 0.0
        %276 = vmatpush1.msra.mxu0 0.0
        %277 = vmatprep.subr.mxu0 0.0
        %278 = vmatpush1.msra.mxu0 0.0
        %279 = vmatprep.subr.mxu0 0.0
        %280 = vmatpush1.msra.mxu0 0.0
        %281 = vmatprep.subr.mxu0 0.0
        %282 = vmatpush1.msra.mxu0 0.0
        %283 = vmatprep.mubr.f32.mxu0 0.0
        %284 = vmatmul.mubr.f32.gmra.mrb[0].mxu0 %v214
        %v285 = vpop.f32.mrb[0].mxu0
        %v286 = vadd.f32 0.0, %v285
        %v287 = vpop.f32.mrb[0].mxu0
        %288 = vmatprep.mubr.f32.mxu0 0.0
        %289 = vmatmul.mubr.f32.gmra.mrb[0].mxu0 %v217
        %v290 = vpop.f32.mrb[0].mxu0
        %v291 = vadd.f32 0.0, %v290
        %v292 = vpop.f32.mrb[0].mxu0
        %293 = vdwg.mxu0
        %v294 = vpack.c.bf16 %v291, %v286
        %v296 = vunpack.c.l.b16 %v294
        %v297 = vunpack.c.h.b16 %v294
        %v298 = vpack.c.b16 %v296, %v296
        %v299 = vpack.c.b16 %v297, %v297
        %vm302 = vcmask 125952
        %303 = vst.msk [vmem:[%s188] sm:$0xf] %vm302, %v298
        %304 = vst.msk [vmem:[%s188 + $0x4] sm:$0xf] %vm302, %v299
        %305 = vrot.lane.b32.xlu0 %v298, 112
        %v306 = vpop.permute.xlu0 %305
        %307 = vrot.lane.b32.xlu0 %v299, 112
        %v308 = vpop.permute.xlu0 %307
        %s311 = scalar_lea.vmem %s188, 8 [#allocation2]
        %312 = vst.msk [vmem:[%s311] sm:$0xf] %vm302, %v306
        %313 = vst.msk [vmem:[%s311 + $0x4] sm:$0xf] %vm302, %v308
        %v314 = vld [vmem:[%s2] sm:$0x1]
        %v316 = vlaneseq
        %v317 = vshrl.u32 %v316, 7
        %v318 = vsub.s32 0, %v317
        %v319 = vrot.slane %v314, %v318
        %320 = vrot.lane.b32.xlu0 %v319, 32
        %v321 = vpop.permute.xlu0 %320
        %v323 = vadd.f32 %v286, %v321
        %v324 = vadd.f32 %v291, %v321
        %327 = vrot.lane.b32.xlu0 %v323, 96
        %v328 = vpop.permute.xlu0 %327
        %329 = vrot.lane.b32.xlu0 %v324, 96
        %v330 = vpop.permute.xlu0 %329
        %vm333 = vcmask 261120
        %334 = vst.msk [vmem:[%s207] sm:$0xff] %vm333, %v328
        %335 = vst.msk [vmem:[%s207 + $0x8] sm:$0xff] %vm333, %v330
        %s336 = sand.u32 %s92, 1
        %s337 = sand.u32 %s92, 1
        %s338 = smul.addr %s337, 16
        %s339 = scalar_lea.vmem [#allocation2], %s338
        %s340 = smul.u32 2, %s16
        %p341 = scmp.lt.s32.totalorder %s340, 3
        %s342 = scalar_select %p341, %s340, 3
        %s343 = smul.addr %s342, 8
        %s344 = scalar_lea.vmem %s4, %s343
        // Predicated region
        $region33: #{signed_gcn_forward.5} parent=31 // pred_check
          %p345 = pneg %p102
        $region34: #{signed_gcn_forward.5} parent=31 // pred_check_branch
          %347 = sbr.rel (%p345) target = $region36
        $region35: #{signed_gcn_forward.5} parent=31 // pred_region
          %s348 = smul.u32 2, %s16
          %s349 = smul.addr %s348, 4
          %s350 = scalar_lea.vmem %s3, %s349
          // Predicated region
          $region37: #{signed_gcn_forward.5} parent=35 // pred_check
            _
          $region38: #{signed_gcn_forward.5} parent=35 // pred_check_branch
            %352 = sbr.rel (0) target = $region40
          $region39: #{signed_gcn_forward.5} parent=35 // pred_region
            // Predicated region
            $region41: #{signed_gcn_forward.5} parent=39 // pred_check
              _
            $region42: #{signed_gcn_forward.5} parent=39 // pred_check_branch
              %354 = sbr.rel target = $region44
            $region43: #{signed_gcn_forward.5} parent=39 // pred_region
              // Predicated region
              $region56: #{signed_gcn_forward.5} parent=43 // pred_check
                _
              $region57: #{signed_gcn_forward.5} parent=43 // pred_check_branch
                %375 = sbr.rel (0) target = $region59
              $region58: #{signed_gcn_forward.5} parent=43 // pred_region
                loop: start=0, step=1, limit=1
                $region60: #{signed_gcn_forward.5} parent=58 // loop_pre_header
                  _
                $region61: #{signed_gcn_forward.5} parent=58 // loop_header
                  %s377 = sphi 0, %s381
                  %p378 = scmp.ge.s32.totalorder %s377, 1
                  %s382 = sphi %s339, %s339
                  %s383 = sphi %s350, %s350
                $region62: #{signed_gcn_forward.5} parent=58 // loop_header_branch
                  %380 = sbr.rel (%p378) target = $region66
                $region63: #{signed_gcn_forward.5} parent=58 // loop_body
                  _
                $region64: #{signed_gcn_forward.5} parent=58 // loop_footer
                  %s381 = sadd.s32 1, %s377
                $region65: #{signed_gcn_forward.5} parent=58 // loop_footer_branch
                  %376 = sbr.rel target = $region61
                $region66: #{signed_gcn_forward.5} parent=58 // loop_exit
                  _
                loop: start=0, step=1, limit=1
                $region67: #{signed_gcn_forward.5} parent=58 // loop_pre_header
                  _
                $region68: #{signed_gcn_forward.5} parent=58 // loop_header
                  %s386 = sphi 0, %s390
                  %p387 = scmp.ge.s32.totalorder %s386, 1
                  %s391 = sphi %s339, %s339
                  %s392 = sphi %s350, %s350
                $region69: #{signed_gcn_forward.5} parent=58 // loop_header_branch
                  %389 = sbr.rel (%p387) target = $region73
                $region70: #{signed_gcn_forward.5} parent=58 // loop_body
                  %v393 = vld [vmem:[%s391] sm:$0xf]
                  %394 = vst [vmem:[%s392] sm:$0xf] %v393
                  %v395 = vld [vmem:[%s391 + $0x4] sm:$0xf]
                  %396 = vst [vmem:[%s392 + $0x4] sm:$0xf] %v395
                  %v397 = vld [vmem:[%s391 + $0x8] sm:$0xf]
                  %398 = vst [vmem:[%s392 + $0x10] sm:$0xf] %v397
                  %v399 = vld [vmem:[%s391 + $0xc] sm:$0xf]
                  %400 = vst [vmem:[%s392 + $0x14] sm:$0xf] %v399
                $region71: #{signed_gcn_forward.5} parent=58 // loop_footer
                  %s390 = sadd.s32 1, %s386
                $region72: #{signed_gcn_forward.5} parent=58 // loop_footer_branch
                  %385 = sbr.rel target = $region68
                $region73: #{signed_gcn_forward.5} parent=58 // loop_exit
                  _
              $region59: #{signed_gcn_forward.5} parent=43 // pred_fallthru
                _
            $region44: #{signed_gcn_forward.5} parent=39 // pred_fallthru
              _
            // Predicated region
            $region45: #{signed_gcn_forward.5} parent=39 // pred_check
              _
            $region46: #{signed_gcn_forward.5} parent=39 // pred_check_branch
              %356 = sbr.rel (0) target = $region48
            $region47: #{signed_gcn_forward.5} parent=39 // pred_region
              loop: start=0, step=1, limit=1
              $region49: #{signed_gcn_forward.5} parent=47 // loop_pre_header
                _
              $region50: #{signed_gcn_forward.5} parent=47 // loop_header
                %s359 = sphi 0, %s363
                %p360 = scmp.ge.s32.totalorder %s359, 1
                %s364 = sphi %s339, %s339
                %s365 = sphi %s350, %s350
              $region51: #{signed_gcn_forward.5} parent=47 // loop_header_branch
                %362 = sbr.rel (%p360) target = $region55
              $region52: #{signed_gcn_forward.5} parent=47 // loop_body
                %v366 = vld [vmem:[%s364] sm:$0xf]
                %367 = vst [vmem:[%s365] sm:$0xf] %v366
                %v368 = vld [vmem:[%s364 + $0x4] sm:$0xf]
                %369 = vst [vmem:[%s365 + $0x4] sm:$0xf] %v368
                %v370 = vld [vmem:[%s364 + $0x8] sm:$0xf]
                %371 = vst [vmem:[%s365 + $0x10] sm:$0xf] %v370
                %v372 = vld [vmem:[%s364 + $0xc] sm:$0xf]
                %373 = vst [vmem:[%s365 + $0x14] sm:$0xf] %v372
              $region53: #{signed_gcn_forward.5} parent=47 // loop_footer
                %s363 = sadd.s32 1, %s359
              $region54: #{signed_gcn_forward.5} parent=47 // loop_footer_branch
                %358 = sbr.rel target = $region50
              $region55: #{signed_gcn_forward.5} parent=47 // loop_exit
                _
            $region48: #{signed_gcn_forward.5} parent=39 // pred_fallthru
              _
          $region40: #{signed_gcn_forward.5} parent=35 // pred_fallthru
            _
          %401 = vnop
        $region36: #{signed_gcn_forward.5} parent=31 // pred_fallthru
          _
        // Predicated region
        $region74: #{signed_gcn_forward.5} parent=31 // pred_check
          %p402 = pneg %p128
        $region75: #{signed_gcn_forward.5} parent=31 // pred_check_branch
          %404 = sbr.rel (%p402) target = $region77
        $region76: #{signed_gcn_forward.5} parent=31 // pred_region
          %s405 = smul.u32 2, %s16
        $region77: #{signed_gcn_forward.5} parent=31 // pred_fallthru
          _
      $region32: #{signed_gcn_forward.5} parent=5 // pred_fallthru
        _
      %p406 = scmp.le.s32.totalorder 2, %s11
      // Predicated region
      $region78: #{signed_gcn_forward.5} parent=5 // pred_check
        %p407 = pneg %p406
      $region79: #{signed_gcn_forward.5} parent=5 // pred_check_branch
        %409 = sbr.rel (%p407) target = $region81
      $region80: #{signed_gcn_forward.5} parent=5 // pred_region
        %s410 = ssub.s32 %s11, 2
        // Predicated region
        $region82: #{signed_gcn_forward.5} parent=80 // pred_check
          %p411 = pneg %p108
        $region83: #{signed_gcn_forward.5} parent=80 // pred_check_branch
          %413 = sbr.rel (%p411) target = $region85
        $region84: #{signed_gcn_forward.5} parent=80 // pred_region
          %s414 = sand.u32 %s93, 1
          %s415 = sand.u32 %s93, 1
          %s416 = smul.addr %s415, 16
          %s417 = scalar_lea.vmem [#allocation2], %s416
        $region85: #{signed_gcn_forward.5} parent=80 // pred_fallthru
          _
        // Predicated region
        $region86: #{signed_gcn_forward.5} parent=80 // pred_check
          %p418 = pneg %p134
        $region87: #{signed_gcn_forward.5} parent=80 // pred_check_branch
          %420 = sbr.rel (%p418) target = $region89
        $region88: #{signed_gcn_forward.5} parent=80 // pred_region
          %s421 = smul.u32 2, %s17
          %p422 = scmp.lt.s32.totalorder %s421, 3
          %s423 = scalar_select %p422, %s421, 3
          %s424 = smul.addr %s423, 8
          %s425 = scalar_lea.vmem %s4, %s424
        $region89: #{signed_gcn_forward.5} parent=80 // pred_fallthru
          _
      $region81: #{signed_gcn_forward.5} parent=5 // pred_fallthru
        _
    $region6: #{signed_gcn_forward.5} parent=1 // loop_footer
      %s15 = sadd.s32 1, %s11
    $region7: #{signed_gcn_forward.5} parent=1 // loop_footer_branch
      %10 = sbr.rel target = $region3
    $region8: #{signed_gcn_forward.5} parent=1 // loop_exit
      _

// kernel: signed_gcn_forward.6
$region0: #{signed_gcn_forward.6}
  #allocation0 [shape = 'u32[]', space=smem, size = 0x4, offset = 0x4, fixed_abs, tag = 'smem constant byte address 0x4 - core index']
  #allocation1 [shape = 'u32[144,128]{1,0:T(1,128)}', space=vmem, size = 0x12000, scoped, tag = 'internal scratch']
  #allocation2 [shape = 'f32[2,16,16]{2,1,0:T(8,128)}', space=vmem, size = 0x4000, scoped, tag = 'scratch operand']
  %s0 = inlined_call_operand.vmem [shape: bf16[2,32,32], index: 0, kind: input, shape index: {}]
  %s1 = inlined_call_operand.vmem [shape: bf16[2,32,16], index: 1, kind: input, shape index: {}]
  %s2 = inlined_call_operand.vmem [shape: f32[32,32], index: 2, kind: input, shape index: {}]
  %s3 = inlined_call_operand.vmem [shape: f32[32,32], index: 3, kind: output, shape index: {}]
  %s4 = sld [smem:[#allocation0]]
  $region94: #{signed_gcn_forward.6} parent=0
    _
  %s6 = ssub.s32 1, %s4
  %s7 = scalar_select 0, %s6, %s4
  $region1: #{signed_gcn_forward.6} parent=0
    #allocation3 [shape = 'u8[16384]{0}', space=vmem, size = 0x4000, scoped, tag = 'input window, operand 0']
    loop: start=0, step=1, limit=4
    $region2: #{signed_gcn_forward.6} parent=1 // loop_pre_header
      _
    $region3: #{signed_gcn_forward.6} parent=1 // loop_header
      %s9 = sphi 0, %s13
      %p10 = scmp.ge.s32.totalorder %s9, 4
      %s16 = sphi 0, %s28
      %s17 = sphi 0, %s24
      %s18 = sphi 0, %s16
      %s19 = sphi 0, %s17
      %s20 = sphi 0, %s18
      %s21 = sphi 0, %s19
      %s33 = sphi 0, %s35
      %s36 = sphi 0, %s33
      %s37 = sphi 0, %s36
      %s53 = sphi 0, %s37
      %s57 = sphi 0, %s57
      %s59 = sphi 0, %s57
      %s60 = sphi 0, %s59
      %s74 = sphi 0, %s60
      %s80 = sphi 0, %s82
      %s83 = sphi 0, %s80
      %s84 = sphi 0, %s83
      %s100 = sphi 0, %s84
      %s106 = sphi 0, %s108
      %s109 = sphi 0, %s106
      %s110 = sphi 0, %s109
      %s126 = sphi 0, %s110
    $region4: #{signed_gcn_forward.6} parent=1 // loop_header_branch
      %12 = sbr.rel (%p10) target = $region8
    $region5: #{signed_gcn_forward.6} parent=1 // loop_body
      %s14 = ssub.s32 %s9, 1
      %s15 = ssub.s32 %s9, 2
      %s22 = sadd.s32 1, %s17
      %p23 = scmp.ge.s32.totalorder %s22, 1
      %s24 = scalar_select %p23, 0, %s22
      %s25 = sadd.s32 1, %s16
      %s26 = scalar_select %p23, %s25, %s16
      %p27 = scmp.ge.s32.totalorder %s26, 2
      %s28 = scalar_select %p27, 0, %s26
      %s29 = ssub.s32 %s16, %s28
      %s30 = ssub.s32 %s17, %s24
      %s31 = sor.u32 %s29, %s30
      %p32 = scmp.eq.s32.totalorder %s31, 0
      %s34 = sadd.s32 %s33, 1
      %s35 = scalar_select %p32, %s33, %s34
      %p38 = pneg %p32
      %p39 = scmp.eq.s32.totalorder %s9, 1
      %p40 = por %p38, %p39
      %p41 = scmp.ne.s32.totalorder %s33, %s36
      %p42 = scmp.eq.s32.totalorder %s9, 0
      %p43 = por %p41, %p42
      %p44 = scmp.ne.s32.totalorder %s33, %s36
      %p45 = scmp.eq.s32.totalorder %s14, 1
      %p46 = por %p44, %p45
      %p47 = scmp.ne.s32.totalorder %s36, %s37
      %p48 = scmp.eq.s32.totalorder %s14, 0
      %p49 = por %p47, %p48
      %p50 = scmp.ne.s32.totalorder %s36, %s37
      %p51 = scmp.eq.s32.totalorder %s15, 1
      %p52 = por %p50, %p51
      %p54 = scmp.ne.s32.totalorder %s37, %s53
      %p55 = scmp.eq.s32.totalorder %s15, 0
      %p56 = por %p54, %p55
      %s58 = sadd.s32 %s57, 1
      %p61 = scmp.eq.s32.totalorder %s9, 1
      %p62 = scmp.ne.s32.totalorder %s57, %s59
      %p63 = scmp.eq.s32.totalorder %s9, 0
      %p64 = por %p62, %p63
      %p65 = scmp.ne.s32.totalorder %s57, %s59
      %p66 = scmp.eq.s32.totalorder %s14, 1
      %p67 = por %p65, %p66
      %p68 = scmp.ne.s32.totalorder %s59, %s60
      %p69 = scmp.eq.s32.totalorder %s14, 0
      %p70 = por %p68, %p69
      %p71 = scmp.ne.s32.totalorder %s59, %s60
      %p72 = scmp.eq.s32.totalorder %s15, 1
      %p73 = por %p71, %p72
      %p75 = scmp.ne.s32.totalorder %s60, %s74
      %p76 = scmp.eq.s32.totalorder %s15, 0
      %p77 = por %p75, %p76
      %s78 = ssub.s32 %s16, %s28
      %p79 = scmp.eq.s32.totalorder %s78, 0
      %s81 = sadd.s32 %s80, 1
      %s82 = scalar_select %p79, %s80, %s81
      %p85 = pneg %p79
      %p86 = scmp.eq.s32.totalorder %s9, 1
      %p87 = por %p85, %p86
      %p88 = scmp.ne.s32.totalorder %s80, %s83
      %p89 = scmp.eq.s32.totalorder %s9, 0
      %p90 = por %p88, %p89
      %p91 = scmp.ne.s32.totalorder %s80, %s83
      %p92 = scmp.eq.s32.totalorder %s14, 1
      %p93 = por %p91, %p92
      %p94 = scmp.ne.s32.totalorder %s83, %s84
      %p95 = scmp.eq.s32.totalorder %s14, 0
      %p96 = por %p94, %p95
      %p97 = scmp.ne.s32.totalorder %s83, %s84
      %p98 = scmp.eq.s32.totalorder %s15, 1
      %p99 = por %p97, %p98
      %p101 = scmp.ne.s32.totalorder %s84, %s100
      %p102 = scmp.eq.s32.totalorder %s15, 0
      %p103 = por %p101, %p102
      %s104 = ssub.s32 %s16, %s28
      %p105 = scmp.eq.s32.totalorder %s104, 0
      %s107 = sadd.s32 %s106, 1
      %s108 = scalar_select %p105, %s106, %s107
      %p111 = pneg %p105
      %p112 = scmp.eq.s32.totalorder %s9, 1
      %p113 = por %p111, %p112
      %p114 = scmp.ne.s32.totalorder %s106, %s109
      %p115 = scmp.eq.s32.totalorder %s9, 0
      %p116 = por %p114, %p115
      %p117 = scmp.ne.s32.totalorder %s106, %s109
      %p118 = scmp.eq.s32.totalorder %s14, 1
      %p119 = por %p117, %p118
      %p120 = scmp.ne.s32.totalorder %s109, %s110
      %p121 = scmp.eq.s32.totalorder %s14, 0
      %p122 = por %p120, %p121
      %p123 = scmp.ne.s32.totalorder %s109, %s110
      %p124 = scmp.eq.s32.totalorder %s15, 1
      %p125 = por %p123, %p124
      %p127 = scmp.ne.s32.totalorder %s110, %s126
      %p128 = scmp.eq.s32.totalorder %s15, 0
      %p129 = por %p127, %p128
      %p130 = scmp.le.s32.totalorder 1, %s9
      %p131 = scmp.lt.s32.totalorder %s9, 3
      %p132 = pnand %p130, %p131
      %p133 = pneg %p132
      // Predicated region
      $region9: #{signed_gcn_forward.6} parent=5 // pred_check
        _
      $region10: #{signed_gcn_forward.6} parent=5 // pred_check_branch
        %135 = sbr.rel (%p132) target = $region12
      $region11: #{signed_gcn_forward.6} parent=5 // pred_region
        %s136 = ssub.s32 %s9, 1
        // Predicated region
        $region13: #{signed_gcn_forward.6} parent=11 // pred_check
          %p137 = pneg %p70
        $region14: #{signed_gcn_forward.6} parent=11 // pred_check_branch
          %139 = sbr.rel (%p137) target = $region16
        $region15: #{signed_gcn_forward.6} parent=11 // pred_region
          _
        $region16: #{signed_gcn_forward.6} parent=11 // pred_fallthru
          _
      $region12: #{signed_gcn_forward.6} parent=5 // pred_fallthru
        _
      %p140 = scmp.lt.s32.totalorder %s9, 2
      // Predicated region
      $region17: #{signed_gcn_forward.6} parent=5 // pred_check
        %p141 = pneg %p140
      $region18: #{signed_gcn_forward.6} parent=5 // pred_check_branch
        %143 = sbr.rel (%p141) target = $region20
      $region19: #{signed_gcn_forward.6} parent=5 // pred_region
        // Predicated region
        $region21: #{signed_gcn_forward.6} parent=19 // pred_check
          %p144 = pneg %p43
        $region22: #{signed_gcn_forward.6} parent=19 // pred_check_branch
          %146 = sbr.rel (%p144) target = $region24
        $region23: #{signed_gcn_forward.6} parent=19 // pred_region
          %s147 = sand.u32 %s33, 1
          %s148 = sand.u32 %s33, 1
          %s149 = smul.addr %s148, 16
          %s150 = scalar_lea.vmem [#allocation3], %s149
          %s151 = smul.u32 2, %s16
          %s152 = sadd.s32 %s17, %s151
          %s153 = smul.addr %s152, 4
          %s154 = scalar_lea.vmem %s0, %s153
          // Predicated region
          $region25: #{signed_gcn_forward.6} parent=23 // pred_check
            _
          $region26: #{signed_gcn_forward.6} parent=23 // pred_check_branch
            %156 = sbr.rel (0) target = $region28
          $region27: #{signed_gcn_forward.6} parent=23 // pred_region
            // Predicated region
            $region29: #{signed_gcn_forward.6} parent=27 // pred_check
              _
            $region30: #{signed_gcn_forward.6} parent=27 // pred_check_branch
              %158 = sbr.rel target = $region32
            $region31: #{signed_gcn_forward.6} parent=27 // pred_region
              // Predicated region
              $region44: #{signed_gcn_forward.6} parent=31 // pred_check
                _
              $region45: #{signed_gcn_forward.6} parent=31 // pred_check_branch
                %179 = sbr.rel (0) target = $region47
              $region46: #{signed_gcn_forward.6} parent=31 // pred_region
                loop: start=0, step=1, limit=1
                $region48: #{signed_gcn_forward.6} parent=46 // loop_pre_header
                  _
                $region49: #{signed_gcn_forward.6} parent=46 // loop_header
                  %s181 = sphi 0, %s185
                  %p182 = scmp.ge.s32.totalorder %s181, 1
                  %s186 = sphi %s154, %s154
                  %s187 = sphi %s150, %s150
                $region50: #{signed_gcn_forward.6} parent=46 // loop_header_branch
                  %184 = sbr.rel (%p182) target = $region54
                $region51: #{signed_gcn_forward.6} parent=46 // loop_body
                  _
                $region52: #{signed_gcn_forward.6} parent=46 // loop_footer
                  %s185 = sadd.s32 1, %s181
                $region53: #{signed_gcn_forward.6} parent=46 // loop_footer_branch
                  %180 = sbr.rel target = $region49
                $region54: #{signed_gcn_forward.6} parent=46 // loop_exit
                  _
                loop: start=0, step=1, limit=1
                $region55: #{signed_gcn_forward.6} parent=46 // loop_pre_header
                  _
                $region56: #{signed_gcn_forward.6} parent=46 // loop_header
                  %s190 = sphi 0, %s194
                  %p191 = scmp.ge.s32.totalorder %s190, 1
                  %s195 = sphi %s154, %s154
                  %s196 = sphi %s150, %s150
                $region57: #{signed_gcn_forward.6} parent=46 // loop_header_branch
                  %193 = sbr.rel (%p191) target = $region61
                $region58: #{signed_gcn_forward.6} parent=46 // loop_body
                  %v197 = vld [vmem:[%s195] sm:$0xf]
                  %198 = vst [vmem:[%s196] sm:$0xf] %v197
                  %v199 = vld [vmem:[%s195 + $0x4] sm:$0xf]
                  %200 = vst [vmem:[%s196 + $0x4] sm:$0xf] %v199
                  %v201 = vld [vmem:[%s195 + $0x10] sm:$0xf]
                  %202 = vst [vmem:[%s196 + $0x8] sm:$0xf] %v201
                  %v203 = vld [vmem:[%s195 + $0x14] sm:$0xf]
                  %204 = vst [vmem:[%s196 + $0xc] sm:$0xf] %v203
                $region59: #{signed_gcn_forward.6} parent=46 // loop_footer
                  %s194 = sadd.s32 1, %s190
                $region60: #{signed_gcn_forward.6} parent=46 // loop_footer_branch
                  %189 = sbr.rel target = $region56
                $region61: #{signed_gcn_forward.6} parent=46 // loop_exit
                  _
              $region47: #{signed_gcn_forward.6} parent=31 // pred_fallthru
                _
            $region32: #{signed_gcn_forward.6} parent=27 // pred_fallthru
              _
            // Predicated region
            $region33: #{signed_gcn_forward.6} parent=27 // pred_check
              _
            $region34: #{signed_gcn_forward.6} parent=27 // pred_check_branch
              %160 = sbr.rel (0) target = $region36
            $region35: #{signed_gcn_forward.6} parent=27 // pred_region
              loop: start=0, step=1, limit=1
              $region37: #{signed_gcn_forward.6} parent=35 // loop_pre_header
                _
              $region38: #{signed_gcn_forward.6} parent=35 // loop_header
                %s163 = sphi 0, %s167
                %p164 = scmp.ge.s32.totalorder %s163, 1
                %s168 = sphi %s154, %s154
                %s169 = sphi %s150, %s150
              $region39: #{signed_gcn_forward.6} parent=35 // loop_header_branch
                %166 = sbr.rel (%p164) target = $region43
              $region40: #{signed_gcn_forward.6} parent=35 // loop_body
                %v170 = vld [vmem:[%s168] sm:$0xf]
                %171 = vst [vmem:[%s169] sm:$0xf] %v170
                %v172 = vld [vmem:[%s168 + $0x4] sm:$0xf]
                %173 = vst [vmem:[%s169 + $0x4] sm:$0xf] %v172
                %v174 = vld [vmem:[%s168 + $0x10] sm:$0xf]
                %175 = vst [vmem:[%s169 + $0x8] sm:$0xf] %v174
                %v176 = vld [vmem:[%s168 + $0x14] sm:$0xf]
                %177 = vst [vmem:[%s169 + $0xc] sm:$0xf] %v176
              $region41: #{signed_gcn_forward.6} parent=35 // loop_footer
                %s167 = sadd.s32 1, %s163
              $region42: #{signed_gcn_forward.6} parent=35 // loop_footer_branch
                %162 = sbr.rel target = $region38
              $region43: #{signed_gcn_forward.6} parent=35 // loop_exit
                _
            $region36: #{signed_gcn_forward.6} parent=27 // pred_fallthru
              _
          $region28: #{signed_gcn_forward.6} parent=23 // pred_fallthru
            _
          %205 = vnop
        $region24: #{signed_gcn_forward.6} parent=19 // pred_fallthru
          _
        // Predicated region
        $region62: #{signed_gcn_forward.6} parent=19 // pred_check
          %p206 = pneg %p90
        $region63: #{signed_gcn_forward.6} parent=19 // pred_check_branch
          %208 = sbr.rel (%p206) target = $region65
        $region64: #{signed_gcn_forward.6} parent=19 // pred_region
          %s209 = smul.u32 2, %s16
          %p210 = scmp.lt.s32.totalorder %s209, 3
          %s211 = scalar_select %p210, %s209, 3
          %s212 = smul.addr %s211, 8
          %s213 = scalar_lea.vmem %s2, %s212
          %s214 = smul.u32 2, %s16
        $region65: #{signed_gcn_forward.6} parent=19 // pred_fallthru
          _
      $region20: #{signed_gcn_forward.6} parent=5 // pred_fallthru
        _
      %p215 = scmp.le.s32.totalorder 1, %s9
      %p216 = scmp.lt.s32.totalorder %s9, 3
      %p217 = pnand %p215, %p216
      %p218 = pneg %p217
      // Predicated region
      $region66: #{signed_gcn_forward.6} parent=5 // pred_check
        _
      $region67: #{signed_gcn_forward.6} parent=5 // pred_check_branch
        %220 = sbr.rel (%p217) target = $region69
      $region68: #{signed_gcn_forward.6} parent=5 // pred_region
        %s221 = ssub.s32 %s9, 1
        %s222 = sand.u32 %s36, 1
        %s223 = sand.u32 %s36, 1
        %s224 = smul.addr %s223, 16
        %s225 = scalar_lea.vmem [#allocation3], %s224
        // Predicated region
        $region70: #{signed_gcn_forward.6} parent=68 // pred_check
          %p226 = pneg %p49
        $region71: #{signed_gcn_forward.6} parent=68 // pred_check_branch
          %228 = sbr.rel (%p226) target = $region73
        $region72: #{signed_gcn_forward.6} parent=68 // pred_region
          _
        $region73: #{signed_gcn_forward.6} parent=68 // pred_fallthru
          _
        %s229 = sand.u32 %s36, 1
        %s230 = sand.u32 %s36, 1
        %s231 = smul.addr %s230, 16
        %s232 = scalar_lea.vmem [#allocation3], %s231
        %p233 = pneg %p49
        %p234 = pneg %p46
        %p235 = pneg %p70
        %p236 = pneg %p67
        %s237 = smul.u32 2, %s18
        %p238 = scmp.lt.s32.totalorder %s237, 3
        %s239 = scalar_select %p238, %s237, 3
        %s240 = smul.addr %s239, 8
        %s241 = scalar_lea.vmem %s2, %s240
        %p242 = pneg %p96
        %p243 = pneg %p93
        %p244 = pneg %p122
        %p245 = pneg %p119
        %s246 = smul.u32 2, %s18
        %p247 = scmp.lt.s32.totalorder %s246, 3
        %s248 = scalar_select %p247, %s246, 3
        %s249 = smul.addr %s248, 8
        %s250 = scalar_lea.vmem %s3, %s249
        %s251 = smul.u32 2, %s18
        %s252 = smul.u32 2, %s18
        %p253 = scmp.lt.s32.totalorder %s252, 3
        %s254 = scalar_select %p253, %s252, 3
        %s255 = smul.addr %s254, 8
        %s256 = scalar_lea.vmem %s2, %s255
        %s257 = smul.u32 2, %s18
        %s258 = smul.u32 2, %s18
        %p259 = scmp.lt.s32.totalorder %s258, 3
        %s260 = scalar_select %p259, %s258, 3
        %s261 = smul.addr %s260, 8
        %s262 = scalar_lea.vmem %s3, %s261
        %s263 = smul.u32 2, %s18
        %p265 = scmp.eq.s32.totalorder %s19, 0
        // Predicated region
        $region74: #{signed_gcn_forward.6} parent=68 // pred_check
          %p266 = pneg %p265
        $region75: #{signed_gcn_forward.6} parent=68 // pred_check_branch
          %268 = sbr.rel (%p266) target = $region77
        $region76: #{signed_gcn_forward.6} parent=68 // pred_region
          %vm269 = vcmask 130048
          %270 = vst.msk [vmem:[#allocation2] sm:$0xff] %vm269, 0.0
          %271 = vst.msk [vmem:[#allocation2 + $0x8] sm:$0xff] %vm269, 0.0
          %272 = vst.msk [vmem:[#allocation2 + $0x10] sm:$0xff] %vm269, 0.0
          %273 = vst.msk [vmem:[#allocation2 + $0x18] sm:$0xff] %vm269, 0.0
        $region77: #{signed_gcn_forward.6} parent=68 // pred_fallthru
          _
        %v274 = vld [vmem:[%s1] sm:$0xf]
        %v275 = vld [vmem:[%s1 + $0x4] sm:$0xf]
        %v276 = vld [vmem:[%s1 + $0x8] sm:$0xf]
        %v277 = vld [vmem:[%s1 + $0xc] sm:$0xf]
        %s278 = scalar_lea.vmem %s1, 16
        %v279 = vld [vmem:[%s278] sm:$0xf]
        %v280 = vld [vmem:[%s278 + $0x4] sm:$0xf]
        %v281 = vld [vmem:[%s278 + $0x8] sm:$0xf]
        %v282 = vld [vmem:[%s278 + $0xc] sm:$0xf]
        %v283 = vld [vmem:[#allocation2] sm:$0xff]
        %v284 = vld [vmem:[#allocation2 + $0x8] sm:$0xff]
        %v285 = vld [vmem:[%s225] sm:$0xf]
        %v286 = vld [vmem:[%s225 + $0x4] sm:$0xf]
        %v289 = vunpack.c.l.b16 %v285
        %v290 = vunpack.c.l.b16 %v286
        %v291 = vpack.c.b16 %v290, %v289
        %v296 = vunpack.c.l.b16 %v274
        %v297 = vunpack.c.l.b16 %v275
        %v298 = vunpack.c.l.b16 %v276
        %v299 = vunpack.c.l.b16 %v277
        %v300 = vpack.c.b16 %v297, %v296
        %v301 = vpack.c.b16 %v299, %v298
        %vm304 = vcmask 261120
        %v306 = vsel %vm304, %v291, 0
        %308 = vmatprep.subr.bf16.mxu0 0
        %309 = vmatpush1.bf16.msra.mxu0 %v300
        %310 = vmatprep.subr.bf16.mxu0 0
        %311 = vmatpush1.bf16.msra.mxu0 %v301
        %312 = vmatprep.subr.bf16.mxu0 0
        %313 = vmatpush1.bf16.msra.mxu0 0
        %314 = vmatprep.subr.bf16.mxu0 0
        %315 = vmatpush1.bf16.msra.mxu0 0
        %316 = vmatprep.subr.bf16.mxu0 0
        %317 = vmatpush1.bf16.msra.mxu0 0
        %318 = vmatprep.subr.bf16.mxu0 0
        %319 = vmatpush1.bf16.msra.mxu0 0
        %320 = vmatprep.subr.bf16.mxu0 0
        %321 = vmatpush1.bf16.msra.mxu0 0
        %322 = vmatprep.subr.bf16.mxu0 0
        %323 = vmatpush1.bf16.msra.mxu0 0
        %324 = vmatprep.subr.bf16.mxu0 0
        %325 = vmatpush1.bf16.msra.mxu0 0
        %326 = vmatprep.subr.bf16.mxu0 0
        %327 = vmatpush1.bf16.msra.mxu0 0
        %328 = vmatprep.subr.bf16.mxu0 0
        %329 = vmatpush1.bf16.msra.mxu0 0
        %330 = vmatprep.subr.bf16.mxu0 0
        %331 = vmatpush1.bf16.msra.mxu0 0
        %332 = vmatprep.subr.bf16.mxu0 0
        %333 = vmatpush1.bf16.msra.mxu0 0
        %334 = vmatprep.subr.bf16.mxu0 0
        %335 = vmatpush1.bf16.msra.mxu0 0
        %336 = vmatprep.subr.bf16.mxu0 0
        %337 = vmatpush1.bf16.msra.mxu0 0
        %338 = vmatprep.subr.bf16.mxu0 0
        %339 = vmatpush1.bf16.msra.mxu0 0
        %340 = vmatprep.mubr.bf16.mxu0 0
        %341 = vmatmul.mubr.bf16.gmra.mrb[0].mxu0 %v306
        %v342 = vpop.f32.mrb[0].mxu0
        %v343 = vadd.f32 0.0, %v342
        %v344 = vpop.f32.mrb[0].mxu0
        %v345 = vpop.f32.mrb[0].mxu0
        %v346 = vadd.f32 0.0, %v345
        %v347 = vpop.f32.mrb[0].mxu0
        %348 = vdwg.mxu0
        %v349 = vadd.f32 %v283, %v343
        %v350 = vadd.f32 %v284, %v346
        %vm351 = vcmask 130048
        %352 = vst.msk [vmem:[#allocation2] sm:$0xff] %vm351, %v349
        %353 = vst.msk [vmem:[#allocation2 + $0x8] sm:$0xff] %vm351, %v350
        %s354 = scalar_lea.vmem [#allocation2], 16
        %v355 = vld [vmem:[%s354] sm:$0xff]
        %v356 = vld [vmem:[%s354 + $0x8] sm:$0xff]
        %s357 = scalar_lea.vmem %s225, 8 [#allocation3]
        %v358 = vld [vmem:[%s357] sm:$0xf]
        %v359 = vld [vmem:[%s357 + $0x4] sm:$0xf]
        %v362 = vunpack.c.l.b16 %v358
        %v363 = vunpack.c.l.b16 %v359
        %v364 = vpack.c.b16 %v363, %v362
        %v369 = vunpack.c.l.b16 %v279
        %v370 = vunpack.c.l.b16 %v280
        %v371 = vunpack.c.l.b16 %v281
        %v372 = vunpack.c.l.b16 %v282
        %v373 = vpack.c.b16 %v370, %v369
        %v374 = vpack.c.b16 %v372, %v371
        %v378 = vsel %vm304, %v364, 0
        %380 = vmatprep.subr.bf16.mxu0 0
        %381 = vmatpush1.bf16.msra.mxu0 %v373
        %382 = vmatprep.subr.bf16.mxu0 0
        %383 = vmatpush1.bf16.msra.mxu0 %v374
        %384 = vmatprep.subr.bf16.mxu0 0
        %385 = vmatpush1.bf16.msra.mxu0 0
        %386 = vmatprep.subr.bf16.mxu0 0
        %387 = vmatpush1.bf16.msra.mxu0 0
        %388 = vmatprep.subr.bf16.mxu0 0
        %389 = vmatpush1.bf16.msra.mxu0 0
        %390 = vmatprep.subr.bf16.mxu0 0
        %391 = vmatpush1.bf16.msra.mxu0 0
        %392 = vmatprep.subr.bf16.mxu0 0
        %393 = vmatpush1.bf16.msra.mxu0 0
        %394 = vmatprep.subr.bf16.mxu0 0
        %395 = vmatpush1.bf16.msra.mxu0 0
        %396 = vmatprep.subr.bf16.mxu0 0
        %397 = vmatpush1.bf16.msra.mxu0 0
        %398 = vmatprep.subr.bf16.mxu0 0
        %399 = vmatpush1.bf16.msra.mxu0 0
        %400 = vmatprep.subr.bf16.mxu0 0
        %401 = vmatpush1.bf16.msra.mxu0 0
        %402 = vmatprep.subr.bf16.mxu0 0
        %403 = vmatpush1.bf16.msra.mxu0 0
        %404 = vmatprep.subr.bf16.mxu0 0
        %405 = vmatpush1.bf16.msra.mxu0 0
        %406 = vmatprep.subr.bf16.mxu0 0
        %407 = vmatpush1.bf16.msra.mxu0 0
        %408 = vmatprep.subr.bf16.mxu0 0
        %409 = vmatpush1.bf16.msra.mxu0 0
        %410 = vmatprep.subr.bf16.mxu0 0
        %411 = vmatpush1.bf16.msra.mxu0 0
        %412 = vmatprep.mubr.bf16.mxu0 0
        %413 = vmatmul.mubr.bf16.gmra.mrb[0].mxu0 %v378
        %v414 = vpop.f32.mrb[0].mxu0
        %v415 = vadd.f32 0.0, %v414
        %v416 = vpop.f32.mrb[0].mxu0
        %v417 = vpop.f32.mrb[0].mxu0
        %v418 = vadd.f32 0.0, %v417
        %v419 = vpop.f32.mrb[0].mxu0
        %420 = vdwg.mxu0
        %v421 = vadd.f32 %v355, %v415
        %v422 = vadd.f32 %v356, %v418
        %423 = vst.msk [vmem:[%s354] sm:$0xff] %vm351, %v421
        %424 = vst.msk [vmem:[%s354 + $0x8] sm:$0xff] %vm351, %v422
        // Predicated region
        $region78: #{signed_gcn_forward.6} parent=68 // pred_check
          %p425 = pneg %p265
        $region79: #{signed_gcn_forward.6} parent=68 // pred_check_branch
          %427 = sbr.rel (%p425) target = $region81
        $region80: #{signed_gcn_forward.6} parent=68 // pred_region
          %v428 = vld [vmem:[#allocation2] sm:$0xff]
          %v429 = vld [vmem:[#allocation2 + $0x8] sm:$0xff]
          %v430 = vld [vmem:[%s354] sm:$0xff]
          %v431 = vld [vmem:[%s354 + $0x8] sm:$0xff]
          %434 = vrot.lane.b32.xlu0 %v430, 16
          %v435 = vpop.permute.xlu0 %434
          %436 = vrot.lane.b32.xlu0 %v431, 16
          %v437 = vpop.permute.xlu0 %436
          %v440 = vsel %vm351, %v428, %v435
          %v441 = vsel %vm351, %v429, %v437
          %v442 = vld [vmem:[%s256] sm:$0xff]
          %v443 = vld [vmem:[%s256 + $0x8] sm:$0xff]
          %v444 = vadd.f32 %v440, %v442
          %v445 = vadd.f32 %v441, %v443
          %vm446 = vcmp.gt.f32.partialorder %v444, 0.0
          %vm447 = vcmp.gt.f32.partialorder %v445, 0.0
          %v448 = vmul.f32 %v444, 0.01
          %v449 = vmul.f32 %v445, 0.01
          %v450 = vsel %vm446, %v444, %v448
          %v451 = vsel %vm447, %v445, %v449
          %452 = vst.msk [vmem:[%s262] sm:$0xff] %vm304, %v450
          %453 = vst.msk [vmem:[%s262 + $0x8] sm:$0xff] %vm304, %v451
        $region81: #{signed_gcn_forward.6} parent=68 // pred_fallthru
          _
        %s454 = smul.u32 2, %s18
        %p455 = scmp.lt.s32.totalorder %s454, 3
        %s456 = scalar_select %p455, %s454, 3
        %s457 = smul.addr %s456, 8
        %s458 = scalar_lea.vmem %s3, %s457
        // Predicated region
        $region82: #{signed_gcn_forward.6} parent=68 // pred_check
          %p459 = pneg %p119
        $region83: #{signed_gcn_forward.6} parent=68 // pred_check_branch
          %461 = sbr.rel (%p459) target = $region85
        $region84: #{signed_gcn_forward.6} parent=68 // pred_region
          %s462 = smul.u32 2, %s18
        $region85: #{signed_gcn_forward.6} parent=68 // pred_fallthru
          _
      $region69: #{signed_gcn_forward.6} parent=5 // pred_fallthru
        _
      %p463 = scmp.le.s32.totalorder 2, %s9
      // Predicated region
      $region86: #{signed_gcn_forward.6} parent=5 // pred_check
        %p464 = pneg %p463
      $region87: #{signed_gcn_forward.6} parent=5 // pred_check_branch
        %466 = sbr.rel (%p464) target = $region89
      $region88: #{signed_gcn_forward.6} parent=5 // pred_region
        %s467 = ssub.s32 %s9, 2
        // Predicated region
        $region90: #{signed_gcn_forward.6} parent=88 // pred_check
          %p468 = pneg %p125
        $region91: #{signed_gcn_forward.6} parent=88 // pred_check_branch
          %470 = sbr.rel (%p468) target = $region93
        $region92: #{signed_gcn_forward.6} parent=88 // pred_region
          %s471 = smul.u32 2, %s20
          %p472 = scmp.lt.s32.totalorder %s471, 3
          %s473 = scalar_select %p472, %s471, 3
          %s474 = smul.addr %s473, 8
          %s475 = scalar_lea.vmem %s3, %s474
        $region93: #{signed_gcn_forward.6} parent=88 // pred_fallthru
          _
      $region89: #{signed_gcn_forward.6} parent=5 // pred_fallthru
        _
    $region6: #{signed_gcn_forward.6} parent=1 // loop_footer
      %s13 = sadd.s32 1, %s9
    $region7: #{signed_gcn_forward.6} parent=1 // loop_footer_branch
      %8 = sbr.rel target = $region3
    $region8: #{signed_gcn_forward.6} parent=1 // loop_exit
      _

// kernel: signed_gcn_forward.7
$region0: #{signed_gcn_forward.7}
  #allocation0 [shape = 'u32[]', space=smem, size = 0x4, offset = 0x4, fixed_abs, tag = 'smem constant byte address 0x4 - core index']
  #allocation1 [shape = 'u32[144,128]{1,0:T(1,128)}', space=vmem, size = 0x12000, scoped, tag = 'internal scratch']
  %s0 = inlined_call_operand.vmem [shape: f32[32,32], index: 0, kind: input, shape index: {}]
  %s1 = inlined_call_operand.vmem [shape: f32[32,64], index: 1, kind: input, shape index: {}]
  %s2 = inlined_call_operand.vmem [shape: f32[1,32], index: 2, kind: input, shape index: {}]
  %s3 = inlined_call_operand.vmem [shape: bf16[2,32,16], index: 3, kind: output, shape index: {0}]
  %s4 = inlined_call_operand.vmem [shape: f32[32,32], index: 4, kind: output, shape index: {1}]
  %5 = xla_tuple %s3, %s4
  %s6 = sld [smem:[#allocation0]]
  $region90: #{signed_gcn_forward.7} parent=0
    _
  %s8 = ssub.s32 1, %s6
  %s9 = scalar_select 0, %s8, %s6
  $region1: #{signed_gcn_forward.7} parent=0
    #allocation2 [shape = 'u8[16384]{0}', space=vmem, size = 0x4000, scoped, tag = 'output window, operand 0']
    loop: start=0, step=1, limit=4
    $region2: #{signed_gcn_forward.7} parent=1 // loop_pre_header
      _
    $region3: #{signed_gcn_forward.7} parent=1 // loop_header
      %s11 = sphi 0, %s15
      %p12 = scmp.ge.s32.totalorder %s11, 4
      %s21 = sphi 0, %s23
      %s24 = sphi 0, %s21
      %s25 = sphi 0, %s24
      %s41 = sphi 0, %s25
      %s45 = sphi 0, %s45
      %s47 = sphi 0, %s45
      %s48 = sphi 0, %s47
      %s62 = sphi 0, %s48
      %s66 = sphi 0, %s66
      %s68 = sphi 0, %s66
      %s69 = sphi 0, %s68
      %s83 = sphi 0, %s69
      %s89 = sphi 0, %s91
      %s92 = sphi 0, %s89
      %s93 = sphi 0, %s92
      %s109 = sphi 0, %s93
      %s115 = sphi 0, %s117
      %s118 = sphi 0, %s115
      %s119 = sphi 0, %s118
      %s135 = sphi 0, %s119
    $region4: #{signed_gcn_forward.7} parent=1 // loop_header_branch
      %14 = sbr.rel (%p12) target = $region8
    $region5: #{signed_gcn_forward.7} parent=1 // loop_body
      %s16 = ssub.s32 %s11, 1
      %s17 = ssub.s32 %s11, 2
      %s18 = sadd.s32 %s11, 1
      %s19 = ssub.s32 %s11, %s18
      %p20 = scmp.eq.s32.totalorder %s19, 0
      %s22 = sadd.s32 %s21, 1
      %s23 = scalar_select %p20, %s21, %s22
      %p26 = pneg %p20
      %p27 = scmp.eq.s32.totalorder %s11, 1
      %p28 = por %p26, %p27
      %p29 = scmp.ne.s32.totalorder %s21, %s24
      %p30 = scmp.eq.s32.totalorder %s11, 0
      %p31 = por %p29, %p30
      %p32 = scmp.ne.s32.totalorder %s21, %s24
      %p33 = scmp.eq.s32.totalorder %s16, 1
      %p34 = por %p32, %p33
      %p35 = scmp.ne.s32.totalorder %s24, %s25
      %p36 = scmp.eq.s32.totalorder %s16, 0
      %p37 = por %p35, %p36
      %p38 = scmp.ne.s32.totalorder %s24, %s25
      %p39 = scmp.eq.s32.totalorder %s17, 1
      %p40 = por %p38, %p39
      %p42 = scmp.ne.s32.totalorder %s25, %s41
      %p43 = scmp.eq.s32.totalorder %s17, 0
      %p44 = por %p42, %p43
      %s46 = sadd.s32 %s45, 1
      %p49 = scmp.eq.s32.totalorder %s11, 1
      %p50 = scmp.ne.s32.totalorder %s45, %s47
      %p51 = scmp.eq.s32.totalorder %s11, 0
      %p52 = por %p50, %p51
      %p53 = scmp.ne.s32.totalorder %s45, %s47
      %p54 = scmp.eq.s32.totalorder %s16, 1
      %p55 = por %p53, %p54
      %p56 = scmp.ne.s32.totalorder %s47, %s48
      %p57 = scmp.eq.s32.totalorder %s16, 0
      %p58 = por %p56, %p57
      %p59 = scmp.ne.s32.totalorder %s47, %s48
      %p60 = scmp.eq.s32.totalorder %s17, 1
      %p61 = por %p59, %p60
      %p63 = scmp.ne.s32.totalorder %s48, %s62
      %p64 = scmp.eq.s32.totalorder %s17, 0
      %p65 = por %p63, %p64
      %s67 = sadd.s32 %s66, 1
      %p70 = scmp.eq.s32.totalorder %s11, 1
      %p71 = scmp.ne.s32.totalorder %s66, %s68
      %p72 = scmp.eq.s32.totalorder %s11, 0
      %p73 = por %p71, %p72
      %p74 = scmp.ne.s32.totalorder %s66, %s68
      %p75 = scmp.eq.s32.totalorder %s16, 1
      %p76 = por %p74, %p75
      %p77 = scmp.ne.s32.totalorder %s68, %s69
      %p78 = scmp.eq.s32.totalorder %s16, 0
      %p79 = por %p77, %p78
      %p80 = scmp.ne.s32.totalorder %s68, %s69
      %p81 = scmp.eq.s32.totalorder %s17, 1
      %p82 = por %p80, %p81
      %p84 = scmp.ne.s32.totalorder %s69, %s83
      %p85 = scmp.eq.s32.totalorder %s17, 0
      %p86 = por %p84, %p85
      %s87 = ssub.s32 %s11, %s18
      %p88 = scmp.eq.s32.totalorder %s87, 0
      %s90 = sadd.s32 %s89, 1
      %s91 = scalar_select %p88, %s89, %s90
      %p94 = pneg %p88
      %p95 = scmp.eq.s32.totalorder %s11, 1
      %p96 = por %p94, %p95
      %p97 = scmp.ne.s32.totalorder %s89, %s92
      %p98 = scmp.eq.s32.totalorder %s11, 0
      %p99 = por %p97, %p98
      %p100 = scmp.ne.s32.totalorder %s89, %s92
      %p101 = scmp.eq.s32.totalorder %s16, 1
      %p102 = por %p100, %p101
      %p103 = scmp.ne.s32.totalorder %s92, %s93
      %p104 = scmp.eq.s32.totalorder %s16, 0
      %p105 = por %p103, %p104
      %p106 = scmp.ne.s32.totalorder %s92, %s93
      %p107 = scmp.eq.s32.totalorder %s17, 1
      %p108 = por %p106, %p107
      %p110 = scmp.ne.s32.totalorder %s93, %s109
      %p111 = scmp.eq.s32.totalorder %s17, 0
      %p112 = por %p110, %p111
      %s113 = ssub.s32 %s11, %s18
      %p114 = scmp.eq.s32.totalorder %s113, 0
      %s116 = sadd.s32 %s115, 1
      %s117 = scalar_select %p114, %s115, %s116
      %p120 = pneg %p114
      %p121 = scmp.eq.s32.totalorder %s11, 1
      %p122 = por %p120, %p121
      %p123 = scmp.ne.s32.totalorder %s115, %s118
      %p124 = scmp.eq.s32.totalorder %s11, 0
      %p125 = por %p123, %p124
      %p126 = scmp.ne.s32.totalorder %s115, %s118
      %p127 = scmp.eq.s32.totalorder %s16, 1
      %p128 = por %p126, %p127
      %p129 = scmp.ne.s32.totalorder %s118, %s119
      %p130 = scmp.eq.s32.totalorder %s16, 0
      %p131 = por %p129, %p130
      %p132 = scmp.ne.s32.totalorder %s118, %s119
      %p133 = scmp.eq.s32.totalorder %s17, 1
      %p134 = por %p132, %p133
      %p136 = scmp.ne.s32.totalorder %s119, %s135
      %p137 = scmp.eq.s32.totalorder %s17, 0
      %p138 = por %p136, %p137
      %p139 = scmp.le.s32.totalorder 1, %s11
      %p140 = scmp.lt.s32.totalorder %s11, 3
      %p141 = pnand %p139, %p140
      %p142 = pneg %p141
      // Predicated region
      $region9: #{signed_gcn_forward.7} parent=5 // pred_check
        _
      $region10: #{signed_gcn_forward.7} parent=5 // pred_check_branch
        %144 = sbr.rel (%p141) target = $region12
      $region11: #{signed_gcn_forward.7} parent=5 // pred_region
        %s145 = ssub.s32 %s11, 1
        // Predicated region
        $region13: #{signed_gcn_forward.7} parent=11 // pred_check
          %p146 = pneg %p58
        $region14: #{signed_gcn_forward.7} parent=11 // pred_check_branch
          %148 = sbr.rel (%p146) target = $region16
        $region15: #{signed_gcn_forward.7} parent=11 // pred_region
          _
        $region16: #{signed_gcn_forward.7} parent=11 // pred_fallthru
          _
        // Predicated region
        $region17: #{signed_gcn_forward.7} parent=11 // pred_check
          %p149 = pneg %p79
        $region18: #{signed_gcn_forward.7} parent=11 // pred_check_branch
          %151 = sbr.rel (%p149) target = $region20
        $region19: #{signed_gcn_forward.7} parent=11 // pred_region
          _
        $region20: #{signed_gcn_forward.7} parent=11 // pred_fallthru
          _
      $region12: #{signed_gcn_forward.7} parent=5 // pred_fallthru
        _
      %p152 = scmp.lt.s32.totalorder %s11, 2
      // Predicated region
      $region21: #{signed_gcn_forward.7} parent=5 // pred_check
        %p153 = pneg %p152
      $region22: #{signed_gcn_forward.7} parent=5 // pred_check_branch
        %155 = sbr.rel (%p153) target = $region24
      $region23: #{signed_gcn_forward.7} parent=5 // pred_region
        // Predicated region
        $region25: #{signed_gcn_forward.7} parent=23 // pred_check
          %p156 = pneg %p31
        $region26: #{signed_gcn_forward.7} parent=23 // pred_check_branch
          %158 = sbr.rel (%p156) target = $region28
        $region27: #{signed_gcn_forward.7} parent=23 // pred_region
          %s159 = smul.u32 2, %s11
          %p160 = scmp.lt.s32.totalorder %s159, 3
          %s161 = scalar_select %p160, %s159, 3
          %s162 = smul.addr %s161, 8
          %s163 = scalar_lea.vmem %s0, %s162
          %s164 = smul.u32 2, %s11
        $region28: #{signed_gcn_forward.7} parent=23 // pred_fallthru
          _
      $region24: #{signed_gcn_forward.7} parent=5 // pred_fallthru
        _
      %p165 = scmp.le.s32.totalorder 1, %s11
      %p166 = scmp.lt.s32.totalorder %s11, 3
      %p167 = pnand %p165, %p166
      %p168 = pneg %p167
      // Predicated region
      $region29: #{signed_gcn_forward.7} parent=5 // pred_check
        _
      $region30: #{signed_gcn_forward.7} parent=5 // pred_check_branch
        %170 = sbr.rel (%p167) target = $region32
      $region31: #{signed_gcn_forward.7} parent=5 // pred_region
        %s171 = ssub.s32 %s11, 1
        %s172 = smul.u32 2, %s16
        %p173 = scmp.lt.s32.totalorder %s172, 3
        %s174 = scalar_select %p173, %s172, 3
        %s175 = smul.addr %s174, 8
        %s176 = scalar_lea.vmem %s0, %s175
        %p177 = pneg %p37
        %p178 = pneg %p34
        %p179 = pneg %p58
        %p180 = pneg %p55
        %p181 = pneg %p79
        %p182 = pneg %p76
        %p183 = pneg %p105
        %p184 = pneg %p102
        %s185 = sand.u32 %s92, 1
        %s186 = sand.u32 %s92, 1
        %s187 = smul.addr %s186, 16
        %s188 = scalar_lea.vmem [#allocation2], %s187
        %p189 = pneg %p131
        %p190 = pneg %p128
        %s191 = smul.u32 2, %s16
        %p192 = scmp.lt.s32.totalorder %s191, 3
        %s193 = scalar_select %p192, %s191, 3
        %s194 = smul.addr %s193, 8
        %s195 = scalar_lea.vmem %s4, %s194
        %s196 = smul.u32 2, %s16
        %p197 = scmp.lt.s32.totalorder %s196, 3
        %s198 = scalar_select %p197, %s196, 3
        %s199 = smul.addr %s198, 8
        %s200 = scalar_lea.vmem %s0, %s199
        %s201 = smul.u32 2, %s16
        %s202 = smul.u32 2, %s16
        %s203 = smul.u32 2, %s16
        %p204 = scmp.lt.s32.totalorder %s203, 3
        %s205 = scalar_select %p204, %s203, 3
        %s206 = smul.addr %s205, 8
        %s207 = scalar_lea.vmem %s4, %s206
        %s208 = smul.u32 2, %s16
        %v209 = vld [vmem:[%s200] sm:$0xff]
        %v210 = vld [vmem:[%s200 + $0x8] sm:$0xff]
        %v211 = vld [vmem:[%s1] sm:$0xff]
        %v212 = vld [vmem:[%s1 + $0x8] sm:$0xff]
        %v213 = vld [vmem:[%s1 + $0x10] sm:$0xff]
        %v214 = vld [vmem:[%s1 + $0x18] sm:$0xff]
        %vm215 = vcmask 261120
        %v217 = vsel %vm215, %v209, 0
        %v220 = vsel %vm215, %v210, 0
        %222 = vmatprep.subr.mxu0 0.0
        %223 = vmatpush1.msra.mxu0 %v211
        %224 = vmatprep.subr.mxu0 0.0
        %225 = vmatpush1.msra.mxu0 %v212
        %226 = vmatprep.subr.mxu0 0.0
        %227 = vmatpush1.msra.mxu0 %v213
        %228 = vmatprep.subr.mxu0 0.0
        %229 = vmatpush1.msra.mxu0 %v214
        %230 = vmatprep.subr.mxu0 0.0
        %231 = vmatpush1.msra.mxu0 0.0
        %232 = vmatprep.subr.mxu0 0.0
        %233 = vmatpush1.msra.mxu0 0.0
        %234 = vmatprep.subr.mxu0 0.0
        %235 = vmatpush1.msra.mxu0 0.0
        %236 = vmatprep.subr.mxu0 0.0
        %237 = vmatpush1.msra.mxu0 0.0
        %238 = vmatprep.subr.mxu0 0.0
        %239 = vmatpush1.msra.mxu0 0.0
        %240 = vmatprep.subr.mxu0 0.0
        %241 = vmatpush1.msra.mxu0 0.0
        %242 = vmatprep.subr.mxu0 0.0
        %243 = vmatpush1.msra.mxu0 0.0
        %244 = vmatprep.subr.mxu0 0.0
        %245 = vmatpush1.msra.mxu0 0.0
        %246 = vmatprep.subr.mxu0 0.0
        %247 = vmatpush1.msra.mxu0 0.0
        %248 = vmatprep.subr.mxu0 0.0
        %249 = vmatpush1.msra.mxu0 0.0
        %250 = vmatprep.subr.mxu0 0.0
        %251 = vmatpush1.msra.mxu0 0.0
        %252 = vmatprep.subr.mxu0 0.0
        %253 = vmatpush1.msra.mxu0 0.0
        %254 = vmatprep.subr.mxu0 0.0
        %255 = vmatpush1.msra.mxu0 0.0
        %256 = vmatprep.subr.mxu0 0.0
        %257 = vmatpush1.msra.mxu0 0.0
        %258 = vmatprep.subr.mxu0 0.0
        %259 = vmatpush1.msra.mxu0 0.0
        %260 = vmatprep.subr.mxu0 0.0
        %261 = vmatpush1.msra.mxu0 0.0
        %262 = vmatprep.subr.mxu0 0.0
        %263 = vmatpush1.msra.mxu0 0.0
        %264 = vmatprep.subr.mxu0 0.0
        %265 = vmatpush1.msra.mxu0 0.0
        %266 = vmatprep.subr.mxu0 0.0
        %267 = vmatpush1.msra.mxu0 0.0
        %268 = vmatprep.subr.mxu0 0.0
        %269 = vmatpush1.msra.mxu0 0.0
        %270 = vmatprep.subr.mxu0 0.0
        %271 = vmatpush1.msra.mxu0 0.0
        %272 = vmatprep.subr.mxu0 0.0
        %273 = vmatpush1.msra.mxu0 0.0
        %274 = vmatprep.subr.mxu0 0.0
        %275 = vmatpush1.msra.mxu0 0.0
        %276 = vmatprep.subr.mxu0 0.0
        %277 = vmatpush1.msra.mxu0 0.0
        %278 = vmatprep.subr.mxu0 0.0
        %279 = vmatpush1.msra.mxu0 0.0
        %280 = vmatprep.subr.mxu0 0.0
        %281 = vmatpush1.msra.mxu0 0.0
        %282 = vmatprep.subr.mxu0 0.0
        %283 = vmatpush1.msra.mxu0 0.0
        %284 = vmatprep.subr.mxu0 0.0
        %285 = vmatpush1.msra.mxu0 0.0
        %286 = vmatprep.mubr.f32.mxu0 0.0
        %287 = vmatmul.mubr.f32.gmra.mrb[0].mxu0 %v217
        %v288 = vpop.f32.mrb[0].mxu0
        %v289 = vadd.f32 0.0, %v288
        %v290 = vpop.f32.mrb[0].mxu0
        %291 = vmatprep.mubr.f32.mxu0 0.0
        %292 = vmatmul.mubr.f32.gmra.mrb[0].mxu0 %v220
        %v293 = vpop.f32.mrb[0].mxu0
        %v294 = vadd.f32 0.0, %v293
        %v295 = vpop.f32.mrb[0].mxu0
        %296 = vdwg.mxu0
        %v297 = vpack.c.bf16 %v294, %v289
        %v299 = vunpack.c.l.b16 %v297
        %v300 = vunpack.c.h.b16 %v297
        %v301 = vpack.c.b16 %v299, %v299
        %v302 = vpack.c.b16 %v300, %v300
        %vm305 = vcmask 125952
        %306 = vst.msk [vmem:[%s188] sm:$0xf] %vm305, %v301
        %307 = vst.msk [vmem:[%s188 + $0x4] sm:$0xf] %vm305, %v302
        %308 = vrot.lane.b32.xlu0 %v301, 112
        %v309 = vpop.permute.xlu0 %308
        %310 = vrot.lane.b32.xlu0 %v302, 112
        %v311 = vpop.permute.xlu0 %310
        %s314 = scalar_lea.vmem %s188, 8 [#allocation2]
        %315 = vst.msk [vmem:[%s314] sm:$0xf] %vm305, %v309
        %316 = vst.msk [vmem:[%s314 + $0x4] sm:$0xf] %vm305, %v311
        %v317 = vld [vmem:[%s2] sm:$0x1]
        %v319 = vlaneseq
        %v320 = vshrl.u32 %v319, 7
        %v321 = vsub.s32 0, %v320
        %v322 = vrot.slane %v317, %v321
        %323 = vrot.lane.b32.xlu0 %v322, 32
        %v324 = vpop.permute.xlu0 %323
        %v326 = vadd.f32 %v289, %v324
        %v327 = vadd.f32 %v294, %v324
        %330 = vrot.lane.b32.xlu0 %v326, 96
        %v331 = vpop.permute.xlu0 %330
        %332 = vrot.lane.b32.xlu0 %v327, 96
        %v333 = vpop.permute.xlu0 %332
        %336 = vst.msk [vmem:[%s207] sm:$0xff] %vm215, %v331
        %337 = vst.msk [vmem:[%s207 + $0x8] sm:$0xff] %vm215, %v333
        %s338 = sand.u32 %s92, 1
        %s339 = sand.u32 %s92, 1
        %s340 = smul.addr %s339, 16
        %s341 = scalar_lea.vmem [#allocation2], %s340
        %s342 = smul.u32 2, %s16
        %p343 = scmp.lt.s32.totalorder %s342, 3
        %s344 = scalar_select %p343, %s342, 3
        %s345 = smul.addr %s344, 8
        %s346 = scalar_lea.vmem %s4, %s345
        // Predicated region
        $region33: #{signed_gcn_forward.7} parent=31 // pred_check
          %p347 = pneg %p102
        $region34: #{signed_gcn_forward.7} parent=31 // pred_check_branch
          %349 = sbr.rel (%p347) target = $region36
        $region35: #{signed_gcn_forward.7} parent=31 // pred_region
          %s350 = smul.u32 2, %s16
          %s351 = smul.addr %s350, 4
          %s352 = scalar_lea.vmem %s3, %s351
          // Predicated region
          $region37: #{signed_gcn_forward.7} parent=35 // pred_check
            _
          $region38: #{signed_gcn_forward.7} parent=35 // pred_check_branch
            %354 = sbr.rel (0) target = $region40
          $region39: #{signed_gcn_forward.7} parent=35 // pred_region
            // Predicated region
            $region41: #{signed_gcn_forward.7} parent=39 // pred_check
              _
            $region42: #{signed_gcn_forward.7} parent=39 // pred_check_branch
              %356 = sbr.rel target = $region44
            $region43: #{signed_gcn_forward.7} parent=39 // pred_region
              // Predicated region
              $region56: #{signed_gcn_forward.7} parent=43 // pred_check
                _
              $region57: #{signed_gcn_forward.7} parent=43 // pred_check_branch
                %377 = sbr.rel (0) target = $region59
              $region58: #{signed_gcn_forward.7} parent=43 // pred_region
                loop: start=0, step=1, limit=1
                $region60: #{signed_gcn_forward.7} parent=58 // loop_pre_header
                  _
                $region61: #{signed_gcn_forward.7} parent=58 // loop_header
                  %s379 = sphi 0, %s383
                  %p380 = scmp.ge.s32.totalorder %s379, 1
                  %s384 = sphi %s341, %s341
                  %s385 = sphi %s352, %s352
                $region62: #{signed_gcn_forward.7} parent=58 // loop_header_branch
                  %382 = sbr.rel (%p380) target = $region66
                $region63: #{signed_gcn_forward.7} parent=58 // loop_body
                  _
                $region64: #{signed_gcn_forward.7} parent=58 // loop_footer
                  %s383 = sadd.s32 1, %s379
                $region65: #{signed_gcn_forward.7} parent=58 // loop_footer_branch
                  %378 = sbr.rel target = $region61
                $region66: #{signed_gcn_forward.7} parent=58 // loop_exit
                  _
                loop: start=0, step=1, limit=1
                $region67: #{signed_gcn_forward.7} parent=58 // loop_pre_header
                  _
                $region68: #{signed_gcn_forward.7} parent=58 // loop_header
                  %s388 = sphi 0, %s392
                  %p389 = scmp.ge.s32.totalorder %s388, 1
                  %s393 = sphi %s341, %s341
                  %s394 = sphi %s352, %s352
                $region69: #{signed_gcn_forward.7} parent=58 // loop_header_branch
                  %391 = sbr.rel (%p389) target = $region73
                $region70: #{signed_gcn_forward.7} parent=58 // loop_body
                  %v395 = vld [vmem:[%s393] sm:$0xf]
                  %396 = vst [vmem:[%s394] sm:$0xf] %v395
                  %v397 = vld [vmem:[%s393 + $0x4] sm:$0xf]
                  %398 = vst [vmem:[%s394 + $0x4] sm:$0xf] %v397
                  %v399 = vld [vmem:[%s393 + $0x8] sm:$0xf]
                  %400 = vst [vmem:[%s394 + $0x10] sm:$0xf] %v399
                  %v401 = vld [vmem:[%s393 + $0xc] sm:$0xf]
                  %402 = vst [vmem:[%s394 + $0x14] sm:$0xf] %v401
                $region71: #{signed_gcn_forward.7} parent=58 // loop_footer
                  %s392 = sadd.s32 1, %s388
                $region72: #{signed_gcn_forward.7} parent=58 // loop_footer_branch
                  %387 = sbr.rel target = $region68
                $region73: #{signed_gcn_forward.7} parent=58 // loop_exit
                  _
              $region59: #{signed_gcn_forward.7} parent=43 // pred_fallthru
                _
            $region44: #{signed_gcn_forward.7} parent=39 // pred_fallthru
              _
            // Predicated region
            $region45: #{signed_gcn_forward.7} parent=39 // pred_check
              _
            $region46: #{signed_gcn_forward.7} parent=39 // pred_check_branch
              %358 = sbr.rel (0) target = $region48
            $region47: #{signed_gcn_forward.7} parent=39 // pred_region
              loop: start=0, step=1, limit=1
              $region49: #{signed_gcn_forward.7} parent=47 // loop_pre_header
                _
              $region50: #{signed_gcn_forward.7} parent=47 // loop_header
                %s361 = sphi 0, %s365
                %p362 = scmp.ge.s32.totalorder %s361, 1
                %s366 = sphi %s341, %s341
                %s367 = sphi %s352, %s352
              $region51: #{signed_gcn_forward.7} parent=47 // loop_header_branch
                %364 = sbr.rel (%p362) target = $region55
              $region52: #{signed_gcn_forward.7} parent=47 // loop_body
                %v368 = vld [vmem:[%s366] sm:$0xf]
                %369 = vst [vmem:[%s367] sm:$0xf] %v368
                %v370 = vld [vmem:[%s366 + $0x4] sm:$0xf]
                %371 = vst [vmem:[%s367 + $0x4] sm:$0xf] %v370
                %v372 = vld [vmem:[%s366 + $0x8] sm:$0xf]
                %373 = vst [vmem:[%s367 + $0x10] sm:$0xf] %v372
                %v374 = vld [vmem:[%s366 + $0xc] sm:$0xf]
                %375 = vst [vmem:[%s367 + $0x14] sm:$0xf] %v374
              $region53: #{signed_gcn_forward.7} parent=47 // loop_footer
                %s365 = sadd.s32 1, %s361
              $region54: #{signed_gcn_forward.7} parent=47 // loop_footer_branch
                %360 = sbr.rel target = $region50
              $region55: #{signed_gcn_forward.7} parent=47 // loop_exit
                _
            $region48: #{signed_gcn_forward.7} parent=39 // pred_fallthru
              _
          $region40: #{signed_gcn_forward.7} parent=35 // pred_fallthru
            _
          %403 = vnop
        $region36: #{signed_gcn_forward.7} parent=31 // pred_fallthru
          _
        // Predicated region
        $region74: #{signed_gcn_forward.7} parent=31 // pred_check
          %p404 = pneg %p128
        $region75: #{signed_gcn_forward.7} parent=31 // pred_check_branch
          %406 = sbr.rel (%p404) target = $region77
        $region76: #{signed_gcn_forward.7} parent=31 // pred_region
          %s407 = smul.u32 2, %s16
        $region77: #{signed_gcn_forward.7} parent=31 // pred_fallthru
          _
      $region32: #{signed_gcn_forward.7} parent=5 // pred_fallthru
        _
      %p408 = scmp.le.s32.totalorder 2, %s11
      // Predicated region
      $region78: #{signed_gcn_forward.7} parent=5 // pred_check
        %p409 = pneg %p408
      $region79: #{signed_gcn_forward.7} parent=5 // pred_check_branch
        %411 = sbr.rel (%p409) target = $region81
      $region80: #{signed_gcn_forward.7} parent=5 // pred_region
        %s412 = ssub.s32 %s11, 2
        // Predicated region
        $region82: #{signed_gcn_forward.7} parent=80 // pred_check
          %p413 = pneg %p108
        $region83: #{signed_gcn_forward.7} parent=80 // pred_check_branch
          %415 = sbr.rel (%p413) target = $region85
        $region84: #{signed_gcn_forward.7} parent=80 // pred_region
          %s416 = sand.u32 %s93, 1
          %s417 = sand.u32 %s93, 1
          %s418 = smul.addr %s417, 16
          %s419 = scalar_lea.vmem [#allocation2], %s418
        $region85: #{signed_gcn_forward.7} parent=80 // pred_fallthru
          _
        // Predicated region
        $region86: #{signed_gcn_forward.7} parent=80 // pred_check
          %p420 = pneg %p134
        $region87: #{signed_gcn_forward.7} parent=80 // pred_check_branch
          %422 = sbr.rel (%p420) target = $region89
        $region88: #{signed_gcn_forward.7} parent=80 // pred_region
          %s423 = smul.u32 2, %s17
          %p424 = scmp.lt.s32.totalorder %s423, 3
          %s425 = scalar_select %p424, %s423, 3
          %s426 = smul.addr %s425, 8
          %s427 = scalar_lea.vmem %s4, %s426
        $region89: #{signed_gcn_forward.7} parent=80 // pred_fallthru
          _
      $region81: #{signed_gcn_forward.7} parent=5 // pred_fallthru
        _
    $region6: #{signed_gcn_forward.7} parent=1 // loop_footer
      %s15 = sadd.s32 1, %s11
    $region7: #{signed_gcn_forward.7} parent=1 // loop_footer_branch
      %10 = sbr.rel target = $region3
    $region8: #{signed_gcn_forward.7} parent=1 // loop_exit
      _

// kernel: signed_gcn_forward.8
$region0: #{signed_gcn_forward.8}
  #allocation0 [shape = 'u32[]', space=smem, size = 0x4, offset = 0x4, fixed_abs, tag = 'smem constant byte address 0x4 - core index']
  #allocation1 [shape = 'u32[144,128]{1,0:T(1,128)}', space=vmem, size = 0x12000, scoped, tag = 'internal scratch']
  #allocation2 [shape = 'f32[2,16,16]{2,1,0:T(8,128)}', space=vmem, size = 0x4000, scoped, tag = 'scratch operand']
  %s0 = inlined_call_operand.vmem [shape: bf16[2,32,32], index: 0, kind: input, shape index: {}]
  %s1 = inlined_call_operand.vmem [shape: bf16[2,32,16], index: 1, kind: input, shape index: {}]
  %s2 = inlined_call_operand.vmem [shape: f32[32,32], index: 2, kind: input, shape index: {}]
  %s3 = inlined_call_operand.vmem [shape: f32[32,32], index: 3, kind: output, shape index: {}]
  %s4 = sld [smem:[#allocation0]]
  $region94: #{signed_gcn_forward.8} parent=0
    _
  %s6 = ssub.s32 1, %s4
  %s7 = scalar_select 0, %s6, %s4
  $region1: #{signed_gcn_forward.8} parent=0
    #allocation3 [shape = 'u8[16384]{0}', space=vmem, size = 0x4000, scoped, tag = 'input window, operand 0']
    loop: start=0, step=1, limit=4
    $region2: #{signed_gcn_forward.8} parent=1 // loop_pre_header
      _
    $region3: #{signed_gcn_forward.8} parent=1 // loop_header
      %s9 = sphi 0, %s13
      %p10 = scmp.ge.s32.totalorder %s9, 4
      %s16 = sphi 0, %s28
      %s17 = sphi 0, %s24
      %s18 = sphi 0, %s16
      %s19 = sphi 0, %s17
      %s20 = sphi 0, %s18
      %s21 = sphi 0, %s19
      %s33 = sphi 0, %s35
      %s36 = sphi 0, %s33
      %s37 = sphi 0, %s36
      %s53 = sphi 0, %s37
      %s57 = sphi 0, %s57
      %s59 = sphi 0, %s57
      %s60 = sphi 0, %s59
      %s74 = sphi 0, %s60
      %s80 = sphi 0, %s82
      %s83 = sphi 0, %s80
      %s84 = sphi 0, %s83
      %s100 = sphi 0, %s84
      %s106 = sphi 0, %s108
      %s109 = sphi 0, %s106
      %s110 = sphi 0, %s109
      %s126 = sphi 0, %s110
    $region4: #{signed_gcn_forward.8} parent=1 // loop_header_branch
      %12 = sbr.rel (%p10) target = $region8
    $region5: #{signed_gcn_forward.8} parent=1 // loop_body
      %s14 = ssub.s32 %s9, 1
      %s15 = ssub.s32 %s9, 2
      %s22 = sadd.s32 1, %s17
      %p23 = scmp.ge.s32.totalorder %s22, 1
      %s24 = scalar_select %p23, 0, %s22
      %s25 = sadd.s32 1, %s16
      %s26 = scalar_select %p23, %s25, %s16
      %p27 = scmp.ge.s32.totalorder %s26, 2
      %s28 = scalar_select %p27, 0, %s26
      %s29 = ssub.s32 %s16, %s28
      %s30 = ssub.s32 %s17, %s24
      %s31 = sor.u32 %s29, %s30
      %p32 = scmp.eq.s32.totalorder %s31, 0
      %s34 = sadd.s32 %s33, 1
      %s35 = scalar_select %p32, %s33, %s34
      %p38 = pneg %p32
      %p39 = scmp.eq.s32.totalorder %s9, 1
      %p40 = por %p38, %p39
      %p41 = scmp.ne.s32.totalorder %s33, %s36
      %p42 = scmp.eq.s32.totalorder %s9, 0
      %p43 = por %p41, %p42
      %p44 = scmp.ne.s32.totalorder %s33, %s36
      %p45 = scmp.eq.s32.totalorder %s14, 1
      %p46 = por %p44, %p45
      %p47 = scmp.ne.s32.totalorder %s36, %s37
      %p48 = scmp.eq.s32.totalorder %s14, 0
      %p49 = por %p47, %p48
      %p50 = scmp.ne.s32.totalorder %s36, %s37
      %p51 = scmp.eq.s32.totalorder %s15, 1
      %p52 = por %p50, %p51
      %p54 = scmp.ne.s32.totalorder %s37, %s53
      %p55 = scmp.eq.s32.totalorder %s15, 0
      %p56 = por %p54, %p55
      %s58 = sadd.s32 %s57, 1
      %p61 = scmp.eq.s32.totalorder %s9, 1
      %p62 = scmp.ne.s32.totalorder %s57, %s59
      %p63 = scmp.eq.s32.totalorder %s9, 0
      %p64 = por %p62, %p63
      %p65 = scmp.ne.s32.totalorder %s57, %s59
      %p66 = scmp.eq.s32.totalorder %s14, 1
      %p67 = por %p65, %p66
      %p68 = scmp.ne.s32.totalorder %s59, %s60
      %p69 = scmp.eq.s32.totalorder %s14, 0
      %p70 = por %p68, %p69
      %p71 = scmp.ne.s32.totalorder %s59, %s60
      %p72 = scmp.eq.s32.totalorder %s15, 1
      %p73 = por %p71, %p72
      %p75 = scmp.ne.s32.totalorder %s60, %s74
      %p76 = scmp.eq.s32.totalorder %s15, 0
      %p77 = por %p75, %p76
      %s78 = ssub.s32 %s16, %s28
      %p79 = scmp.eq.s32.totalorder %s78, 0
      %s81 = sadd.s32 %s80, 1
      %s82 = scalar_select %p79, %s80, %s81
      %p85 = pneg %p79
      %p86 = scmp.eq.s32.totalorder %s9, 1
      %p87 = por %p85, %p86
      %p88 = scmp.ne.s32.totalorder %s80, %s83
      %p89 = scmp.eq.s32.totalorder %s9, 0
      %p90 = por %p88, %p89
      %p91 = scmp.ne.s32.totalorder %s80, %s83
      %p92 = scmp.eq.s32.totalorder %s14, 1
      %p93 = por %p91, %p92
      %p94 = scmp.ne.s32.totalorder %s83, %s84
      %p95 = scmp.eq.s32.totalorder %s14, 0
      %p96 = por %p94, %p95
      %p97 = scmp.ne.s32.totalorder %s83, %s84
      %p98 = scmp.eq.s32.totalorder %s15, 1
      %p99 = por %p97, %p98
      %p101 = scmp.ne.s32.totalorder %s84, %s100
      %p102 = scmp.eq.s32.totalorder %s15, 0
      %p103 = por %p101, %p102
      %s104 = ssub.s32 %s16, %s28
      %p105 = scmp.eq.s32.totalorder %s104, 0
      %s107 = sadd.s32 %s106, 1
      %s108 = scalar_select %p105, %s106, %s107
      %p111 = pneg %p105
      %p112 = scmp.eq.s32.totalorder %s9, 1
      %p113 = por %p111, %p112
      %p114 = scmp.ne.s32.totalorder %s106, %s109
      %p115 = scmp.eq.s32.totalorder %s9, 0
      %p116 = por %p114, %p115
      %p117 = scmp.ne.s32.totalorder %s106, %s109
      %p118 = scmp.eq.s32.totalorder %s14, 1
      %p119 = por %p117, %p118
      %p120 = scmp.ne.s32.totalorder %s109, %s110
      %p121 = scmp.eq.s32.totalorder %s14, 0
      %p122 = por %p120, %p121
      %p123 = scmp.ne.s32.totalorder %s109, %s110
      %p124 = scmp.eq.s32.totalorder %s15, 1
      %p125 = por %p123, %p124
      %p127 = scmp.ne.s32.totalorder %s110, %s126
      %p128 = scmp.eq.s32.totalorder %s15, 0
      %p129 = por %p127, %p128
      %p130 = scmp.le.s32.totalorder 1, %s9
      %p131 = scmp.lt.s32.totalorder %s9, 3
      %p132 = pnand %p130, %p131
      %p133 = pneg %p132
      // Predicated region
      $region9: #{signed_gcn_forward.8} parent=5 // pred_check
        _
      $region10: #{signed_gcn_forward.8} parent=5 // pred_check_branch
        %135 = sbr.rel (%p132) target = $region12
      $region11: #{signed_gcn_forward.8} parent=5 // pred_region
        %s136 = ssub.s32 %s9, 1
        // Predicated region
        $region13: #{signed_gcn_forward.8} parent=11 // pred_check
          %p137 = pneg %p70
        $region14: #{signed_gcn_forward.8} parent=11 // pred_check_branch
          %139 = sbr.rel (%p137) target = $region16
        $region15: #{signed_gcn_forward.8} parent=11 // pred_region
          _
        $region16: #{signed_gcn_forward.8} parent=11 // pred_fallthru
          _
      $region12: #{signed_gcn_forward.8} parent=5 // pred_fallthru
        _
      %p140 = scmp.lt.s32.totalorder %s9, 2
      // Predicated region
      $region17: #{signed_gcn_forward.8} parent=5 // pred_check
        %p141 = pneg %p140
      $region18: #{signed_gcn_forward.8} parent=5 // pred_check_branch
        %143 = sbr.rel (%p141) target = $region20
      $region19: #{signed_gcn_forward.8} parent=5 // pred_region
        // Predicated region
        $region21: #{signed_gcn_forward.8} parent=19 // pred_check
          %p144 = pneg %p43
        $region22: #{signed_gcn_forward.8} parent=19 // pred_check_branch
          %146 = sbr.rel (%p144) target = $region24
        $region23: #{signed_gcn_forward.8} parent=19 // pred_region
          %s147 = sand.u32 %s33, 1
          %s148 = sand.u32 %s33, 1
          %s149 = smul.addr %s148, 16
          %s150 = scalar_lea.vmem [#allocation3], %s149
          %s151 = smul.u32 2, %s16
          %s152 = sadd.s32 %s17, %s151
          %s153 = smul.addr %s152, 4
          %s154 = scalar_lea.vmem %s0, %s153
          // Predicated region
          $region25: #{signed_gcn_forward.8} parent=23 // pred_check
            _
          $region26: #{signed_gcn_forward.8} parent=23 // pred_check_branch
            %156 = sbr.rel (0) target = $region28
          $region27: #{signed_gcn_forward.8} parent=23 // pred_region
            // Predicated region
            $region29: #{signed_gcn_forward.8} parent=27 // pred_check
              _
            $region30: #{signed_gcn_forward.8} parent=27 // pred_check_branch
              %158 = sbr.rel target = $region32
            $region31: #{signed_gcn_forward.8} parent=27 // pred_region
              // Predicated region
              $region44: #{signed_gcn_forward.8} parent=31 // pred_check
                _
              $region45: #{signed_gcn_forward.8} parent=31 // pred_check_branch
                %179 = sbr.rel (0) target = $region47
              $region46: #{signed_gcn_forward.8} parent=31 // pred_region
                loop: start=0, step=1, limit=1
                $region48: #{signed_gcn_forward.8} parent=46 // loop_pre_header
                  _
                $region49: #{signed_gcn_forward.8} parent=46 // loop_header
                  %s181 = sphi 0, %s185
                  %p182 = scmp.ge.s32.totalorder %s181, 1
                  %s186 = sphi %s154, %s154
                  %s187 = sphi %s150, %s150
                $region50: #{signed_gcn_forward.8} parent=46 // loop_header_branch
                  %184 = sbr.rel (%p182) target = $region54
                $region51: #{signed_gcn_forward.8} parent=46 // loop_body
                  _
                $region52: #{signed_gcn_forward.8} parent=46 // loop_footer
                  %s185 = sadd.s32 1, %s181
                $region53: #{signed_gcn_forward.8} parent=46 // loop_footer_branch
                  %180 = sbr.rel target = $region49
                $region54: #{signed_gcn_forward.8} parent=46 // loop_exit
                  _
                loop: start=0, step=1, limit=1
                $region55: #{signed_gcn_forward.8} parent=46 // loop_pre_header
                  _
                $region56: #{signed_gcn_forward.8} parent=46 // loop_header
                  %s190 = sphi 0, %s194
                  %p191 = scmp.ge.s32.totalorder %s190, 1
                  %s195 = sphi %s154, %s154
                  %s196 = sphi %s150, %s150
                $region57: #{signed_gcn_forward.8} parent=46 // loop_header_branch
                  %193 = sbr.rel (%p191) target = $region61
                $region58: #{signed_gcn_forward.8} parent=46 // loop_body
                  %v197 = vld [vmem:[%s195] sm:$0xf]
                  %198 = vst [vmem:[%s196] sm:$0xf] %v197
                  %v199 = vld [vmem:[%s195 + $0x4] sm:$0xf]
                  %200 = vst [vmem:[%s196 + $0x4] sm:$0xf] %v199
                  %v201 = vld [vmem:[%s195 + $0x10] sm:$0xf]
                  %202 = vst [vmem:[%s196 + $0x8] sm:$0xf] %v201
                  %v203 = vld [vmem:[%s195 + $0x14] sm:$0xf]
                  %204 = vst [vmem:[%s196 + $0xc] sm:$0xf] %v203
                $region59: #{signed_gcn_forward.8} parent=46 // loop_footer
                  %s194 = sadd.s32 1, %s190
                $region60: #{signed_gcn_forward.8} parent=46 // loop_footer_branch
                  %189 = sbr.rel target = $region56
                $region61: #{signed_gcn_forward.8} parent=46 // loop_exit
                  _
              $region47: #{signed_gcn_forward.8} parent=31 // pred_fallthru
                _
            $region32: #{signed_gcn_forward.8} parent=27 // pred_fallthru
              _
            // Predicated region
            $region33: #{signed_gcn_forward.8} parent=27 // pred_check
              _
            $region34: #{signed_gcn_forward.8} parent=27 // pred_check_branch
              %160 = sbr.rel (0) target = $region36
            $region35: #{signed_gcn_forward.8} parent=27 // pred_region
              loop: start=0, step=1, limit=1
              $region37: #{signed_gcn_forward.8} parent=35 // loop_pre_header
                _
              $region38: #{signed_gcn_forward.8} parent=35 // loop_header
                %s163 = sphi 0, %s167
                %p164 = scmp.ge.s32.totalorder %s163, 1
                %s168 = sphi %s154, %s154
                %s169 = sphi %s150, %s150
              $region39: #{signed_gcn_forward.8} parent=35 // loop_header_branch
                %166 = sbr.rel (%p164) target = $region43
              $region40: #{signed_gcn_forward.8} parent=35 // loop_body
                %v170 = vld [vmem:[%s168] sm:$0xf]
                %171 = vst [vmem:[%s169] sm:$0xf] %v170
                %v172 = vld [vmem:[%s168 + $0x4] sm:$0xf]
                %173 = vst [vmem:[%s169 + $0x4] sm:$0xf] %v172
                %v174 = vld [vmem:[%s168 + $0x10] sm:$0xf]
                %175 = vst [vmem:[%s169 + $0x8] sm:$0xf] %v174
                %v176 = vld [vmem:[%s168 + $0x14] sm:$0xf]
                %177 = vst [vmem:[%s169 + $0xc] sm:$0xf] %v176
              $region41: #{signed_gcn_forward.8} parent=35 // loop_footer
                %s167 = sadd.s32 1, %s163
              $region42: #{signed_gcn_forward.8} parent=35 // loop_footer_branch
                %162 = sbr.rel target = $region38
              $region43: #{signed_gcn_forward.8} parent=35 // loop_exit
                _
            $region36: #{signed_gcn_forward.8} parent=27 // pred_fallthru
              _
          $region28: #{signed_gcn_forward.8} parent=23 // pred_fallthru
            _
          %205 = vnop
        $region24: #{signed_gcn_forward.8} parent=19 // pred_fallthru
          _
        // Predicated region
        $region62: #{signed_gcn_forward.8} parent=19 // pred_check
          %p206 = pneg %p90
        $region63: #{signed_gcn_forward.8} parent=19 // pred_check_branch
          %208 = sbr.rel (%p206) target = $region65
        $region64: #{signed_gcn_forward.8} parent=19 // pred_region
          %s209 = smul.u32 2, %s16
          %p210 = scmp.lt.s32.totalorder %s209, 3
          %s211 = scalar_select %p210, %s209, 3
          %s212 = smul.addr %s211, 8
          %s213 = scalar_lea.vmem %s2, %s212
          %s214 = smul.u32 2, %s16
        $region65: #{signed_gcn_forward.8} parent=19 // pred_fallthru
          _
      $region20: #{signed_gcn_forward.8} parent=5 // pred_fallthru
        _
      %p215 = scmp.le.s32.totalorder 1, %s9
      %p216 = scmp.lt.s32.totalorder %s9, 3
      %p217 = pnand %p215, %p216
      %p218 = pneg %p217
      // Predicated region
      $region66: #{signed_gcn_forward.8} parent=5 // pred_check
        _
      $region67: #{signed_gcn_forward.8} parent=5 // pred_check_branch
        %220 = sbr.rel (%p217) target = $region69
      $region68: #{signed_gcn_forward.8} parent=5 // pred_region
        %s221 = ssub.s32 %s9, 1
        %s222 = sand.u32 %s36, 1
        %s223 = sand.u32 %s36, 1
        %s224 = smul.addr %s223, 16
        %s225 = scalar_lea.vmem [#allocation3], %s224
        // Predicated region
        $region70: #{signed_gcn_forward.8} parent=68 // pred_check
          %p226 = pneg %p49
        $region71: #{signed_gcn_forward.8} parent=68 // pred_check_branch
          %228 = sbr.rel (%p226) target = $region73
        $region72: #{signed_gcn_forward.8} parent=68 // pred_region
          _
        $region73: #{signed_gcn_forward.8} parent=68 // pred_fallthru
          _
        %s229 = sand.u32 %s36, 1
        %s230 = sand.u32 %s36, 1
        %s231 = smul.addr %s230, 16
        %s232 = scalar_lea.vmem [#allocation3], %s231
        %p233 = pneg %p49
        %p234 = pneg %p46
        %p235 = pneg %p70
        %p236 = pneg %p67
        %s237 = smul.u32 2, %s18
        %p238 = scmp.lt.s32.totalorder %s237, 3
        %s239 = scalar_select %p238, %s237, 3
        %s240 = smul.addr %s239, 8
        %s241 = scalar_lea.vmem %s2, %s240
        %p242 = pneg %p96
        %p243 = pneg %p93
        %p244 = pneg %p122
        %p245 = pneg %p119
        %s246 = smul.u32 2, %s18
        %p247 = scmp.lt.s32.totalorder %s246, 3
        %s248 = scalar_select %p247, %s246, 3
        %s249 = smul.addr %s248, 8
        %s250 = scalar_lea.vmem %s3, %s249
        %s251 = smul.u32 2, %s18
        %s252 = smul.u32 2, %s18
        %p253 = scmp.lt.s32.totalorder %s252, 3
        %s254 = scalar_select %p253, %s252, 3
        %s255 = smul.addr %s254, 8
        %s256 = scalar_lea.vmem %s2, %s255
        %s257 = smul.u32 2, %s18
        %s258 = smul.u32 2, %s18
        %p259 = scmp.lt.s32.totalorder %s258, 3
        %s260 = scalar_select %p259, %s258, 3
        %s261 = smul.addr %s260, 8
        %s262 = scalar_lea.vmem %s3, %s261
        %s263 = smul.u32 2, %s18
        %p265 = scmp.eq.s32.totalorder %s19, 0
        // Predicated region
        $region74: #{signed_gcn_forward.8} parent=68 // pred_check
          %p266 = pneg %p265
        $region75: #{signed_gcn_forward.8} parent=68 // pred_check_branch
          %268 = sbr.rel (%p266) target = $region77
        $region76: #{signed_gcn_forward.8} parent=68 // pred_region
          %vm269 = vcmask 130048
          %270 = vst.msk [vmem:[#allocation2] sm:$0xff] %vm269, 0.0
          %271 = vst.msk [vmem:[#allocation2 + $0x8] sm:$0xff] %vm269, 0.0
          %272 = vst.msk [vmem:[#allocation2 + $0x10] sm:$0xff] %vm269, 0.0
          %273 = vst.msk [vmem:[#allocation2 + $0x18] sm:$0xff] %vm269, 0.0
        $region77: #{signed_gcn_forward.8} parent=68 // pred_fallthru
          _
        %v274 = vld [vmem:[%s1] sm:$0xf]
        %v275 = vld [vmem:[%s1 + $0x4] sm:$0xf]
        %v276 = vld [vmem:[%s1 + $0x8] sm:$0xf]
        %v277 = vld [vmem:[%s1 + $0xc] sm:$0xf]
        %s278 = scalar_lea.vmem %s1, 16
        %v279 = vld [vmem:[%s278] sm:$0xf]
        %v280 = vld [vmem:[%s278 + $0x4] sm:$0xf]
        %v281 = vld [vmem:[%s278 + $0x8] sm:$0xf]
        %v282 = vld [vmem:[%s278 + $0xc] sm:$0xf]
        %v283 = vld [vmem:[#allocation2] sm:$0xff]
        %v284 = vld [vmem:[#allocation2 + $0x8] sm:$0xff]
        %v285 = vld [vmem:[%s225] sm:$0xf]
        %v286 = vld [vmem:[%s225 + $0x4] sm:$0xf]
        %v289 = vunpack.c.l.b16 %v285
        %v290 = vunpack.c.l.b16 %v286
        %v291 = vpack.c.b16 %v290, %v289
        %v296 = vunpack.c.l.b16 %v274
        %v297 = vunpack.c.l.b16 %v275
        %v298 = vunpack.c.l.b16 %v276
        %v299 = vunpack.c.l.b16 %v277
        %v300 = vpack.c.b16 %v297, %v296
        %v301 = vpack.c.b16 %v299, %v298
        %vm304 = vcmask 261120
        %v306 = vsel %vm304, %v291, 0
        %308 = vmatprep.subr.bf16.mxu0 0
        %309 = vmatpush1.bf16.msra.mxu0 %v300
        %310 = vmatprep.subr.bf16.mxu0 0
        %311 = vmatpush1.bf16.msra.mxu0 %v301
        %312 = vmatprep.subr.bf16.mxu0 0
        %313 = vmatpush1.bf16.msra.mxu0 0
        %314 = vmatprep.subr.bf16.mxu0 0
        %315 = vmatpush1.bf16.msra.mxu0 0
        %316 = vmatprep.subr.bf16.mxu0 0
        %317 = vmatpush1.bf16.msra.mxu0 0
        %318 = vmatprep.subr.bf16.mxu0 0
        %319 = vmatpush1.bf16.msra.mxu0 0
        %320 = vmatprep.subr.bf16.mxu0 0
        %321 = vmatpush1.bf16.msra.mxu0 0
        %322 = vmatprep.subr.bf16.mxu0 0
        %323 = vmatpush1.bf16.msra.mxu0 0
        %324 = vmatprep.subr.bf16.mxu0 0
        %325 = vmatpush1.bf16.msra.mxu0 0
        %326 = vmatprep.subr.bf16.mxu0 0
        %327 = vmatpush1.bf16.msra.mxu0 0
        %328 = vmatprep.subr.bf16.mxu0 0
        %329 = vmatpush1.bf16.msra.mxu0 0
        %330 = vmatprep.subr.bf16.mxu0 0
        %331 = vmatpush1.bf16.msra.mxu0 0
        %332 = vmatprep.subr.bf16.mxu0 0
        %333 = vmatpush1.bf16.msra.mxu0 0
        %334 = vmatprep.subr.bf16.mxu0 0
        %335 = vmatpush1.bf16.msra.mxu0 0
        %336 = vmatprep.subr.bf16.mxu0 0
        %337 = vmatpush1.bf16.msra.mxu0 0
        %338 = vmatprep.subr.bf16.mxu0 0
        %339 = vmatpush1.bf16.msra.mxu0 0
        %340 = vmatprep.mubr.bf16.mxu0 0
        %341 = vmatmul.mubr.bf16.gmra.mrb[0].mxu0 %v306
        %v342 = vpop.f32.mrb[0].mxu0
        %v343 = vadd.f32 0.0, %v342
        %v344 = vpop.f32.mrb[0].mxu0
        %v345 = vpop.f32.mrb[0].mxu0
        %v346 = vadd.f32 0.0, %v345
        %v347 = vpop.f32.mrb[0].mxu0
        %348 = vdwg.mxu0
        %v349 = vadd.f32 %v283, %v343
        %v350 = vadd.f32 %v284, %v346
        %vm351 = vcmask 130048
        %352 = vst.msk [vmem:[#allocation2] sm:$0xff] %vm351, %v349
        %353 = vst.msk [vmem:[#allocation2 + $0x8] sm:$0xff] %vm351, %v350
        %s354 = scalar_lea.vmem [#allocation2], 16
        %v355 = vld [vmem:[%s354] sm:$0xff]
        %v356 = vld [vmem:[%s354 + $0x8] sm:$0xff]
        %s357 = scalar_lea.vmem %s225, 8 [#allocation3]
        %v358 = vld [vmem:[%s357] sm:$0xf]
        %v359 = vld [vmem:[%s357 + $0x4] sm:$0xf]
        %v362 = vunpack.c.l.b16 %v358
        %v363 = vunpack.c.l.b16 %v359
        %v364 = vpack.c.b16 %v363, %v362
        %v369 = vunpack.c.l.b16 %v279
        %v370 = vunpack.c.l.b16 %v280
        %v371 = vunpack.c.l.b16 %v281
        %v372 = vunpack.c.l.b16 %v282
        %v373 = vpack.c.b16 %v370, %v369
        %v374 = vpack.c.b16 %v372, %v371
        %v378 = vsel %vm304, %v364, 0
        %380 = vmatprep.subr.bf16.mxu0 0
        %381 = vmatpush1.bf16.msra.mxu0 %v373
        %382 = vmatprep.subr.bf16.mxu0 0
        %383 = vmatpush1.bf16.msra.mxu0 %v374
        %384 = vmatprep.subr.bf16.mxu0 0
        %385 = vmatpush1.bf16.msra.mxu0 0
        %386 = vmatprep.subr.bf16.mxu0 0
        %387 = vmatpush1.bf16.msra.mxu0 0
        %388 = vmatprep.subr.bf16.mxu0 0
        %389 = vmatpush1.bf16.msra.mxu0 0
        %390 = vmatprep.subr.bf16.mxu0 0
        %391 = vmatpush1.bf16.msra.mxu0 0
        %392 = vmatprep.subr.bf16.mxu0 0
        %393 = vmatpush1.bf16.msra.mxu0 0
        %394 = vmatprep.subr.bf16.mxu0 0
        %395 = vmatpush1.bf16.msra.mxu0 0
        %396 = vmatprep.subr.bf16.mxu0 0
        %397 = vmatpush1.bf16.msra.mxu0 0
        %398 = vmatprep.subr.bf16.mxu0 0
        %399 = vmatpush1.bf16.msra.mxu0 0
        %400 = vmatprep.subr.bf16.mxu0 0
        %401 = vmatpush1.bf16.msra.mxu0 0
        %402 = vmatprep.subr.bf16.mxu0 0
        %403 = vmatpush1.bf16.msra.mxu0 0
        %404 = vmatprep.subr.bf16.mxu0 0
        %405 = vmatpush1.bf16.msra.mxu0 0
        %406 = vmatprep.subr.bf16.mxu0 0
        %407 = vmatpush1.bf16.msra.mxu0 0
        %408 = vmatprep.subr.bf16.mxu0 0
        %409 = vmatpush1.bf16.msra.mxu0 0
        %410 = vmatprep.subr.bf16.mxu0 0
        %411 = vmatpush1.bf16.msra.mxu0 0
        %412 = vmatprep.mubr.bf16.mxu0 0
        %413 = vmatmul.mubr.bf16.gmra.mrb[0].mxu0 %v378
        %v414 = vpop.f32.mrb[0].mxu0
        %v415 = vadd.f32 0.0, %v414
        %v416 = vpop.f32.mrb[0].mxu0
        %v417 = vpop.f32.mrb[0].mxu0
        %v418 = vadd.f32 0.0, %v417
        %v419 = vpop.f32.mrb[0].mxu0
        %420 = vdwg.mxu0
        %v421 = vadd.f32 %v355, %v415
        %v422 = vadd.f32 %v356, %v418
        %423 = vst.msk [vmem:[%s354] sm:$0xff] %vm351, %v421
        %424 = vst.msk [vmem:[%s354 + $0x8] sm:$0xff] %vm351, %v422
        // Predicated region
        $region78: #{signed_gcn_forward.8} parent=68 // pred_check
          %p425 = pneg %p265
        $region79: #{signed_gcn_forward.8} parent=68 // pred_check_branch
          %427 = sbr.rel (%p425) target = $region81
        $region80: #{signed_gcn_forward.8} parent=68 // pred_region
          %v428 = vld [vmem:[#allocation2] sm:$0xff]
          %v429 = vld [vmem:[#allocation2 + $0x8] sm:$0xff]
          %v430 = vld [vmem:[%s354] sm:$0xff]
          %v431 = vld [vmem:[%s354 + $0x8] sm:$0xff]
          %434 = vrot.lane.b32.xlu0 %v430, 16
          %v435 = vpop.permute.xlu0 %434
          %436 = vrot.lane.b32.xlu0 %v431, 16
          %v437 = vpop.permute.xlu0 %436
          %v440 = vsel %vm351, %v428, %v435
          %v441 = vsel %vm351, %v429, %v437
          %v442 = vld [vmem:[%s256] sm:$0xff]
          %v443 = vld [vmem:[%s256 + $0x8] sm:$0xff]
          %v444 = vadd.f32 %v440, %v442
          %v445 = vadd.f32 %v441, %v443
          %446 = vst.msk [vmem:[%s262] sm:$0xff] %vm304, %v444
          %447 = vst.msk [vmem:[%s262 + $0x8] sm:$0xff] %vm304, %v445
        $region81: #{signed_gcn_forward.8} parent=68 // pred_fallthru
          _
        %s448 = smul.u32 2, %s18
        %p449 = scmp.lt.s32.totalorder %s448, 3
        %s450 = scalar_select %p449, %s448, 3
        %s451 = smul.addr %s450, 8
        %s452 = scalar_lea.vmem %s3, %s451
        // Predicated region
        $region82: #{signed_gcn_forward.8} parent=68 // pred_check
          %p453 = pneg %p119
        $region83: #{signed_gcn_forward.8} parent=68 // pred_check_branch
          %455 = sbr.rel (%p453) target = $region85
        $region84: #{signed_gcn_forward.8} parent=68 // pred_region
          %s456 = smul.u32 2, %s18
        $region85: #{signed_gcn_forward.8} parent=68 // pred_fallthru
          _
      $region69: #{signed_gcn_forward.8} parent=5 // pred_fallthru
        _
      %p457 = scmp.le.s32.totalorder 2, %s9
      // Predicated region
      $region86: #{signed_gcn_forward.8} parent=5 // pred_check
        %p458 = pneg %p457
      $region87: #{signed_gcn_forward.8} parent=5 // pred_check_branch
        %460 = sbr.rel (%p458) target = $region89
      $region88: #{signed_gcn_forward.8} parent=5 // pred_region
        %s461 = ssub.s32 %s9, 2
        // Predicated region
        $region90: #{signed_gcn_forward.8} parent=88 // pred_check
          %p462 = pneg %p125
        $region91: #{signed_gcn_forward.8} parent=88 // pred_check_branch
          %464 = sbr.rel (%p462) target = $region93
        $region92: #{signed_gcn_forward.8} parent=88 // pred_region
          %s465 = smul.u32 2, %s20
          %p466 = scmp.lt.s32.totalorder %s465, 3
          %s467 = scalar_select %p466, %s465, 3
          %s468 = smul.addr %s467, 8
          %s469 = scalar_lea.vmem %s3, %s468
        $region93: #{signed_gcn_forward.8} parent=88 // pred_fallthru
          _
      $region89: #{signed_gcn_forward.8} parent=5 // pred_fallthru
        _
    $region6: #{signed_gcn_forward.8} parent=1 // loop_footer
      %s13 = sadd.s32 1, %s9
    $region7: #{signed_gcn_forward.8} parent=1 // loop_footer_branch
      %8 = sbr.rel target = $region3
    $region8: #{signed_gcn_forward.8} parent=1 // loop_exit
      _

// kernel: signed_gcn_forward.9
$region0: #{signed_gcn_forward.9}
  #allocation0 [shape = 'u32[]', space=smem, size = 0x4, offset = 0x4, fixed_abs, tag = 'smem constant byte address 0x4 - core index']
  #allocation1 [shape = 'u32[144,128]{1,0:T(1,128)}', space=vmem, size = 0x12000, scoped, tag = 'internal scratch']
  #allocation2 [shape = 'f32[8,32]{1,0:T(8,128)}', space=vmem, size = 0x1000, scoped, tag = 'scratch operand']
  #allocation3 [shape = 'f32[1,1]{1,0:T(1,128)S(1)}', space=vmem, size = 0x200, scoped, tag = 'scoped memory for signed_gcn_forward.9']
  %s0 = inlined_call_operand.vmem [shape: f32[8,512], index: 0, kind: input, shape index: {}]
  %s1 = inlined_call_operand.vmem [shape: f32[512,32], index: 1, kind: input, shape index: {}]
  %s2 = inlined_call_operand.vmem [shape: f32[1,32], index: 2, kind: input, shape index: {}]
  %s3 = inlined_call_operand.vmem [shape: f32[1,32], index: 3, kind: input, shape index: {}]
  %s4 = inlined_call_operand.<no memory space> [shape: f32[1,1], index: 4, kind: input, shape index: {}]
  %s5 = inlined_call_operand.vmem [shape: f32[8,1], index: 5, kind: output, shape index: {}]
  %s6 = sld [smem:[#allocation0]]
  $region38: #{signed_gcn_forward.9} parent=0
    _
  %s8 = ssub.s32 1, %s6
  %s9 = scalar_select 0, %s8, %s6
  %v10 = vstv %s4
  %11 = vst [vmem:[#allocation3] sm:$0x1] %v10
  // Predicated region
  $region2: #{signed_gcn_forward.9} parent=0 // pred_check
    _
  $region3: #{signed_gcn_forward.9} parent=0 // pred_check_branch
    %13 = sbr.rel (0) target = $region5
  $region4: #{signed_gcn_forward.9} parent=0 // pred_region
    _
  $region5: #{signed_gcn_forward.9} parent=0 // pred_fallthru
    _
  // Predicated region
  $region6: #{signed_gcn_forward.9} parent=0 // pred_check
    _
  $region7: #{signed_gcn_forward.9} parent=0 // pred_check_branch
    %15 = sbr.rel (0) target = $region9
  $region8: #{signed_gcn_forward.9} parent=0 // pred_region
    _
  $region9: #{signed_gcn_forward.9} parent=0 // pred_fallthru
    _
  // Predicated region
  $region10: #{signed_gcn_forward.9} parent=0 // pred_check
    _
  $region11: #{signed_gcn_forward.9} parent=0 // pred_check_branch
    %17 = sbr.rel (0) target = $region13
  $region12: #{signed_gcn_forward.9} parent=0 // pred_region
    _
  $region13: #{signed_gcn_forward.9} parent=0 // pred_fallthru
    _
  // Predicated region
  $region14: #{signed_gcn_forward.9} parent=0 // pred_check
    _
  $region15: #{signed_gcn_forward.9} parent=0 // pred_check_branch
    %19 = sbr.rel (0) target = $region17
  $region16: #{signed_gcn_forward.9} parent=0 // pred_region
    _
  $region17: #{signed_gcn_forward.9} parent=0 // pred_fallthru
    _
  // Predicated region
  $region18: #{signed_gcn_forward.9} parent=0 // pred_check
    _
  $region19: #{signed_gcn_forward.9} parent=0 // pred_check_branch
    %21 = sbr.rel (0) target = $region21
  $region20: #{signed_gcn_forward.9} parent=0 // pred_region
    _
  $region21: #{signed_gcn_forward.9} parent=0 // pred_fallthru
    _
  %p22 = scmp.eq.s32.totalorder 0, 0
  // Predicated region
  $region22: #{signed_gcn_forward.9} parent=0 // pred_check
    %p23 = pneg %p22
  $region23: #{signed_gcn_forward.9} parent=0 // pred_check_branch
    %25 = sbr.rel (%p23) target = $region25
  $region24: #{signed_gcn_forward.9} parent=0 // pred_region
    %vm26 = vcmask 261120
    %27 = vst.msk [vmem:[#allocation2] sm:$0xff] %vm26, 0.0
  $region25: #{signed_gcn_forward.9} parent=0 // pred_fallthru
    _
  %v28 = vld [vmem:[#allocation2] sm:$0xff]
  %v29 = vld [vmem:[%s0] sm:$0xff]
  %v30 = vld [vmem:[%s0 + $0x8] sm:$0xff]
  %v31 = vld [vmem:[%s0 + $0x10] sm:$0xff]
  %v32 = vld [vmem:[%s0 + $0x18] sm:$0xff]
  %v33 = vld [vmem:[%s1] sm:$0xff]
  %v34 = vld [vmem:[%s1 + $0x8] sm:$0xff]
  %v35 = vld [vmem:[%s1 + $0x10] sm:$0xff]
  %v36 = vld [vmem:[%s1 + $0x18] sm:$0xff]
  %v37 = vld [vmem:[%s1 + $0x20] sm:$0xff]
  %v38 = vld [vmem:[%s1 + $0x28] sm:$0xff]
  %v39 = vld [vmem:[%s1 + $0x30] sm:$0xff]
  %v40 = vld [vmem:[%s1 + $0x38] sm:$0xff]
  %v41 = vld [vmem:[%s1 + $0x40] sm:$0xff]
  %v42 = vld [vmem:[%s1 + $0x48] sm:$0xff]
  %v43 = vld [vmem:[%s1 + $0x50] sm:$0xff]
  %v44 = vld [vmem:[%s1 + $0x58] sm:$0xff]
  %v45 = vld [vmem:[%s1 + $0x60] sm:$0xff]
  %v46 = vld [vmem:[%s1 + $0x68] sm:$0xff]
  %v47 = vld [vmem:[%s1 + $0x70] sm:$0xff]
  %v48 = vld [vmem:[%s1 + $0x78] sm:$0xff]
  %v49 = vld [vmem:[%s1 + $0x80] sm:$0xff]
  %v50 = vld [vmem:[%s1 + $0x88] sm:$0xff]
  %v51 = vld [vmem:[%s1 + $0x90] sm:$0xff]
  %v52 = vld [vmem:[%s1 + $0x98] sm:$0xff]
  %v53 = vld [vmem:[%s1 + $0xa0] sm:$0xff]
  %v54 = vld [vmem:[%s1 + $0xa8] sm:$0xff]
  %v55 = vld [vmem:[%s1 + $0xb0] sm:$0xff]
  %v56 = vld [vmem:[%s1 + $0xb8] sm:$0xff]
  %v57 = vld [vmem:[%s1 + $0xc0] sm:$0xff]
  %v58 = vld [vmem:[%s1 + $0xc8] sm:$0xff]
  %v59 = vld [vmem:[%s1 + $0xd0] sm:$0xff]
  %v60 = vld [vmem:[%s1 + $0xd8] sm:$0xff]
  %v61 = vld [vmem:[%s1 + $0xe0] sm:$0xff]
  %v62 = vld [vmem:[%s1 + $0xe8] sm:$0xff]
  %v63 = vld [vmem:[%s1 + $0xf0] sm:$0xff]
  %v64 = vld [vmem:[%s1 + $0xf8] sm:$0xff]
  %v65 = vld [vmem:[%s1 + $0x100] sm:$0xff]
  %v66 = vld [vmem:[%s1 + $0x108] sm:$0xff]
  %v67 = vld [vmem:[%s1 + $0x110] sm:$0xff]
  %v68 = vld [vmem:[%s1 + $0x118] sm:$0xff]
  %v69 = vld [vmem:[%s1 + $0x120] sm:$0xff]
  %v70 = vld [vmem:[%s1 + $0x128] sm:$0xff]
  %v71 = vld [vmem:[%s1 + $0x130] sm:$0xff]
  %v72 = vld [vmem:[%s1 + $0x138] sm:$0xff]
  %v73 = vld [vmem:[%s1 + $0x140] sm:$0xff]
  %v74 = vld [vmem:[%s1 + $0x148] sm:$0xff]
  %v75 = vld [vmem:[%s1 + $0x150] sm:$0xff]
  %v76 = vld [vmem:[%s1 + $0x158] sm:$0xff]
  %v77 = vld [vmem:[%s1 + $0x160] sm:$0xff]
  %v78 = vld [vmem:[%s1 + $0x168] sm:$0xff]
  %v79 = vld [vmem:[%s1 + $0x170] sm:$0xff]
  %v80 = vld [vmem:[%s1 + $0x178] sm:$0xff]
  %v81 = vld [vmem:[%s1 + $0x180] sm:$0xff]
  %v82 = vld [vmem:[%s1 + $0x188] sm:$0xff]
  %v83 = vld [vmem:[%s1 + $0x190] sm:$0xff]
  %v84 = vld [vmem:[%s1 + $0x198] sm:$0xff]
  %v85 = vld [vmem:[%s1 + $0x1a0] sm:$0xff]
  %v86 = vld [vmem:[%s1 + $0x1a8] sm:$0xff]
  %v87 = vld [vmem:[%s1 + $0x1b0] sm:$0xff]
  %v88 = vld [vmem:[%s1 + $0x1b8] sm:$0xff]
  %v89 = vld [vmem:[%s1 + $0x1c0] sm:$0xff]
  %v90 = vld [vmem:[%s1 + $0x1c8] sm:$0xff]
  %v91 = vld [vmem:[%s1 + $0x1d0] sm:$0xff]
  %v92 = vld [vmem:[%s1 + $0x1d8] sm:$0xff]
  %v93 = vld [vmem:[%s1 + $0x1e0] sm:$0xff]
  %v94 = vld [vmem:[%s1 + $0x1e8] sm:$0xff]
  %v95 = vld [vmem:[%s1 + $0x1f0] sm:$0xff]
  %v96 = vld [vmem:[%s1 + $0x1f8] sm:$0xff]
  %97 = vmatprep.subr.mxu0 0.0
  %98 = vmatpush1.msra.mxu0 %v33
  %99 = vmatprep.subr.mxu0 0.0
  %100 = vmatpush1.msra.mxu0 %v34
  %101 = vmatprep.subr.mxu0 0.0
  %102 = vmatpush1.msra.mxu0 %v35
  %103 = vmatprep.subr.mxu0 0.0
  %104 = vmatpush1.msra.mxu0 %v36
  %105 = vmatprep.subr.mxu0 0.0
  %106 = vmatpush1.msra.mxu0 %v37
  %107 = vmatprep.subr.mxu0 0.0
  %108 = vmatpush1.msra.mxu0 %v38
  %109 = vmatprep.subr.mxu0 0.0
  %110 = vmatpush1.msra.mxu0 %v39
  %111 = vmatprep.subr.mxu0 0.0
  %112 = vmatpush1.msra.mxu0 %v40
  %113 = vmatprep.subr.mxu0 0.0
  %114 = vmatpush1.msra.mxu0 %v41
  %115 = vmatprep.subr.mxu0 0.0
  %116 = vmatpush1.msra.mxu0 %v42
  %117 = vmatprep.subr.mxu0 0.0
  %118 = vmatpush1.msra.mxu0 %v43
  %119 = vmatprep.subr.mxu0 0.0
  %120 = vmatpush1.msra.mxu0 %v44
  %121 = vmatprep.subr.mxu0 0.0
  %122 = vmatpush1.msra.mxu0 %v45
  %123 = vmatprep.subr.mxu0 0.0
  %124 = vmatpush1.msra.mxu0 %v46
  %125 = vmatprep.subr.mxu0 0.0
  %126 = vmatpush1.msra.mxu0 %v47
  %127 = vmatprep.subr.mxu0 0.0
  %128 = vmatpush1.msra.mxu0 %v48
  %129 = vmatprep.subr.mxu0 0.0
  %130 = vmatpush1.msra.mxu0 %v49
  %131 = vmatprep.subr.mxu0 0.0
  %132 = vmatpush1.msra.mxu0 %v50
  %133 = vmatprep.subr.mxu0 0.0
  %134 = vmatpush1.msra.mxu0 %v51
  %135 = vmatprep.subr.mxu0 0.0
  %136 = vmatpush1.msra.mxu0 %v52
  %137 = vmatprep.subr.mxu0 0.0
  %138 = vmatpush1.msra.mxu0 %v53
  %139 = vmatprep.subr.mxu0 0.0
  %140 = vmatpush1.msra.mxu0 %v54
  %141 = vmatprep.subr.mxu0 0.0
  %142 = vmatpush1.msra.mxu0 %v55
  %143 = vmatprep.subr.mxu0 0.0
  %144 = vmatpush1.msra.mxu0 %v56
  %145 = vmatprep.subr.mxu0 0.0
  %146 = vmatpush1.msra.mxu0 %v57
  %147 = vmatprep.subr.mxu0 0.0
  %148 = vmatpush1.msra.mxu0 %v58
  %149 = vmatprep.subr.mxu0 0.0
  %150 = vmatpush1.msra.mxu0 %v59
  %151 = vmatprep.subr.mxu0 0.0
  %152 = vmatpush1.msra.mxu0 %v60
  %153 = vmatprep.subr.mxu0 0.0
  %154 = vmatpush1.msra.mxu0 %v61
  %155 = vmatprep.subr.mxu0 0.0
  %156 = vmatpush1.msra.mxu0 %v62
  %157 = vmatprep.subr.mxu0 0.0
  %158 = vmatpush1.msra.mxu0 %v63
  %159 = vmatprep.subr.mxu0 0.0
  %160 = vmatpush1.msra.mxu0 %v64
  %161 = vmatprep.mubr.f32.mxu0 %v30
  %162 = vmatmul.mubr.f32.gmra.mrb[0].mxu0 %v29
  %v163 = vpop.f32.mrb[0].mxu0
  %v164 = vadd.f32 0.0, %v163
  %v165 = vpop.f32.mrb[0].mxu0
  %166 = vdwg.mxu0
  %167 = vmatprep.subr.mxu0 0.0
  %168 = vmatpush1.msra.mxu0 %v65
  %169 = vmatprep.subr.mxu0 0.0
  %170 = vmatpush1.msra.mxu0 %v66
  %171 = vmatprep.subr.mxu0 0.0
  %172 = vmatpush1.msra.mxu0 %v67
  %173 = vmatprep.subr.mxu0 0.0
  %174 = vmatpush1.msra.mxu0 %v68
  %175 = vmatprep.subr.mxu0 0.0
  %176 = vmatpush1.msra.mxu0 %v69
  %177 = vmatprep.subr.mxu0 0.0
  %178 = vmatpush1.msra.mxu0 %v70
  %179 = vmatprep.subr.mxu0 0.0
  %180 = vmatpush1.msra.mxu0 %v71
  %181 = vmatprep.subr.mxu0 0.0
  %182 = vmatpush1.msra.mxu0 %v72
  %183 = vmatprep.subr.mxu0 0.0
  %184 = vmatpush1.msra.mxu0 %v73
  %185 = vmatprep.subr.mxu0 0.0
  %186 = vmatpush1.msra.mxu0 %v74
  %187 = vmatprep.subr.mxu0 0.0
  %188 = vmatpush1.msra.mxu0 %v75
  %189 = vmatprep.subr.mxu0 0.0
  %190 = vmatpush1.msra.mxu0 %v76
  %191 = vmatprep.subr.mxu0 0.0
  %192 = vmatpush1.msra.mxu0 %v77
  %193 = vmatprep.subr.mxu0 0.0
  %194 = vmatpush1.msra.mxu0 %v78
  %195 = vmatprep.subr.mxu0 0.0
  %196 = vmatpush1.msra.mxu0 %v79
  %197 = vmatprep.subr.mxu0 0.0
  %198 = vmatpush1.msra.mxu0 %v80
  %199 = vmatprep.subr.mxu0 0.0
  %200 = vmatpush1.msra.mxu0 %v81
  %201 = vmatprep.subr.mxu0 0.0
  %202 = vmatpush1.msra.mxu0 %v82
  %203 = vmatprep.subr.mxu0 0.0
  %204 = vmatpush1.msra.mxu0 %v83
  %205 = vmatprep.subr.mxu0 0.0
  %206 = vmatpush1.msra.mxu0 %v84
  %207 = vmatprep.subr.mxu0 0.0
  %208 = vmatpush1.msra.mxu0 %v85
  %209 = vmatprep.subr.mxu0 0.0
  %210 = vmatpush1.msra.mxu0 %v86
  %211 = vmatprep.subr.mxu0 0.0
  %212 = vmatpush1.msra.mxu0 %v87
  %213 = vmatprep.subr.mxu0 0.0
  %214 = vmatpush1.msra.mxu0 %v88
  %215 = vmatprep.subr.mxu0 0.0
  %216 = vmatpush1.msra.mxu0 %v89
  %217 = vmatprep.subr.mxu0 0.0
  %218 = vmatpush1.msra.mxu0 %v90
  %219 = vmatprep.subr.mxu0 0.0
  %220 = vmatpush1.msra.mxu0 %v91
  %221 = vmatprep.subr.mxu0 0.0
  %222 = vmatpush1.msra.mxu0 %v92
  %223 = vmatprep.subr.mxu0 0.0
  %224 = vmatpush1.msra.mxu0 %v93
  %225 = vmatprep.subr.mxu0 0.0
  %226 = vmatpush1.msra.mxu0 %v94
  %227 = vmatprep.subr.mxu0 0.0
  %228 = vmatpush1.msra.mxu0 %v95
  %229 = vmatprep.subr.mxu0 0.0
  %230 = vmatpush1.msra.mxu0 %v96
  %231 = vmatprep.mubr.f32.mxu0 %v32
  %232 = vmatmul.mubr.f32.gmra.mrb[0].mxu0 %v31
  %v233 = vpop.f32.mrb[0].mxu0
  %v234 = vadd.f32 %v164, %v233
  %v235 = vpop.f32.mrb[0].mxu0
  %236 = vdwg.mxu0
  %v237 = vadd.f32 %v28, %v234
  %vm238 = vcmask 261120
  %239 = vst.msk [vmem:[#allocation2] sm:$0xff] %vm238, %v237
  // Predicated region
  $region26: #{signed_gcn_forward.9} parent=0 // pred_check
    %p240 = pneg %p22
  $region27: #{signed_gcn_forward.9} parent=0 // pred_check_branch
    %242 = sbr.rel (%p240) target = $region29
  $region28: #{signed_gcn_forward.9} parent=0 // pred_region
    %v243 = vld [vmem:[#allocation2] sm:$0xff]
    %v244 = vld [vmem:[%s2] sm:$0x1]
    %v246 = vlaneseq
    %v247 = vshrl.u32 %v246, 7
    %v248 = vsub.s32 0, %v247
    %v249 = vrot.slane %v244, %v248
    %v251 = vadd.f32 %v243, %v249
    %v252 = vld [vmem:[%s3] sm:$0x1]
    %v254 = vlaneseq
    %v255 = vshrl.u32 %v254, 7
    %v256 = vsub.s32 0, %v255
    %v257 = vrot.slane %v252, %v256
    %v259 = vmul.f32 %v251, %v257
    %v260 = vsel %vm238, %v259, 0.0
    %261 = vadd.xlane.f32.xlu0 %v260
    %v262 = vpop.xlane.xlu0 %261
    %v263 = vld [vmem:[#allocation3] sm:$0x1]
    %v265 = vlaneseq
    %v266 = vshrl.u32 %v265, 7
    %v267 = vsub.s32 0, %v266
    %v268 = vrot.slane %v263, %v267
    %v270 = vadd.f32 %v262, %v268
    %vm271 = vcmask 7168
    %272 = vst.msk [vmem:[%s5] sm:$0xff] %vm271, %v270
  $region29: #{signed_gcn_forward.9} parent=0 // pred_fallthru
    _
  // Predicated region
  $region30: #{signed_gcn_forward.9} parent=0 // pred_check
    _
  $region31: #{signed_gcn_forward.9} parent=0 // pred_check_branch
    %274 = sbr.rel (0) target = $region33
  $region32: #{signed_gcn_forward.9} parent=0 // pred_region
    _
  $region33: #{signed_gcn_forward.9} parent=0 // pred_fallthru
    _
  // Predicated region
  $region34: #{signed_gcn_forward.9} parent=0 // pred_check
    _
  $region35: #{signed_gcn_forward.9} parent=0 // pred_check_branch
    %276 = sbr.rel (0) target = $region37
  $region36: #{signed_gcn_forward.9} parent=0 // pred_region
    _
  $region37: #{signed_gcn_forward.9} parent=0 // pred_fallthru
    _

</llo_original>
